<compile_context>
chip_gen: v6e
topology: v6e:2x2x1
jax: 0.10.0
libtpu: 0.0.40
codegen_flags: <defaults>
</compile_context>

<pallas_src>
import jax
import jax.numpy as jnp
from jax.experimental import pallas as pl
from jax.experimental.pallas import tpu as pltpu

EPS = 1e-5
NEG_SLOPE = 0.01  # nn.LeakyReLU(0.01)


def down_res_kernel(xee_ref, xeo_ref, xoe_ref, xoo_ref,
                    wd_ref, w1_ref, w2_ref,
                    g1_ref, b1_ref, g2_ref, b2_ref,
                    out_ref, pad_ref):
    # xee/xeo/xoe/xoo : (N, Ho+1, Wo+1, Cin) bf16  even/odd phases of padded input
    # wd_ref          : (9*Cin, C) bf16            down-conv weight (im2col matrix)
    # w1_ref, w2_ref  : (9*C, C)   bf16            res-block conv weights (im2col)
    # g*/b*           : (1, C)     f32             BatchNorm gamma / beta
    # out_ref         : (N*Ho, Wo*C) f32           lane-dense output slab
    # pad_ref         : (N, Ho+2, Wo+4, C) bf16    same-padding scratch
    #                   (W padded by 2 per side so interior stores stay aligned
    #                    under bf16 sublane packing; valid cols are 1..Wo+2)
    N, Hp, Wp, C = pad_ref.shape
    Ho, Wo = Hp - 2, Wp - 4
    M = N * Ho * Wo
    Cin = xee_ref.shape[-1]

    # ---- zero ONLY the halo of the bf16 padding scratch (once) --------------
    pad_ref[:, 0:1, :, :] = jnp.zeros((N, 1, Wp, C), jnp.bfloat16)
    pad_ref[:, Hp - 1:Hp, :, :] = jnp.zeros((N, 1, Wp, C), jnp.bfloat16)
    pad_ref[:, :, 0:2, :] = jnp.zeros((N, Hp, 2, C), jnp.bfloat16)
    pad_ref[:, :, Wp - 2:Wp, :] = jnp.zeros((N, Hp, 2, C), jnp.bfloat16)

    # ---- down: stride-2 3x3 conv as ONE (M, 9*Cin) x (9*Cin, C) matmul ------
    # Tap (dy, dx) of output pixel (i, j) reads padded-input (2i+dy, 2j+dx);
    # with the even/odd phase split every tap is a plain unstrided slice.
    xee = xee_ref[...]
    xeo = xeo_ref[...]
    xoe = xoe_ref[...]
    xoo = xoo_ref[...]
    taps0 = [
        xee[:, :Ho, :Wo, :], xeo[:, :Ho, :Wo, :], xee[:, :Ho, 1:, :],
        xoe[:, :Ho, :Wo, :], xoo[:, :Ho, :Wo, :], xoe[:, :Ho, 1:, :],
        xee[:, 1:, :Wo, :],  xeo[:, 1:, :Wo, :],  xee[:, 1:, 1:, :],
    ]
    slab0 = jnp.concatenate(taps0, axis=-1).reshape(M, 9 * Cin)      # bf16
    y0 = jnp.dot(slab0, wd_ref[...],
                 preferred_element_type=jnp.float32)                 # (M, C) f32

    def bn_lrelu(x, g, b):
        # BatchNorm2d training-mode semantics: batch stats, biased variance.
        # Two-pass variance in f32 (avoids E[x^2]-E[x]^2 cancellation).
        mean = jnp.mean(x, axis=0, keepdims=True)
        var = jnp.mean(jnp.square(x - mean), axis=0, keepdims=True)
        y = (x - mean) * jax.lax.rsqrt(var + EPS) * g + b
        return jnp.maximum(y, NEG_SLOPE * y)                         # LeakyReLU

    def conv3x3_same(x_bf16_flat, w_ref):
        # Same-padded 3x3 conv as ONE (M, 9*C) x (9*C, C) matmul.
        # Interior lives at W cols [2, Wo+2): offset 2 keeps the bf16 store
        # aligned to packed sublanes.  Valid padded window is cols 1..Wo+2.
        pad_ref[:, 1:Ho + 1, 2:Wo + 2, :] = x_bf16_flat.reshape(N, Ho, Wo, C)
        taps = [pad_ref[:, dy:dy + Ho, dx + 1:dx + 1 + Wo, :]
                for dy in range(3) for dx in range(3)]
        slab = jnp.concatenate(taps, axis=-1).reshape(M, 9 * C)      # bf16
        return jnp.dot(slab, w_ref[...], preferred_element_type=jnp.float32)

    # bf16 cast happens once per activation (M*C elements), before expansion.
    a = bn_lrelu(y0, g1_ref[...], b1_ref[...]).astype(jnp.bfloat16)
    r1 = conv3x3_same(a, w1_ref)
    c = bn_lrelu(r1, g2_ref[...], b2_ref[...]).astype(jnp.bfloat16)
    r2 = conv3x3_same(c, w2_ref)

    # residual: img_in + res_block(img_in), img_in being the down-conv output
    out2d = y0 + r2                                                   # (M, C) f32

    # Lane-dense store: (M, C) -> (N*Ho, Wo*C) via a static lane-concat
    # (same lowering path as the im2col concat; keeps the final vst unmasked-ish
    # instead of 8/128-lane masked stores).
    out_rows = out2d.reshape(N * Ho, Wo, C)
    out_ref[...] = jnp.concatenate([out_rows[:, j, :] for j in range(Wo)],
                                   axis=-1)


def down_forward_pallas(x_nchw, wd, w1, w2, g1, b1, g2, b2):
    """Forward of Down(filters) on an NCHW float32 input."""
    N, Cin, H, W = x_nchw.shape
    Cout = wd.shape[0]
    Ho, Wo = H // 2, W // 2

    # --- layout glue: NCHW -> NHWC bf16, 1px zero-pad, even/odd phase split --
    # (each input element is read/written once; no 9x im2col expansion in HBM,
    #  and the bf16 cast happens here so the kernel does zero input casts)
    x = jnp.transpose(x_nchw, (0, 2, 3, 1)).astype(jnp.bfloat16)
    xp = jnp.pad(x, ((0, 0), (1, 1), (1, 1), (0, 0)))
    xee = xp[:, 0::2, 0::2, :]
    xeo = xp[:, 0::2, 1::2, :]
    xoe = xp[:, 1::2, 0::2, :]
    xoo = xp[:, 1::2, 1::2, :]

    # PyTorch conv weights (Cout, Cin, kh, kw) -> im2col matrices, bf16
    # (f32 accumulation happens on the MXU via preferred_element_type).
    wd_m = jnp.transpose(wd, (2, 3, 1, 0)).reshape(9 * Cin, Cout).astype(jnp.bfloat16)
    w1_m = jnp.transpose(w1, (2, 3, 1, 0)).reshape(9 * Cout, Cout).astype(jnp.bfloat16)
    w2_m = jnp.transpose(w2, (2, 3, 1, 0)).reshape(9 * Cout, Cout).astype(jnp.bfloat16)

    vmem = pl.BlockSpec(memory_space=pltpu.MemorySpace.VMEM)
    out_dense = pl.pallas_call(
        down_res_kernel,
        out_shape=jax.ShapeDtypeStruct((N * Ho, Wo * Cout), jnp.float32),
        in_specs=[vmem] * 11,
        out_specs=vmem,
        scratch_shapes=[pltpu.VMEM((N, Ho + 2, Wo + 4, Cout), jnp.bfloat16)],
    )(xee, xeo, xoe, xoo, wd_m, w1_m, w2_m,
      g1.reshape(1, Cout).astype(jnp.float32),
      b1.reshape(1, Cout).astype(jnp.float32),
      g2.reshape(1, Cout).astype(jnp.float32),
      b2.reshape(1, Cout).astype(jnp.float32))

    out_nhwc = out_dense.reshape(N, Ho, Wo, Cout)
    return jnp.transpose(out_nhwc, (0, 3, 1, 2))                      # NCHW


# ----------------------- pure-JAX reference (full f32) ----------------------
def down_forward_ref(x, wd, w1, w2, g1, b1, g2, b2):
    def conv(x, w, stride):
        return jax.lax.conv_general_dilated(
            x, w, (stride, stride), ((1, 1), (1, 1)),
            dimension_numbers=("NCHW", "OIHW", "NCHW"),
            precision=jax.lax.Precision.HIGHEST)

    def bn_lrelu(x, g, b):
        mean = jnp.mean(x, axis=(0, 2, 3), keepdims=True)
        var = jnp.mean((x - mean) ** 2, axis=(0, 2, 3), keepdims=True)
        y = ((x - mean) / jnp.sqrt(var + EPS) * g.reshape(1, -1, 1, 1)
             + b.reshape(1, -1, 1, 1))
        return jnp.where(y > 0, y, NEG_SLOPE * y)

    y0 = conv(x, wd, 2)
    h = conv(bn_lrelu(y0, g1, b1), w1, 1)
    h = conv(bn_lrelu(h, g2, b2), w2, 1)
    return y0 + h


if __name__ == "__main__":
    filters = 8
    cin = filters // 2          # Down takes filters//2 input channels
    N, H, W = 2, 16, 16

    key = jax.random.PRNGKey(0)
    kx, kd, k1, k2 = jax.random.split(key, 4)
    x = jax.random.normal(kx, (N, cin, H, W), jnp.float32)
    # deterministic synthetic parameters (shapes from the module's __init__)
    wd = jax.random.normal(kd, (filters, cin, 3, 3), jnp.float32) * 0.2
    w1 = jax.random.normal(k1, (filters, filters, 3, 3), jnp.float32) * 0.1
    w2 = jax.random.normal(k2, (filters, filters, 3, 3), jnp.float32) * 0.1
    g1 = jnp.ones((filters,), jnp.float32)
    b1 = jnp.zeros((filters,), jnp.float32)
    g2 = jnp.ones((filters,), jnp.float32)
    b2 = jnp.zeros((filters,), jnp.float32)

    out = jax.block_until_ready(
        jax.jit(down_forward_pallas)(x, wd, w1, w2, g1, b1, g2, b2))
    ref = jax.block_until_ready(
        down_forward_ref(x, wd, w1, w2, g1, b1, g2, b2))

    assert out.shape == (N, filters, H // 2, W // 2), out.shape
    assert bool(jnp.all(jnp.isfinite(out)))
    # Matmul operands are bf16 (f32 accumulation on the MXU) per the TPU perf
    # guidance, while the reference is full-f32 HIGHEST -> bf16-level tolerance.
    err = float(jnp.max(jnp.abs(out - ref)))
    assert bool(jnp.allclose(out, ref, rtol=3e-2, atol=3e-2)), err
    print("KERNEL_OK")
</pallas_src>

<mosaic_0001>
module attributes {stable_mosaic.version = 11 : i64} {
  func.func @down_res_kernel(%arg0: memref<2x9x9x4xbf16, #tpu.memory_space<vmem>>, %arg1: memref<2x9x9x4xbf16, #tpu.memory_space<vmem>>, %arg2: memref<2x9x9x4xbf16, #tpu.memory_space<vmem>>, %arg3: memref<2x9x9x4xbf16, #tpu.memory_space<vmem>>, %arg4: memref<36x8xbf16, #tpu.memory_space<vmem>>, %arg5: memref<72x8xbf16, #tpu.memory_space<vmem>>, %arg6: memref<72x8xbf16, #tpu.memory_space<vmem>>, %arg7: memref<1x8xf32, #tpu.memory_space<vmem>>, %arg8: memref<1x8xf32, #tpu.memory_space<vmem>>, %arg9: memref<1x8xf32, #tpu.memory_space<vmem>>, %arg10: memref<1x8xf32, #tpu.memory_space<vmem>>, %arg11: memref<16x64xf32, #tpu.memory_space<vmem>>, %arg12: memref<2x10x12x8xbf16, #tpu.memory_space<vmem>>) attributes {dimension_semantics = [], scalar_prefetch = 0 : i64, scratch_operands = 1 : i64, tpu.core_type = #tpu.core_type<tc>} {
    %cst = arith.constant 0.000000e+00 : bf16
    %0 = vector.broadcast %cst : bf16 to vector<2x1x12x8xbf16>
    %c0 = arith.constant 0 : index
    %c0_0 = arith.constant 0 : index
    %c0_1 = arith.constant 0 : index
    %c0_2 = arith.constant 0 : index
    %1 = vector.load %arg12[%c0, %c0_0, %c0_1, %c0_2] : memref<2x10x12x8xbf16, #tpu.memory_space<vmem>>, vector<2x1x12x8xbf16>
    tpu.vector_store %arg12[%c0, %c0_0, %c0_1, %c0_2], %0 {strides = array<i32>} : memref<2x10x12x8xbf16, #tpu.memory_space<vmem>>, vector<2x1x12x8xbf16>,
    %cst_3 = arith.constant 0.000000e+00 : bf16
    %2 = vector.broadcast %cst_3 : bf16 to vector<2x1x12x8xbf16>
    %c0_4 = arith.constant 0 : index
    %c9 = arith.constant 9 : index
    %c0_5 = arith.constant 0 : index
    %c0_6 = arith.constant 0 : index
    %3 = vector.load %arg12[%c0_4, %c9, %c0_5, %c0_6] : memref<2x10x12x8xbf16, #tpu.memory_space<vmem>>, vector<2x1x12x8xbf16>
    tpu.vector_store %arg12[%c0_4, %c9, %c0_5, %c0_6], %2 {strides = array<i32>} : memref<2x10x12x8xbf16, #tpu.memory_space<vmem>>, vector<2x1x12x8xbf16>,
    %cst_7 = arith.constant 0.000000e+00 : bf16
    %4 = vector.broadcast %cst_7 : bf16 to vector<2x10x2x8xbf16>
    %c0_8 = arith.constant 0 : index
    %c0_9 = arith.constant 0 : index
    %c0_10 = arith.constant 0 : index
    %c0_11 = arith.constant 0 : index
    %5 = vector.load %arg12[%c0_8, %c0_9, %c0_10, %c0_11] : memref<2x10x12x8xbf16, #tpu.memory_space<vmem>>, vector<2x10x2x8xbf16>
    tpu.vector_store %arg12[%c0_8, %c0_9, %c0_10, %c0_11], %4 {strides = array<i32>} : memref<2x10x12x8xbf16, #tpu.memory_space<vmem>>, vector<2x10x2x8xbf16>,
    %cst_12 = arith.constant 0.000000e+00 : bf16
    %6 = vector.broadcast %cst_12 : bf16 to vector<2x10x2x8xbf16>
    %c0_13 = arith.constant 0 : index
    %c0_14 = arith.constant 0 : index
    %c10 = arith.constant 10 : index
    %c0_15 = arith.constant 0 : index
    %7 = vector.load %arg12[%c0_13, %c0_14, %c10, %c0_15] : memref<2x10x12x8xbf16, #tpu.memory_space<vmem>>, vector<2x10x2x8xbf16>
    tpu.vector_store %arg12[%c0_13, %c0_14, %c10, %c0_15], %6 {strides = array<i32>} : memref<2x10x12x8xbf16, #tpu.memory_space<vmem>>, vector<2x10x2x8xbf16>,
    %c0_16 = arith.constant 0 : index
    %c0_17 = arith.constant 0 : index
    %c0_18 = arith.constant 0 : index
    %c0_19 = arith.constant 0 : index
    %8 = vector.load %arg0[%c0_16, %c0_17, %c0_18, %c0_19] : memref<2x9x9x4xbf16, #tpu.memory_space<vmem>>, vector<2x9x9x4xbf16>
    %c0_20 = arith.constant 0 : index
    %c0_21 = arith.constant 0 : index
    %c0_22 = arith.constant 0 : index
    %c0_23 = arith.constant 0 : index
    %9 = vector.load %arg1[%c0_20, %c0_21, %c0_22, %c0_23] : memref<2x9x9x4xbf16, #tpu.memory_space<vmem>>, vector<2x9x9x4xbf16>
    %c0_24 = arith.constant 0 : index
    %c0_25 = arith.constant 0 : index
    %c0_26 = arith.constant 0 : index
    %c0_27 = arith.constant 0 : index
    %10 = vector.load %arg2[%c0_24, %c0_25, %c0_26, %c0_27] : memref<2x9x9x4xbf16, #tpu.memory_space<vmem>>, vector<2x9x9x4xbf16>
    %c0_28 = arith.constant 0 : index
    %c0_29 = arith.constant 0 : index
    %c0_30 = arith.constant 0 : index
    %c0_31 = arith.constant 0 : index
    %11 = vector.load %arg3[%c0_28, %c0_29, %c0_30, %c0_31] : memref<2x9x9x4xbf16, #tpu.memory_space<vmem>>, vector<2x9x9x4xbf16>
    %12 = vector.extract_strided_slice %8 {offsets = [0, 0, 0, 0], sizes = [2, 8, 8, 4], strides = [1, 1, 1, 1]} : vector<2x9x9x4xbf16> to vector<2x8x8x4xbf16>
    %13 = vector.extract_strided_slice %9 {offsets = [0, 0, 0, 0], sizes = [2, 8, 8, 4], strides = [1, 1, 1, 1]} : vector<2x9x9x4xbf16> to vector<2x8x8x4xbf16>
    %14 = vector.extract_strided_slice %8 {offsets = [0, 0, 1, 0], sizes = [2, 8, 8, 4], strides = [1, 1, 1, 1]} : vector<2x9x9x4xbf16> to vector<2x8x8x4xbf16>
    %15 = vector.extract_strided_slice %10 {offsets = [0, 0, 0, 0], sizes = [2, 8, 8, 4], strides = [1, 1, 1, 1]} : vector<2x9x9x4xbf16> to vector<2x8x8x4xbf16>
    %16 = vector.extract_strided_slice %11 {offsets = [0, 0, 0, 0], sizes = [2, 8, 8, 4], strides = [1, 1, 1, 1]} : vector<2x9x9x4xbf16> to vector<2x8x8x4xbf16>
    %17 = vector.extract_strided_slice %10 {offsets = [0, 0, 1, 0], sizes = [2, 8, 8, 4], strides = [1, 1, 1, 1]} : vector<2x9x9x4xbf16> to vector<2x8x8x4xbf16>
    %18 = vector.extract_strided_slice %8 {offsets = [0, 1, 0, 0], sizes = [2, 8, 8, 4], strides = [1, 1, 1, 1]} : vector<2x9x9x4xbf16> to vector<2x8x8x4xbf16>
    %19 = vector.extract_strided_slice %9 {offsets = [0, 1, 0, 0], sizes = [2, 8, 8, 4], strides = [1, 1, 1, 1]} : vector<2x9x9x4xbf16> to vector<2x8x8x4xbf16>
    %20 = vector.extract_strided_slice %8 {offsets = [0, 1, 1, 0], sizes = [2, 8, 8, 4], strides = [1, 1, 1, 1]} : vector<2x9x9x4xbf16> to vector<2x8x8x4xbf16>
    %21 = tpu.concatenate %12, %13, %14, %15, %16, %17, %18, %19, %20 in 3 : vector<2x8x8x4xbf16>, vector<2x8x8x4xbf16>, vector<2x8x8x4xbf16>, vector<2x8x8x4xbf16>, vector<2x8x8x4xbf16>, vector<2x8x8x4xbf16>, vector<2x8x8x4xbf16>, vector<2x8x8x4xbf16>, vector<2x8x8x4xbf16> -> vector<2x8x8x36xbf16>
    %22 = vector.shape_cast %21 : vector<2x8x8x36xbf16> to vector<128x36xbf16>
    %c0_32 = arith.constant 0 : index
    %c0_33 = arith.constant 0 : index
    %23 = vector.load %arg4[%c0_32, %c0_33] : memref<36x8xbf16, #tpu.memory_space<vmem>>, vector<36x8xbf16>
    %cst_34 = arith.constant dense<0.000000e+00> : vector<128x8xf32>
    %24 = tpu.matmul %22, %23, %cst_34 {dimension_numbers = #tpu.dot_dimension_numbers<[1], [0], [0], [1], [0, 0, 1, 1], [], []>} : vector<128x36xbf16>, vector<36x8xbf16>, vector<128x8xf32> -> vector<128x8xf32>
    %c0_35 = arith.constant 0 : index
    %c0_36 = arith.constant 0 : index
    %25 = vector.load %arg7[%c0_35, %c0_36] : memref<1x8xf32, #tpu.memory_space<vmem>>, vector<1x8xf32>
    %c0_37 = arith.constant 0 : index
    %c0_38 = arith.constant 0 : index
    %26 = vector.load %arg8[%c0_37, %c0_38] : memref<1x8xf32, #tpu.memory_space<vmem>>, vector<1x8xf32>
    %cst_39 = arith.constant dense<0.000000e+00> : vector<8xf32>
    %27 = vector.multi_reduction <add>, %24, %cst_39 [0] : vector<128x8xf32> to vector<8xf32>
    %28 = vector.shape_cast %27 : vector<8xf32> to vector<1x8xf32>
    %cst_40 = arith.constant 1.280000e+02 : f32
    %29 = vector.broadcast %cst_40 : f32 to vector<1x8xf32>
    %30 = arith.divf %28, %29 : vector<1x8xf32>
    %31 = vector.broadcast %30 : vector<1x8xf32> to vector<128x8xf32>
    %32 = arith.subf %24, %31 : vector<128x8xf32>
    %33 = arith.mulf %32, %32 : vector<128x8xf32>
    %cst_41 = arith.constant dense<0.000000e+00> : vector<8xf32>
    %34 = vector.multi_reduction <add>, %33, %cst_41 [0] : vector<128x8xf32> to vector<8xf32>
    %35 = vector.shape_cast %34 : vector<8xf32> to vector<1x8xf32>
    %cst_42 = arith.constant 1.280000e+02 : f32
    %36 = vector.broadcast %cst_42 : f32 to vector<1x8xf32>
    %37 = arith.divf %35, %36 : vector<1x8xf32>
    %38 = vector.broadcast %30 : vector<1x8xf32> to vector<128x8xf32>
    %39 = arith.subf %24, %38 : vector<128x8xf32>
    %cst_43 = arith.constant 9.99999974E-6 : f32
    %40 = vector.broadcast %cst_43 : f32 to vector<1x8xf32>
    %41 = arith.addf %37, %40 : vector<1x8xf32>
    %42 = math.rsqrt %41 : vector<1x8xf32>
    %43 = vector.broadcast %42 : vector<1x8xf32> to vector<128x8xf32>
    %44 = arith.mulf %39, %43 : vector<128x8xf32>
    %45 = vector.broadcast %25 : vector<1x8xf32> to vector<128x8xf32>
    %46 = arith.mulf %44, %45 : vector<128x8xf32>
    %47 = vector.broadcast %26 : vector<1x8xf32> to vector<128x8xf32>
    %48 = arith.addf %46, %47 : vector<128x8xf32>
    %cst_44 = arith.constant 0.00999999977 : f32
    %49 = vector.broadcast %cst_44 : f32 to vector<128x8xf32>
    %50 = arith.mulf %49, %48 : vector<128x8xf32>
    %51 = arith.maximumf %48, %50 : vector<128x8xf32>
    %52 = arith.truncf %51 : vector<128x8xf32> to vector<128x8xbf16>
    %53 = vector.shape_cast %52 : vector<128x8xbf16> to vector<2x8x8x8xbf16>
    %c0_45 = arith.constant 0 : index
    %c1 = arith.constant 1 : index
    %c2 = arith.constant 2 : index
    %c0_46 = arith.constant 0 : index
    %54 = vector.load %arg12[%c0_45, %c1, %c2, %c0_46] : memref<2x10x12x8xbf16, #tpu.memory_space<vmem>>, vector<2x8x8x8xbf16>
    tpu.vector_store %arg12[%c0_45, %c1, %c2, %c0_46], %53 {strides = array<i32>} : memref<2x10x12x8xbf16, #tpu.memory_space<vmem>>, vector<2x8x8x8xbf16>,
    %c0_47 = arith.constant 0 : index
    %c0_48 = arith.constant 0 : index
    %c1_49 = arith.constant 1 : index
    %c0_50 = arith.constant 0 : index
    %55 = vector.load %arg12[%c0_47, %c0_48, %c1_49, %c0_50] : memref<2x10x12x8xbf16, #tpu.memory_space<vmem>>, vector<2x8x8x8xbf16>
    %c0_51 = arith.constant 0 : index
    %c0_52 = arith.constant 0 : index
    %c2_53 = arith.constant 2 : index
    %c0_54 = arith.constant 0 : index
    %56 = vector.load %arg12[%c0_51, %c0_52, %c2_53, %c0_54] : memref<2x10x12x8xbf16, #tpu.memory_space<vmem>>, vector<2x8x8x8xbf16>
    %c0_55 = arith.constant 0 : index
    %c0_56 = arith.constant 0 : index
    %c3 = arith.constant 3 : index
    %c0_57 = arith.constant 0 : index
    %57 = vector.load %arg12[%c0_55, %c0_56, %c3, %c0_57] : memref<2x10x12x8xbf16, #tpu.memory_space<vmem>>, vector<2x8x8x8xbf16>
    %c0_58 = arith.constant 0 : index
    %c1_59 = arith.constant 1 : index
    %c1_60 = arith.constant 1 : index
    %c0_61 = arith.constant 0 : index
    %58 = vector.load %arg12[%c0_58, %c1_59, %c1_60, %c0_61] : memref<2x10x12x8xbf16, #tpu.memory_space<vmem>>, vector<2x8x8x8xbf16>
    %c0_62 = arith.constant 0 : index
    %c1_63 = arith.constant 1 : index
    %c2_64 = arith.constant 2 : index
    %c0_65 = arith.constant 0 : index
    %59 = vector.load %arg12[%c0_62, %c1_63, %c2_64, %c0_65] : memref<2x10x12x8xbf16, #tpu.memory_space<vmem>>, vector<2x8x8x8xbf16>
    %c0_66 = arith.constant 0 : index
    %c1_67 = arith.constant 1 : index
    %c3_68 = arith.constant 3 : index
    %c0_69 = arith.constant 0 : index
    %60 = vector.load %arg12[%c0_66, %c1_67, %c3_68, %c0_69] : memref<2x10x12x8xbf16, #tpu.memory_space<vmem>>, vector<2x8x8x8xbf16>
    %c0_70 = arith.constant 0 : index
    %c2_71 = arith.constant 2 : index
    %c1_72 = arith.constant 1 : index
    %c0_73 = arith.constant 0 : index
    %61 = vector.load %arg12[%c0_70, %c2_71, %c1_72, %c0_73] : memref<2x10x12x8xbf16, #tpu.memory_space<vmem>>, vector<2x8x8x8xbf16>
    %c0_74 = arith.constant 0 : index
    %c2_75 = arith.constant 2 : index
    %c2_76 = arith.constant 2 : index
    %c0_77 = arith.constant 0 : index
    %62 = vector.load %arg12[%c0_74, %c2_75, %c2_76, %c0_77] : memref<2x10x12x8xbf16, #tpu.memory_space<vmem>>, vector<2x8x8x8xbf16>
    %c0_78 = arith.constant 0 : index
    %c2_79 = arith.constant 2 : index
    %c3_80 = arith.constant 3 : index
    %c0_81 = arith.constant 0 : index
    %63 = vector.load %arg12[%c0_78, %c2_79, %c3_80, %c0_81] : memref<2x10x12x8xbf16, #tpu.memory_space<vmem>>, vector<2x8x8x8xbf16>
    %64 = tpu.concatenate %55, %56, %57, %58, %59, %60, %61, %62, %63 in 3 : vector<2x8x8x8xbf16>, vector<2x8x8x8xbf16>, vector<2x8x8x8xbf16>, vector<2x8x8x8xbf16>, vector<2x8x8x8xbf16>, vector<2x8x8x8xbf16>, vector<2x8x8x8xbf16>, vector<2x8x8x8xbf16>, vector<2x8x8x8xbf16> -> vector<2x8x8x72xbf16>
    %65 = vector.shape_cast %64 : vector<2x8x8x72xbf16> to vector<128x72xbf16>
    %c0_82 = arith.constant 0 : index
    %c0_83 = arith.constant 0 : index
    %66 = vector.load %arg5[%c0_82, %c0_83] : memref<72x8xbf16, #tpu.memory_space<vmem>>, vector<72x8xbf16>
    %cst_84 = arith.constant dense<0.000000e+00> : vector<128x8xf32>
    %67 = tpu.matmul %65, %66, %cst_84 {dimension_numbers = #tpu.dot_dimension_numbers<[1], [0], [0], [1], [0, 0, 1, 1], [], []>} : vector<128x72xbf16>, vector<72x8xbf16>, vector<128x8xf32> -> vector<128x8xf32>
    %c0_85 = arith.constant 0 : index
    %c0_86 = arith.constant 0 : index
    %68 = vector.load %arg9[%c0_85, %c0_86] : memref<1x8xf32, #tpu.memory_space<vmem>>, vector<1x8xf32>
    %c0_87 = arith.constant 0 : index
    %c0_88 = arith.constant 0 : index
    %69 = vector.load %arg10[%c0_87, %c0_88] : memref<1x8xf32, #tpu.memory_space<vmem>>, vector<1x8xf32>
    %cst_89 = arith.constant dense<0.000000e+00> : vector<8xf32>
    %70 = vector.multi_reduction <add>, %67, %cst_89 [0] : vector<128x8xf32> to vector<8xf32>
    %71 = vector.shape_cast %70 : vector<8xf32> to vector<1x8xf32>
    %cst_90 = arith.constant 1.280000e+02 : f32
    %72 = vector.broadcast %cst_90 : f32 to vector<1x8xf32>
    %73 = arith.divf %71, %72 : vector<1x8xf32>
    %74 = vector.broadcast %73 : vector<1x8xf32> to vector<128x8xf32>
    %75 = arith.subf %67, %74 : vector<128x8xf32>
    %76 = arith.mulf %75, %75 : vector<128x8xf32>
    %cst_91 = arith.constant dense<0.000000e+00> : vector<8xf32>
    %77 = vector.multi_reduction <add>, %76, %cst_91 [0] : vector<128x8xf32> to vector<8xf32>
    %78 = vector.shape_cast %77 : vector<8xf32> to vector<1x8xf32>
    %cst_92 = arith.constant 1.280000e+02 : f32
    %79 = vector.broadcast %cst_92 : f32 to vector<1x8xf32>
    %80 = arith.divf %78, %79 : vector<1x8xf32>
    %81 = vector.broadcast %73 : vector<1x8xf32> to vector<128x8xf32>
    %82 = arith.subf %67, %81 : vector<128x8xf32>
    %cst_93 = arith.constant 9.99999974E-6 : f32
    %83 = vector.broadcast %cst_93 : f32 to vector<1x8xf32>
    %84 = arith.addf %80, %83 : vector<1x8xf32>
    %85 = math.rsqrt %84 : vector<1x8xf32>
    %86 = vector.broadcast %85 : vector<1x8xf32> to vector<128x8xf32>
    %87 = arith.mulf %82, %86 : vector<128x8xf32>
    %88 = vector.broadcast %68 : vector<1x8xf32> to vector<128x8xf32>
    %89 = arith.mulf %87, %88 : vector<128x8xf32>
    %90 = vector.broadcast %69 : vector<1x8xf32> to vector<128x8xf32>
    %91 = arith.addf %89, %90 : vector<128x8xf32>
    %cst_94 = arith.constant 0.00999999977 : f32
    %92 = vector.broadcast %cst_94 : f32 to vector<128x8xf32>
    %93 = arith.mulf %92, %91 : vector<128x8xf32>
    %94 = arith.maximumf %91, %93 : vector<128x8xf32>
    %95 = arith.truncf %94 : vector<128x8xf32> to vector<128x8xbf16>
    %96 = vector.shape_cast %95 : vector<128x8xbf16> to vector<2x8x8x8xbf16>
    %c0_95 = arith.constant 0 : index
    %c1_96 = arith.constant 1 : index
    %c2_97 = arith.constant 2 : index
    %c0_98 = arith.constant 0 : index
    %97 = vector.load %arg12[%c0_95, %c1_96, %c2_97, %c0_98] : memref<2x10x12x8xbf16, #tpu.memory_space<vmem>>, vector<2x8x8x8xbf16>
    tpu.vector_store %arg12[%c0_95, %c1_96, %c2_97, %c0_98], %96 {strides = array<i32>} : memref<2x10x12x8xbf16, #tpu.memory_space<vmem>>, vector<2x8x8x8xbf16>,
    %c0_99 = arith.constant 0 : index
    %c0_100 = arith.constant 0 : index
    %c1_101 = arith.constant 1 : index
    %c0_102 = arith.constant 0 : index
    %98 = vector.load %arg12[%c0_99, %c0_100, %c1_101, %c0_102] : memref<2x10x12x8xbf16, #tpu.memory_space<vmem>>, vector<2x8x8x8xbf16>
    %c0_103 = arith.constant 0 : index
    %c0_104 = arith.constant 0 : index
    %c2_105 = arith.constant 2 : index
    %c0_106 = arith.constant 0 : index
    %99 = vector.load %arg12[%c0_103, %c0_104, %c2_105, %c0_106] : memref<2x10x12x8xbf16, #tpu.memory_space<vmem>>, vector<2x8x8x8xbf16>
    %c0_107 = arith.constant 0 : index
    %c0_108 = arith.constant 0 : index
    %c3_109 = arith.constant 3 : index
    %c0_110 = arith.constant 0 : index
    %100 = vector.load %arg12[%c0_107, %c0_108, %c3_109, %c0_110] : memref<2x10x12x8xbf16, #tpu.memory_space<vmem>>, vector<2x8x8x8xbf16>
    %c0_111 = arith.constant 0 : index
    %c1_112 = arith.constant 1 : index
    %c1_113 = arith.constant 1 : index
    %c0_114 = arith.constant 0 : index
    %101 = vector.load %arg12[%c0_111, %c1_112, %c1_113, %c0_114] : memref<2x10x12x8xbf16, #tpu.memory_space<vmem>>, vector<2x8x8x8xbf16>
    %c0_115 = arith.constant 0 : index
    %c1_116 = arith.constant 1 : index
    %c2_117 = arith.constant 2 : index
    %c0_118 = arith.constant 0 : index
    %102 = vector.load %arg12[%c0_115, %c1_116, %c2_117, %c0_118] : memref<2x10x12x8xbf16, #tpu.memory_space<vmem>>, vector<2x8x8x8xbf16>
    %c0_119 = arith.constant 0 : index
    %c1_120 = arith.constant 1 : index
    %c3_121 = arith.constant 3 : index
    %c0_122 = arith.constant 0 : index
    %103 = vector.load %arg12[%c0_119, %c1_120, %c3_121, %c0_122] : memref<2x10x12x8xbf16, #tpu.memory_space<vmem>>, vector<2x8x8x8xbf16>
    %c0_123 = arith.constant 0 : index
    %c2_124 = arith.constant 2 : index
    %c1_125 = arith.constant 1 : index
    %c0_126 = arith.constant 0 : index
    %104 = vector.load %arg12[%c0_123, %c2_124, %c1_125, %c0_126] : memref<2x10x12x8xbf16, #tpu.memory_space<vmem>>, vector<2x8x8x8xbf16>
    %c0_127 = arith.constant 0 : index
    %c2_128 = arith.constant 2 : index
    %c2_129 = arith.constant 2 : index
    %c0_130 = arith.constant 0 : index
    %105 = vector.load %arg12[%c0_127, %c2_128, %c2_129, %c0_130] : memref<2x10x12x8xbf16, #tpu.memory_space<vmem>>, vector<2x8x8x8xbf16>
    %c0_131 = arith.constant 0 : index
    %c2_132 = arith.constant 2 : index
    %c3_133 = arith.constant 3 : index
    %c0_134 = arith.constant 0 : index
    %106 = vector.load %arg12[%c0_131, %c2_132, %c3_133, %c0_134] : memref<2x10x12x8xbf16, #tpu.memory_space<vmem>>, vector<2x8x8x8xbf16>
    %107 = tpu.concatenate %98, %99, %100, %101, %102, %103, %104, %105, %106 in 3 : vector<2x8x8x8xbf16>, vector<2x8x8x8xbf16>, vector<2x8x8x8xbf16>, vector<2x8x8x8xbf16>, vector<2x8x8x8xbf16>, vector<2x8x8x8xbf16>, vector<2x8x8x8xbf16>, vector<2x8x8x8xbf16>, vector<2x8x8x8xbf16> -> vector<2x8x8x72xbf16>
    %108 = vector.shape_cast %107 : vector<2x8x8x72xbf16> to vector<128x72xbf16>
    %c0_135 = arith.constant 0 : index
    %c0_136 = arith.constant 0 : index
    %109 = vector.load %arg6[%c0_135, %c0_136] : memref<72x8xbf16, #tpu.memory_space<vmem>>, vector<72x8xbf16>
    %cst_137 = arith.constant dense<0.000000e+00> : vector<128x8xf32>
    %110 = tpu.matmul %108, %109, %cst_137 {dimension_numbers = #tpu.dot_dimension_numbers<[1], [0], [0], [1], [0, 0, 1, 1], [], []>} : vector<128x72xbf16>, vector<72x8xbf16>, vector<128x8xf32> -> vector<128x8xf32>
    %111 = arith.addf %24, %110 : vector<128x8xf32>
    %112 = vector.shape_cast %111 : vector<128x8xf32> to vector<16x8x8xf32>
    %113 = vector.extract_strided_slice %112 {offsets = [0, 0, 0], sizes = [16, 1, 8], strides = [1, 1, 1]} : vector<16x8x8xf32> to vector<16x1x8xf32>
    %114 = vector.shape_cast %113 : vector<16x1x8xf32> to vector<16x8xf32>
    %115 = vector.extract_strided_slice %112 {offsets = [0, 1, 0], sizes = [16, 1, 8], strides = [1, 1, 1]} : vector<16x8x8xf32> to vector<16x1x8xf32>
    %116 = vector.shape_cast %115 : vector<16x1x8xf32> to vector<16x8xf32>
    %117 = vector.extract_strided_slice %112 {offsets = [0, 2, 0], sizes = [16, 1, 8], strides = [1, 1, 1]} : vector<16x8x8xf32> to vector<16x1x8xf32>
    %118 = vector.shape_cast %117 : vector<16x1x8xf32> to vector<16x8xf32>
    %119 = vector.extract_strided_slice %112 {offsets = [0, 3, 0], sizes = [16, 1, 8], strides = [1, 1, 1]} : vector<16x8x8xf32> to vector<16x1x8xf32>
    %120 = vector.shape_cast %119 : vector<16x1x8xf32> to vector<16x8xf32>
    %121 = vector.extract_strided_slice %112 {offsets = [0, 4, 0], sizes = [16, 1, 8], strides = [1, 1, 1]} : vector<16x8x8xf32> to vector<16x1x8xf32>
    %122 = vector.shape_cast %121 : vector<16x1x8xf32> to vector<16x8xf32>
    %123 = vector.extract_strided_slice %112 {offsets = [0, 5, 0], sizes = [16, 1, 8], strides = [1, 1, 1]} : vector<16x8x8xf32> to vector<16x1x8xf32>
    %124 = vector.shape_cast %123 : vector<16x1x8xf32> to vector<16x8xf32>
    %125 = vector.extract_strided_slice %112 {offsets = [0, 6, 0], sizes = [16, 1, 8], strides = [1, 1, 1]} : vector<16x8x8xf32> to vector<16x1x8xf32>
    %126 = vector.shape_cast %125 : vector<16x1x8xf32> to vector<16x8xf32>
    %127 = vector.extract_strided_slice %112 {offsets = [0, 7, 0], sizes = [16, 1, 8], strides = [1, 1, 1]} : vector<16x8x8xf32> to vector<16x1x8xf32>
    %128 = vector.shape_cast %127 : vector<16x1x8xf32> to vector<16x8xf32>
    %129 = tpu.concatenate %114, %116, %118, %120, %122, %124, %126, %128 in 1 : vector<16x8xf32>, vector<16x8xf32>, vector<16x8xf32>, vector<16x8xf32>, vector<16x8xf32>, vector<16x8xf32>, vector<16x8xf32>, vector<16x8xf32> -> vector<16x64xf32>
    %c0_138 = arith.constant 0 : index
    %c0_139 = arith.constant 0 : index
    %130 = vector.load %arg11[%c0_138, %c0_139] : memref<16x64xf32, #tpu.memory_space<vmem>>, vector<16x64xf32>
    tpu.vector_store %arg11[%c0_138, %c0_139], %129 {strides = array<i32>} : memref<16x64xf32, #tpu.memory_space<vmem>>, vector<16x64xf32>,
    return
  }
}

</mosaic_0001>

<llo_original>
// kernel: down_forward_pallas.1
$region0: #{down_forward_pallas.1}
  #allocation0 [shape = 'u32[]', space=smem, size = 0x4, offset = 0x4, fixed_abs, tag = 'smem constant byte address 0x4 - core index']
  #allocation1 [shape = 'u32[144,128]{1,0:T(1,128)}', space=vmem, size = 0x12000, scoped, tag = 'internal scratch']
  #allocation2 [shape = 'bf16[2,10,12,8]{3,2,1,0:T(8,128)(2,1)}', space=vmem, size = 0x14000, scoped, tag = 'scratch operand']
  %s0 = inlined_call_operand.vmem [shape: bf16[2,9,9,4], index: 0, kind: input, shape index: {}]
  %s1 = inlined_call_operand.vmem [shape: bf16[2,9,9,4], index: 1, kind: input, shape index: {}]
  %s2 = inlined_call_operand.vmem [shape: bf16[2,9,9,4], index: 2, kind: input, shape index: {}]
  %s3 = inlined_call_operand.vmem [shape: bf16[2,9,9,4], index: 3, kind: input, shape index: {}]
  %s4 = inlined_call_operand.vmem [shape: bf16[36,8], index: 4, kind: input, shape index: {}]
  %s5 = inlined_call_operand.vmem [shape: bf16[72,8], index: 5, kind: input, shape index: {}]
  %s6 = inlined_call_operand.vmem [shape: bf16[72,8], index: 6, kind: input, shape index: {}]
  %s7 = inlined_call_operand.vmem [shape: f32[1,8], index: 7, kind: input, shape index: {}]
  %s8 = inlined_call_operand.vmem [shape: f32[1,8], index: 8, kind: input, shape index: {}]
  %s9 = inlined_call_operand.vmem [shape: f32[1,8], index: 9, kind: input, shape index: {}]
  %s10 = inlined_call_operand.vmem [shape: f32[1,8], index: 10, kind: input, shape index: {}]
  %s11 = inlined_call_operand.vmem [shape: f32[16,64], index: 11, kind: output, shape index: {}]
  %s12 = sld [smem:[#allocation0]]
  $region54: #{down_forward_pallas.1} parent=0
    _
  %s14 = ssub.s32 1, %s12
  %s15 = scalar_select 0, %s14, %s12
  // Predicated region
  $region2: #{down_forward_pallas.1} parent=0 // pred_check
    _
  $region3: #{down_forward_pallas.1} parent=0 // pred_check_branch
    %17 = sbr.rel (0) target = $region5
  $region4: #{down_forward_pallas.1} parent=0 // pred_region
    _
  $region5: #{down_forward_pallas.1} parent=0 // pred_fallthru
    _
  // Predicated region
  $region6: #{down_forward_pallas.1} parent=0 // pred_check
    _
  $region7: #{down_forward_pallas.1} parent=0 // pred_check_branch
    %19 = sbr.rel (0) target = $region9
  $region8: #{down_forward_pallas.1} parent=0 // pred_region
    _
  $region9: #{down_forward_pallas.1} parent=0 // pred_fallthru
    _
  // Predicated region
  $region10: #{down_forward_pallas.1} parent=0 // pred_check
    _
  $region11: #{down_forward_pallas.1} parent=0 // pred_check_branch
    %21 = sbr.rel (0) target = $region13
  $region12: #{down_forward_pallas.1} parent=0 // pred_region
    _
  $region13: #{down_forward_pallas.1} parent=0 // pred_fallthru
    _
  // Predicated region
  $region14: #{down_forward_pallas.1} parent=0 // pred_check
    _
  $region15: #{down_forward_pallas.1} parent=0 // pred_check_branch
    %23 = sbr.rel (0) target = $region17
  $region16: #{down_forward_pallas.1} parent=0 // pred_region
    _
  $region17: #{down_forward_pallas.1} parent=0 // pred_fallthru
    _
  // Predicated region
  $region18: #{down_forward_pallas.1} parent=0 // pred_check
    _
  $region19: #{down_forward_pallas.1} parent=0 // pred_check_branch
    %25 = sbr.rel (0) target = $region21
  $region20: #{down_forward_pallas.1} parent=0 // pred_region
    _
  $region21: #{down_forward_pallas.1} parent=0 // pred_fallthru
    _
  // Predicated region
  $region22: #{down_forward_pallas.1} parent=0 // pred_check
    _
  $region23: #{down_forward_pallas.1} parent=0 // pred_check_branch
    %27 = sbr.rel (0) target = $region25
  $region24: #{down_forward_pallas.1} parent=0 // pred_region
    _
  $region25: #{down_forward_pallas.1} parent=0 // pred_fallthru
    _
  // Predicated region
  $region26: #{down_forward_pallas.1} parent=0 // pred_check
    _
  $region27: #{down_forward_pallas.1} parent=0 // pred_check_branch
    %29 = sbr.rel (0) target = $region29
  $region28: #{down_forward_pallas.1} parent=0 // pred_region
    _
  $region29: #{down_forward_pallas.1} parent=0 // pred_fallthru
    _
  // Predicated region
  $region30: #{down_forward_pallas.1} parent=0 // pred_check
    _
  $region31: #{down_forward_pallas.1} parent=0 // pred_check_branch
    %31 = sbr.rel (0) target = $region33
  $region32: #{down_forward_pallas.1} parent=0 // pred_region
    _
  $region33: #{down_forward_pallas.1} parent=0 // pred_fallthru
    _
  // Predicated region
  $region34: #{down_forward_pallas.1} parent=0 // pred_check
    _
  $region35: #{down_forward_pallas.1} parent=0 // pred_check_branch
    %33 = sbr.rel (0) target = $region37
  $region36: #{down_forward_pallas.1} parent=0 // pred_region
    _
  $region37: #{down_forward_pallas.1} parent=0 // pred_fallthru
    _
  // Predicated region
  $region38: #{down_forward_pallas.1} parent=0 // pred_check
    _
  $region39: #{down_forward_pallas.1} parent=0 // pred_check_branch
    %35 = sbr.rel (0) target = $region41
  $region40: #{down_forward_pallas.1} parent=0 // pred_region
    _
  $region41: #{down_forward_pallas.1} parent=0 // pred_fallthru
    _
  // Predicated region
  $region42: #{down_forward_pallas.1} parent=0 // pred_check
    _
  $region43: #{down_forward_pallas.1} parent=0 // pred_check_branch
    %37 = sbr.rel (0) target = $region45
  $region44: #{down_forward_pallas.1} parent=0 // pred_region
    _
  $region45: #{down_forward_pallas.1} parent=0 // pred_fallthru
    _
  %vm39 = vcmask 60416
  %40 = vst.msk [vmem:[#allocation2] sm:$0xf] %vm39, 0
  %vm41 = vcmask 58368
  %42 = vst.msk [vmem:[#allocation2 + $0x4] sm:$0x3] %vm41, 0
  %43 = vst.msk [vmem:[#allocation2 + $0x50] sm:$0xf] %vm39, 0
  %44 = vst.msk [vmem:[#allocation2 + $0x54] sm:$0x3] %vm41, 0
  %s45 = scalar_lea.vmem [#allocation2], 72
  %46 = vst.msk [vmem:[%s45] sm:$0xf] %vm39, 0
  %47 = vst.msk [vmem:[%s45 + $0x4] sm:$0x3] %vm41, 0
  %48 = vst.msk [vmem:[%s45 + $0x50] sm:$0xf] %vm39, 0
  %49 = vst.msk [vmem:[%s45 + $0x54] sm:$0x3] %vm41, 0
  %vm50 = vcmask 57344
  %51 = vst.msk [vmem:[#allocation2] sm:$0x1] %vm50, 0
  %52 = vst.msk [vmem:[#allocation2 + $0x8] sm:$0x1] %vm50, 0
  %53 = vst.msk [vmem:[#allocation2 + $0x10] sm:$0x1] %vm50, 0
  %54 = vst.msk [vmem:[#allocation2 + $0x18] sm:$0x1] %vm50, 0
  %55 = vst.msk [vmem:[#allocation2 + $0x20] sm:$0x1] %vm50, 0
  %56 = vst.msk [vmem:[#allocation2 + $0x28] sm:$0x1] %vm50, 0
  %57 = vst.msk [vmem:[#allocation2 + $0x30] sm:$0x1] %vm50, 0
  %58 = vst.msk [vmem:[#allocation2 + $0x38] sm:$0x1] %vm50, 0
  %59 = vst.msk [vmem:[#allocation2 + $0x40] sm:$0x1] %vm50, 0
  %60 = vst.msk [vmem:[#allocation2 + $0x48] sm:$0x1] %vm50, 0
  %61 = vst.msk [vmem:[#allocation2 + $0x50] sm:$0x1] %vm50, 0
  %62 = vst.msk [vmem:[#allocation2 + $0x58] sm:$0x1] %vm50, 0
  %63 = vst.msk [vmem:[#allocation2 + $0x60] sm:$0x1] %vm50, 0
  %64 = vst.msk [vmem:[#allocation2 + $0x68] sm:$0x1] %vm50, 0
  %65 = vst.msk [vmem:[#allocation2 + $0x70] sm:$0x1] %vm50, 0
  %66 = vst.msk [vmem:[#allocation2 + $0x78] sm:$0x1] %vm50, 0
  %67 = vst.msk [vmem:[#allocation2 + $0x80] sm:$0x1] %vm50, 0
  %68 = vst.msk [vmem:[#allocation2 + $0x88] sm:$0x1] %vm50, 0
  %69 = vst.msk [vmem:[#allocation2 + $0x90] sm:$0x1] %vm50, 0
  %70 = vst.msk [vmem:[#allocation2 + $0x98] sm:$0x1] %vm50, 0
  %vm71 = vcmask 58369
  %72 = vst.msk [vmem:[#allocation2 + $0x4] sm:$0x2] %vm71, 0
  %73 = vst.msk [vmem:[#allocation2 + $0xc] sm:$0x2] %vm71, 0
  %74 = vst.msk [vmem:[#allocation2 + $0x14] sm:$0x2] %vm71, 0
  %75 = vst.msk [vmem:[#allocation2 + $0x1c] sm:$0x2] %vm71, 0
  %76 = vst.msk [vmem:[#allocation2 + $0x24] sm:$0x2] %vm71, 0
  %77 = vst.msk [vmem:[#allocation2 + $0x2c] sm:$0x2] %vm71, 0
  %78 = vst.msk [vmem:[#allocation2 + $0x34] sm:$0x2] %vm71, 0
  %79 = vst.msk [vmem:[#allocation2 + $0x3c] sm:$0x2] %vm71, 0
  %80 = vst.msk [vmem:[#allocation2 + $0x44] sm:$0x2] %vm71, 0
  %81 = vst.msk [vmem:[#allocation2 + $0x4c] sm:$0x2] %vm71, 0
  %82 = vst.msk [vmem:[#allocation2 + $0x54] sm:$0x2] %vm71, 0
  %83 = vst.msk [vmem:[#allocation2 + $0x5c] sm:$0x2] %vm71, 0
  %84 = vst.msk [vmem:[#allocation2 + $0x64] sm:$0x2] %vm71, 0
  %85 = vst.msk [vmem:[#allocation2 + $0x6c] sm:$0x2] %vm71, 0
  %86 = vst.msk [vmem:[#allocation2 + $0x74] sm:$0x2] %vm71, 0
  %87 = vst.msk [vmem:[#allocation2 + $0x7c] sm:$0x2] %vm71, 0
  %88 = vst.msk [vmem:[#allocation2 + $0x84] sm:$0x2] %vm71, 0
  %89 = vst.msk [vmem:[#allocation2 + $0x8c] sm:$0x2] %vm71, 0
  %90 = vst.msk [vmem:[#allocation2 + $0x94] sm:$0x2] %vm71, 0
  %91 = vst.msk [vmem:[#allocation2 + $0x9c] sm:$0x2] %vm71, 0
  %v92 = vld [vmem:[%s0] sm:$0xf]
  %v93 = vld [vmem:[%s0 + $0x4] sm:$0x1]
  %v94 = vld [vmem:[%s0 + $0x8] sm:$0xf]
  %v95 = vld [vmem:[%s0 + $0xc] sm:$0x1]
  %v96 = vld [vmem:[%s0 + $0x10] sm:$0xf]
  %v97 = vld [vmem:[%s0 + $0x14] sm:$0x1]
  %v98 = vld [vmem:[%s0 + $0x18] sm:$0xf]
  %v99 = vld [vmem:[%s0 + $0x1c] sm:$0x1]
  %v100 = vld [vmem:[%s0 + $0x20] sm:$0xf]
  %v101 = vld [vmem:[%s0 + $0x24] sm:$0x1]
  %v102 = vld [vmem:[%s0 + $0x28] sm:$0xf]
  %v103 = vld [vmem:[%s0 + $0x2c] sm:$0x1]
  %v104 = vld [vmem:[%s0 + $0x30] sm:$0xf]
  %v105 = vld [vmem:[%s0 + $0x34] sm:$0x1]
  %v106 = vld [vmem:[%s0 + $0x38] sm:$0xf]
  %v107 = vld [vmem:[%s0 + $0x3c] sm:$0x1]
  %v108 = vld [vmem:[%s0 + $0x40] sm:$0xf]
  %v109 = vld [vmem:[%s0 + $0x44] sm:$0x1]
  %v110 = vld [vmem:[%s0 + $0x48] sm:$0xf]
  %v111 = vld [vmem:[%s0 + $0x4c] sm:$0x1]
  %v112 = vld [vmem:[%s0 + $0x50] sm:$0xf]
  %v113 = vld [vmem:[%s0 + $0x54] sm:$0x1]
  %v114 = vld [vmem:[%s0 + $0x58] sm:$0xf]
  %v115 = vld [vmem:[%s0 + $0x5c] sm:$0x1]
  %v116 = vld [vmem:[%s0 + $0x60] sm:$0xf]
  %v117 = vld [vmem:[%s0 + $0x64] sm:$0x1]
  %v118 = vld [vmem:[%s0 + $0x68] sm:$0xf]
  %v119 = vld [vmem:[%s0 + $0x6c] sm:$0x1]
  %v120 = vld [vmem:[%s0 + $0x70] sm:$0xf]
  %v121 = vld [vmem:[%s0 + $0x74] sm:$0x1]
  %v122 = vld [vmem:[%s0 + $0x78] sm:$0xf]
  %v123 = vld [vmem:[%s0 + $0x7c] sm:$0x1]
  %v124 = vld [vmem:[%s0 + $0x80] sm:$0xf]
  %v125 = vld [vmem:[%s0 + $0x84] sm:$0x1]
  %v126 = vld [vmem:[%s0 + $0x88] sm:$0xf]
  %v127 = vld [vmem:[%s0 + $0x8c] sm:$0x1]
  %v128 = vld [vmem:[%s1] sm:$0xf]
  %v129 = vld [vmem:[%s1 + $0x8] sm:$0xf]
  %v130 = vld [vmem:[%s1 + $0x10] sm:$0xf]
  %v131 = vld [vmem:[%s1 + $0x18] sm:$0xf]
  %v132 = vld [vmem:[%s1 + $0x20] sm:$0xf]
  %v133 = vld [vmem:[%s1 + $0x28] sm:$0xf]
  %v134 = vld [vmem:[%s1 + $0x30] sm:$0xf]
  %v135 = vld [vmem:[%s1 + $0x38] sm:$0xf]
  %v136 = vld [vmem:[%s1 + $0x40] sm:$0xf]
  %v137 = vld [vmem:[%s1 + $0x48] sm:$0xf]
  %v138 = vld [vmem:[%s1 + $0x50] sm:$0xf]
  %v139 = vld [vmem:[%s1 + $0x58] sm:$0xf]
  %v140 = vld [vmem:[%s1 + $0x60] sm:$0xf]
  %v141 = vld [vmem:[%s1 + $0x68] sm:$0xf]
  %v142 = vld [vmem:[%s1 + $0x70] sm:$0xf]
  %v143 = vld [vmem:[%s1 + $0x78] sm:$0xf]
  %v144 = vld [vmem:[%s1 + $0x80] sm:$0xf]
  %v145 = vld [vmem:[%s1 + $0x88] sm:$0xf]
  %v146 = vld [vmem:[%s2] sm:$0xf]
  %v147 = vld [vmem:[%s2 + $0x4] sm:$0x1]
  %v148 = vld [vmem:[%s2 + $0x8] sm:$0xf]
  %v149 = vld [vmem:[%s2 + $0xc] sm:$0x1]
  %v150 = vld [vmem:[%s2 + $0x10] sm:$0xf]
  %v151 = vld [vmem:[%s2 + $0x14] sm:$0x1]
  %v152 = vld [vmem:[%s2 + $0x18] sm:$0xf]
  %v153 = vld [vmem:[%s2 + $0x1c] sm:$0x1]
  %v154 = vld [vmem:[%s2 + $0x20] sm:$0xf]
  %v155 = vld [vmem:[%s2 + $0x24] sm:$0x1]
  %v156 = vld [vmem:[%s2 + $0x28] sm:$0xf]
  %v157 = vld [vmem:[%s2 + $0x2c] sm:$0x1]
  %v158 = vld [vmem:[%s2 + $0x30] sm:$0xf]
  %v159 = vld [vmem:[%s2 + $0x34] sm:$0x1]
  %v160 = vld [vmem:[%s2 + $0x38] sm:$0xf]
  %v161 = vld [vmem:[%s2 + $0x3c] sm:$0x1]
  %v162 = vld [vmem:[%s2 + $0x48] sm:$0xf]
  %v163 = vld [vmem:[%s2 + $0x4c] sm:$0x1]
  %v164 = vld [vmem:[%s2 + $0x50] sm:$0xf]
  %v165 = vld [vmem:[%s2 + $0x54] sm:$0x1]
  %v166 = vld [vmem:[%s2 + $0x58] sm:$0xf]
  %v167 = vld [vmem:[%s2 + $0x5c] sm:$0x1]
  %v168 = vld [vmem:[%s2 + $0x60] sm:$0xf]
  %v169 = vld [vmem:[%s2 + $0x64] sm:$0x1]
  %v170 = vld [vmem:[%s2 + $0x68] sm:$0xf]
  %v171 = vld [vmem:[%s2 + $0x6c] sm:$0x1]
  %v172 = vld [vmem:[%s2 + $0x70] sm:$0xf]
  %v173 = vld [vmem:[%s2 + $0x74] sm:$0x1]
  %v174 = vld [vmem:[%s2 + $0x78] sm:$0xf]
  %v175 = vld [vmem:[%s2 + $0x7c] sm:$0x1]
  %v176 = vld [vmem:[%s2 + $0x80] sm:$0xf]
  %v177 = vld [vmem:[%s2 + $0x84] sm:$0x1]
  %v178 = vld [vmem:[%s3] sm:$0xf]
  %v179 = vld [vmem:[%s3 + $0x8] sm:$0xf]
  %v180 = vld [vmem:[%s3 + $0x10] sm:$0xf]
  %v181 = vld [vmem:[%s3 + $0x18] sm:$0xf]
  %v182 = vld [vmem:[%s3 + $0x20] sm:$0xf]
  %v183 = vld [vmem:[%s3 + $0x28] sm:$0xf]
  %v184 = vld [vmem:[%s3 + $0x30] sm:$0xf]
  %v185 = vld [vmem:[%s3 + $0x38] sm:$0xf]
  %v186 = vld [vmem:[%s3 + $0x48] sm:$0xf]
  %v187 = vld [vmem:[%s3 + $0x50] sm:$0xf]
  %v188 = vld [vmem:[%s3 + $0x58] sm:$0xf]
  %v189 = vld [vmem:[%s3 + $0x60] sm:$0xf]
  %v190 = vld [vmem:[%s3 + $0x68] sm:$0xf]
  %v191 = vld [vmem:[%s3 + $0x70] sm:$0xf]
  %v192 = vld [vmem:[%s3 + $0x78] sm:$0xf]
  %v193 = vld [vmem:[%s3 + $0x80] sm:$0xf]
  %v210 = vunpack.c.l.b16 %v128
  %v211 = vunpack.c.l.b16 %v129
  %v212 = vunpack.c.l.b16 %v130
  %v213 = vunpack.c.l.b16 %v131
  %v214 = vunpack.c.l.b16 %v132
  %v215 = vunpack.c.l.b16 %v133
  %v216 = vunpack.c.l.b16 %v134
  %v217 = vunpack.c.l.b16 %v135
  %v218 = vunpack.c.l.b16 %v137
  %v219 = vunpack.c.l.b16 %v138
  %v220 = vunpack.c.l.b16 %v139
  %v221 = vunpack.c.l.b16 %v140
  %v222 = vunpack.c.l.b16 %v141
  %v223 = vunpack.c.l.b16 %v142
  %v224 = vunpack.c.l.b16 %v143
  %v225 = vunpack.c.l.b16 %v144
  %v226 = vpack.c.b16 %v210, %v210
  %v227 = vpack.c.b16 %v211, %v211
  %v228 = vpack.c.b16 %v212, %v212
  %v229 = vpack.c.b16 %v213, %v213
  %v230 = vpack.c.b16 %v214, %v214
  %v231 = vpack.c.b16 %v215, %v215
  %v232 = vpack.c.b16 %v216, %v216
  %v233 = vpack.c.b16 %v217, %v217
  %v234 = vpack.c.b16 %v218, %v218
  %v235 = vpack.c.b16 %v219, %v219
  %v236 = vpack.c.b16 %v220, %v220
  %v237 = vpack.c.b16 %v221, %v221
  %v238 = vpack.c.b16 %v222, %v222
  %v239 = vpack.c.b16 %v223, %v223
  %v240 = vpack.c.b16 %v224, %v224
  %v241 = vpack.c.b16 %v225, %v225
  %242 = vrot.lane.b32.xlu0 %v226, 4
  %v243 = vpop.permute.xlu0 %242
  %244 = vrot.lane.b32.xlu0 %v227, 4
  %v245 = vpop.permute.xlu0 %244
  %246 = vrot.lane.b32.xlu0 %v228, 4
  %v247 = vpop.permute.xlu0 %246
  %248 = vrot.lane.b32.xlu0 %v229, 4
  %v249 = vpop.permute.xlu0 %248
  %250 = vrot.lane.b32.xlu0 %v230, 4
  %v251 = vpop.permute.xlu0 %250
  %252 = vrot.lane.b32.xlu0 %v231, 4
  %v253 = vpop.permute.xlu0 %252
  %254 = vrot.lane.b32.xlu0 %v232, 4
  %v255 = vpop.permute.xlu0 %254
  %256 = vrot.lane.b32.xlu0 %v233, 4
  %v257 = vpop.permute.xlu0 %256
  %258 = vrot.lane.b32.xlu0 %v234, 4
  %v259 = vpop.permute.xlu0 %258
  %260 = vrot.lane.b32.xlu0 %v235, 4
  %v261 = vpop.permute.xlu0 %260
  %262 = vrot.lane.b32.xlu0 %v236, 4
  %v263 = vpop.permute.xlu0 %262
  %264 = vrot.lane.b32.xlu0 %v237, 4
  %v265 = vpop.permute.xlu0 %264
  %266 = vrot.lane.b32.xlu0 %v238, 4
  %v267 = vpop.permute.xlu0 %266
  %268 = vrot.lane.b32.xlu0 %v239, 4
  %v269 = vpop.permute.xlu0 %268
  %270 = vrot.lane.b32.xlu0 %v240, 4
  %v271 = vpop.permute.xlu0 %270
  %272 = vrot.lane.b32.xlu0 %v241, 4
  %v273 = vpop.permute.xlu0 %272
  %v306 = vunpack.c.l.b16 %v92
  %v307 = vunpack.c.l.b16 %v93
  %v308 = vunpack.c.l.b16 %v94
  %v309 = vunpack.c.l.b16 %v95
  %v310 = vunpack.c.l.b16 %v96
  %v311 = vunpack.c.l.b16 %v97
  %v312 = vunpack.c.l.b16 %v98
  %v313 = vunpack.c.l.b16 %v99
  %v314 = vunpack.c.l.b16 %v100
  %v315 = vunpack.c.l.b16 %v101
  %v316 = vunpack.c.l.b16 %v102
  %v317 = vunpack.c.l.b16 %v103
  %v318 = vunpack.c.l.b16 %v104
  %v319 = vunpack.c.l.b16 %v105
  %v320 = vunpack.c.l.b16 %v106
  %v321 = vunpack.c.l.b16 %v107
  %v322 = vunpack.c.l.b16 %v110
  %v323 = vunpack.c.l.b16 %v111
  %v324 = vunpack.c.l.b16 %v112
  %v325 = vunpack.c.l.b16 %v113
  %v326 = vunpack.c.l.b16 %v114
  %v327 = vunpack.c.l.b16 %v115
  %v328 = vunpack.c.l.b16 %v116
  %v329 = vunpack.c.l.b16 %v117
  %v330 = vunpack.c.l.b16 %v118
  %v331 = vunpack.c.l.b16 %v119
  %v332 = vunpack.c.l.b16 %v120
  %v333 = vunpack.c.l.b16 %v121
  %v334 = vunpack.c.l.b16 %v122
  %v335 = vunpack.c.l.b16 %v123
  %v336 = vunpack.c.l.b16 %v124
  %v337 = vunpack.c.l.b16 %v125
  %v338 = vpack.c.b16 %v307, %v306
  %v339 = vpack.c.b16 %v309, %v308
  %v340 = vpack.c.b16 %v311, %v310
  %v341 = vpack.c.b16 %v313, %v312
  %v342 = vpack.c.b16 %v315, %v314
  %v343 = vpack.c.b16 %v317, %v316
  %v344 = vpack.c.b16 %v319, %v318
  %v345 = vpack.c.b16 %v321, %v320
  %v346 = vpack.c.b16 %v323, %v322
  %v347 = vpack.c.b16 %v325, %v324
  %v348 = vpack.c.b16 %v327, %v326
  %v349 = vpack.c.b16 %v329, %v328
  %v350 = vpack.c.b16 %v331, %v330
  %v351 = vpack.c.b16 %v333, %v332
  %v352 = vpack.c.b16 %v335, %v334
  %v353 = vpack.c.b16 %v337, %v336
  %v355 = vshrl.u32 %v338, 16
  %v357 = vshll.u32 %v338, 16
  %v359 = vrot.slane %v357, 1
  %v360 = vor.u32 %v355, %v359
  %v362 = vshrl.u32 %v339, 16
  %v364 = vshll.u32 %v339, 16
  %v366 = vrot.slane %v364, 1
  %v367 = vor.u32 %v362, %v366
  %v369 = vshrl.u32 %v340, 16
  %v371 = vshll.u32 %v340, 16
  %v373 = vrot.slane %v371, 1
  %v374 = vor.u32 %v369, %v373
  %v376 = vshrl.u32 %v341, 16
  %v378 = vshll.u32 %v341, 16
  %v380 = vrot.slane %v378, 1
  %v381 = vor.u32 %v376, %v380
  %v383 = vshrl.u32 %v342, 16
  %v385 = vshll.u32 %v342, 16
  %v387 = vrot.slane %v385, 1
  %v388 = vor.u32 %v383, %v387
  %v390 = vshrl.u32 %v343, 16
  %v392 = vshll.u32 %v343, 16
  %v394 = vrot.slane %v392, 1
  %v395 = vor.u32 %v390, %v394
  %v397 = vshrl.u32 %v344, 16
  %v399 = vshll.u32 %v344, 16
  %v401 = vrot.slane %v399, 1
  %v402 = vor.u32 %v397, %v401
  %v404 = vshrl.u32 %v345, 16
  %v406 = vshll.u32 %v345, 16
  %v408 = vrot.slane %v406, 1
  %v409 = vor.u32 %v404, %v408
  %v411 = vshrl.u32 %v346, 16
  %v413 = vshll.u32 %v346, 16
  %v415 = vrot.slane %v413, 1
  %v416 = vor.u32 %v411, %v415
  %v418 = vshrl.u32 %v347, 16
  %v420 = vshll.u32 %v347, 16
  %v422 = vrot.slane %v420, 1
  %v423 = vor.u32 %v418, %v422
  %v425 = vshrl.u32 %v348, 16
  %v427 = vshll.u32 %v348, 16
  %v429 = vrot.slane %v427, 1
  %v430 = vor.u32 %v425, %v429
  %v432 = vshrl.u32 %v349, 16
  %v434 = vshll.u32 %v349, 16
  %v436 = vrot.slane %v434, 1
  %v437 = vor.u32 %v432, %v436
  %v439 = vshrl.u32 %v350, 16
  %v441 = vshll.u32 %v350, 16
  %v443 = vrot.slane %v441, 1
  %v444 = vor.u32 %v439, %v443
  %v446 = vshrl.u32 %v351, 16
  %v448 = vshll.u32 %v351, 16
  %v450 = vrot.slane %v448, 1
  %v451 = vor.u32 %v446, %v450
  %v453 = vshrl.u32 %v352, 16
  %v455 = vshll.u32 %v352, 16
  %v457 = vrot.slane %v455, 1
  %v458 = vor.u32 %v453, %v457
  %v460 = vshrl.u32 %v353, 16
  %v462 = vshll.u32 %v353, 16
  %v464 = vrot.slane %v462, 1
  %v465 = vor.u32 %v460, %v464
  %466 = vrot.lane.b32.xlu0 %v360, 8
  %v467 = vpop.permute.xlu0 %466
  %468 = vrot.lane.b32.xlu0 %v367, 8
  %v469 = vpop.permute.xlu0 %468
  %470 = vrot.lane.b32.xlu0 %v374, 8
  %v471 = vpop.permute.xlu0 %470
  %472 = vrot.lane.b32.xlu0 %v381, 8
  %v473 = vpop.permute.xlu0 %472
  %474 = vrot.lane.b32.xlu0 %v388, 8
  %v475 = vpop.permute.xlu0 %474
  %476 = vrot.lane.b32.xlu0 %v395, 8
  %v477 = vpop.permute.xlu0 %476
  %478 = vrot.lane.b32.xlu0 %v402, 8
  %v479 = vpop.permute.xlu0 %478
  %480 = vrot.lane.b32.xlu0 %v409, 8
  %v481 = vpop.permute.xlu0 %480
  %482 = vrot.lane.b32.xlu0 %v416, 8
  %v483 = vpop.permute.xlu0 %482
  %484 = vrot.lane.b32.xlu0 %v423, 8
  %v485 = vpop.permute.xlu0 %484
  %486 = vrot.lane.b32.xlu0 %v430, 8
  %v487 = vpop.permute.xlu0 %486
  %488 = vrot.lane.b32.xlu0 %v437, 8
  %v489 = vpop.permute.xlu0 %488
  %490 = vrot.lane.b32.xlu0 %v444, 8
  %v491 = vpop.permute.xlu0 %490
  %492 = vrot.lane.b32.xlu0 %v451, 8
  %v493 = vpop.permute.xlu0 %492
  %494 = vrot.lane.b32.xlu0 %v458, 8
  %v495 = vpop.permute.xlu0 %494
  %496 = vrot.lane.b32.xlu0 %v465, 8
  %v497 = vpop.permute.xlu0 %496
  %v514 = vunpack.c.l.b16 %v146
  %v515 = vunpack.c.l.b16 %v148
  %v516 = vunpack.c.l.b16 %v150
  %v517 = vunpack.c.l.b16 %v152
  %v518 = vunpack.c.l.b16 %v154
  %v519 = vunpack.c.l.b16 %v156
  %v520 = vunpack.c.l.b16 %v158
  %v521 = vunpack.c.l.b16 %v160
  %v522 = vunpack.c.l.b16 %v162
  %v523 = vunpack.c.l.b16 %v164
  %v524 = vunpack.c.l.b16 %v166
  %v525 = vunpack.c.l.b16 %v168
  %v526 = vunpack.c.l.b16 %v170
  %v527 = vunpack.c.l.b16 %v172
  %v528 = vunpack.c.l.b16 %v174
  %v529 = vunpack.c.l.b16 %v176
  %v530 = vpack.c.b16 %v514, %v514
  %v531 = vpack.c.b16 %v515, %v515
  %v532 = vpack.c.b16 %v516, %v516
  %v533 = vpack.c.b16 %v517, %v517
  %v534 = vpack.c.b16 %v518, %v518
  %v535 = vpack.c.b16 %v519, %v519
  %v536 = vpack.c.b16 %v520, %v520
  %v537 = vpack.c.b16 %v521, %v521
  %v538 = vpack.c.b16 %v522, %v522
  %v539 = vpack.c.b16 %v523, %v523
  %v540 = vpack.c.b16 %v524, %v524
  %v541 = vpack.c.b16 %v525, %v525
  %v542 = vpack.c.b16 %v526, %v526
  %v543 = vpack.c.b16 %v527, %v527
  %v544 = vpack.c.b16 %v528, %v528
  %v545 = vpack.c.b16 %v529, %v529
  %546 = vrot.lane.b32.xlu0 %v530, 12
  %v547 = vpop.permute.xlu0 %546
  %548 = vrot.lane.b32.xlu0 %v531, 12
  %v549 = vpop.permute.xlu0 %548
  %550 = vrot.lane.b32.xlu0 %v532, 12
  %v551 = vpop.permute.xlu0 %550
  %552 = vrot.lane.b32.xlu0 %v533, 12
  %v553 = vpop.permute.xlu0 %552
  %554 = vrot.lane.b32.xlu0 %v534, 12
  %v555 = vpop.permute.xlu0 %554
  %556 = vrot.lane.b32.xlu0 %v535, 12
  %v557 = vpop.permute.xlu0 %556
  %558 = vrot.lane.b32.xlu0 %v536, 12
  %v559 = vpop.permute.xlu0 %558
  %560 = vrot.lane.b32.xlu0 %v537, 12
  %v561 = vpop.permute.xlu0 %560
  %562 = vrot.lane.b32.xlu0 %v538, 12
  %v563 = vpop.permute.xlu0 %562
  %564 = vrot.lane.b32.xlu0 %v539, 12
  %v565 = vpop.permute.xlu0 %564
  %566 = vrot.lane.b32.xlu0 %v540, 12
  %v567 = vpop.permute.xlu0 %566
  %568 = vrot.lane.b32.xlu0 %v541, 12
  %v569 = vpop.permute.xlu0 %568
  %570 = vrot.lane.b32.xlu0 %v542, 12
  %v571 = vpop.permute.xlu0 %570
  %572 = vrot.lane.b32.xlu0 %v543, 12
  %v573 = vpop.permute.xlu0 %572
  %574 = vrot.lane.b32.xlu0 %v544, 12
  %v575 = vpop.permute.xlu0 %574
  %576 = vrot.lane.b32.xlu0 %v545, 12
  %v577 = vpop.permute.xlu0 %576
  %v594 = vunpack.c.l.b16 %v178
  %v595 = vunpack.c.l.b16 %v179
  %v596 = vunpack.c.l.b16 %v180
  %v597 = vunpack.c.l.b16 %v181
  %v598 = vunpack.c.l.b16 %v182
  %v599 = vunpack.c.l.b16 %v183
  %v600 = vunpack.c.l.b16 %v184
  %v601 = vunpack.c.l.b16 %v185
  %v602 = vunpack.c.l.b16 %v186
  %v603 = vunpack.c.l.b16 %v187
  %v604 = vunpack.c.l.b16 %v188
  %v605 = vunpack.c.l.b16 %v189
  %v606 = vunpack.c.l.b16 %v190
  %v607 = vunpack.c.l.b16 %v191
  %v608 = vunpack.c.l.b16 %v192
  %v609 = vunpack.c.l.b16 %v193
  %v610 = vpack.c.b16 %v594, %v594
  %v611 = vpack.c.b16 %v595, %v595
  %v612 = vpack.c.b16 %v596, %v596
  %v613 = vpack.c.b16 %v597, %v597
  %v614 = vpack.c.b16 %v598, %v598
  %v615 = vpack.c.b16 %v599, %v599
  %v616 = vpack.c.b16 %v600, %v600
  %v617 = vpack.c.b16 %v601, %v601
  %v618 = vpack.c.b16 %v602, %v602
  %v619 = vpack.c.b16 %v603, %v603
  %v620 = vpack.c.b16 %v604, %v604
  %v621 = vpack.c.b16 %v605, %v605
  %v622 = vpack.c.b16 %v606, %v606
  %v623 = vpack.c.b16 %v607, %v607
  %v624 = vpack.c.b16 %v608, %v608
  %v625 = vpack.c.b16 %v609, %v609
  %626 = vrot.lane.b32.xlu0 %v610, 16
  %v627 = vpop.permute.xlu0 %626
  %628 = vrot.lane.b32.xlu0 %v611, 16
  %v629 = vpop.permute.xlu0 %628
  %630 = vrot.lane.b32.xlu0 %v612, 16
  %v631 = vpop.permute.xlu0 %630
  %632 = vrot.lane.b32.xlu0 %v613, 16
  %v633 = vpop.permute.xlu0 %632
  %634 = vrot.lane.b32.xlu0 %v614, 16
  %v635 = vpop.permute.xlu0 %634
  %636 = vrot.lane.b32.xlu0 %v615, 16
  %v637 = vpop.permute.xlu0 %636
  %638 = vrot.lane.b32.xlu0 %v616, 16
  %v639 = vpop.permute.xlu0 %638
  %640 = vrot.lane.b32.xlu0 %v617, 16
  %v641 = vpop.permute.xlu0 %640
  %642 = vrot.lane.b32.xlu0 %v618, 16
  %v643 = vpop.permute.xlu0 %642
  %644 = vrot.lane.b32.xlu0 %v619, 16
  %v645 = vpop.permute.xlu0 %644
  %646 = vrot.lane.b32.xlu0 %v620, 16
  %v647 = vpop.permute.xlu0 %646
  %648 = vrot.lane.b32.xlu0 %v621, 16
  %v649 = vpop.permute.xlu0 %648
  %650 = vrot.lane.b32.xlu0 %v622, 16
  %v651 = vpop.permute.xlu0 %650
  %652 = vrot.lane.b32.xlu0 %v623, 16
  %v653 = vpop.permute.xlu0 %652
  %654 = vrot.lane.b32.xlu0 %v624, 16
  %v655 = vpop.permute.xlu0 %654
  %656 = vrot.lane.b32.xlu0 %v625, 16
  %v657 = vpop.permute.xlu0 %656
  %v674 = vunpack.c.l.b16 %v147
  %v675 = vunpack.c.l.b16 %v149
  %v676 = vunpack.c.l.b16 %v151
  %v677 = vunpack.c.l.b16 %v153
  %v678 = vunpack.c.l.b16 %v155
  %v679 = vunpack.c.l.b16 %v157
  %v680 = vunpack.c.l.b16 %v159
  %v681 = vunpack.c.l.b16 %v161
  %v682 = vunpack.c.l.b16 %v163
  %v683 = vunpack.c.l.b16 %v165
  %v684 = vunpack.c.l.b16 %v167
  %v685 = vunpack.c.l.b16 %v169
  %v686 = vunpack.c.l.b16 %v171
  %v687 = vunpack.c.l.b16 %v173
  %v688 = vunpack.c.l.b16 %v175
  %v689 = vunpack.c.l.b16 %v177
  %v690 = vpack.c.b16 %v674, %v514
  %v691 = vpack.c.b16 %v675, %v515
  %v692 = vpack.c.b16 %v676, %v516
  %v693 = vpack.c.b16 %v677, %v517
  %v694 = vpack.c.b16 %v678, %v518
  %v695 = vpack.c.b16 %v679, %v519
  %v696 = vpack.c.b16 %v680, %v520
  %v697 = vpack.c.b16 %v681, %v521
  %v698 = vpack.c.b16 %v682, %v522
  %v699 = vpack.c.b16 %v683, %v523
  %v700 = vpack.c.b16 %v684, %v524
  %v701 = vpack.c.b16 %v685, %v525
  %v702 = vpack.c.b16 %v686, %v526
  %v703 = vpack.c.b16 %v687, %v527
  %v704 = vpack.c.b16 %v688, %v528
  %v705 = vpack.c.b16 %v689, %v529
  %v707 = vshrl.u32 %v690, 16
  %v709 = vshll.u32 %v690, 16
  %v711 = vrot.slane %v709, 1
  %v712 = vor.u32 %v707, %v711
  %v714 = vshrl.u32 %v691, 16
  %v716 = vshll.u32 %v691, 16
  %v718 = vrot.slane %v716, 1
  %v719 = vor.u32 %v714, %v718
  %v721 = vshrl.u32 %v692, 16
  %v723 = vshll.u32 %v692, 16
  %v725 = vrot.slane %v723, 1
  %v726 = vor.u32 %v721, %v725
  %v728 = vshrl.u32 %v693, 16
  %v730 = vshll.u32 %v693, 16
  %v732 = vrot.slane %v730, 1
  %v733 = vor.u32 %v728, %v732
  %v735 = vshrl.u32 %v694, 16
  %v737 = vshll.u32 %v694, 16
  %v739 = vrot.slane %v737, 1
  %v740 = vor.u32 %v735, %v739
  %v742 = vshrl.u32 %v695, 16
  %v744 = vshll.u32 %v695, 16
  %v746 = vrot.slane %v744, 1
  %v747 = vor.u32 %v742, %v746
  %v749 = vshrl.u32 %v696, 16
  %v751 = vshll.u32 %v696, 16
  %v753 = vrot.slane %v751, 1
  %v754 = vor.u32 %v749, %v753
  %v756 = vshrl.u32 %v697, 16
  %v758 = vshll.u32 %v697, 16
  %v760 = vrot.slane %v758, 1
  %v761 = vor.u32 %v756, %v760
  %v763 = vshrl.u32 %v698, 16
  %v765 = vshll.u32 %v698, 16
  %v767 = vrot.slane %v765, 1
  %v768 = vor.u32 %v763, %v767
  %v770 = vshrl.u32 %v699, 16
  %v772 = vshll.u32 %v699, 16
  %v774 = vrot.slane %v772, 1
  %v775 = vor.u32 %v770, %v774
  %v777 = vshrl.u32 %v700, 16
  %v779 = vshll.u32 %v700, 16
  %v781 = vrot.slane %v779, 1
  %v782 = vor.u32 %v777, %v781
  %v784 = vshrl.u32 %v701, 16
  %v786 = vshll.u32 %v701, 16
  %v788 = vrot.slane %v786, 1
  %v789 = vor.u32 %v784, %v788
  %v791 = vshrl.u32 %v702, 16
  %v793 = vshll.u32 %v702, 16
  %v795 = vrot.slane %v793, 1
  %v796 = vor.u32 %v791, %v795
  %v798 = vshrl.u32 %v703, 16
  %v800 = vshll.u32 %v703, 16
  %v802 = vrot.slane %v800, 1
  %v803 = vor.u32 %v798, %v802
  %v805 = vshrl.u32 %v704, 16
  %v807 = vshll.u32 %v704, 16
  %v809 = vrot.slane %v807, 1
  %v810 = vor.u32 %v805, %v809
  %v812 = vshrl.u32 %v705, 16
  %v814 = vshll.u32 %v705, 16
  %v816 = vrot.slane %v814, 1
  %v817 = vor.u32 %v812, %v816
  %818 = vrot.lane.b32.xlu0 %v712, 20
  %v819 = vpop.permute.xlu0 %818
  %820 = vrot.lane.b32.xlu0 %v719, 20
  %v821 = vpop.permute.xlu0 %820
  %822 = vrot.lane.b32.xlu0 %v726, 20
  %v823 = vpop.permute.xlu0 %822
  %824 = vrot.lane.b32.xlu0 %v733, 20
  %v825 = vpop.permute.xlu0 %824
  %826 = vrot.lane.b32.xlu0 %v740, 20
  %v827 = vpop.permute.xlu0 %826
  %828 = vrot.lane.b32.xlu0 %v747, 20
  %v829 = vpop.permute.xlu0 %828
  %830 = vrot.lane.b32.xlu0 %v754, 20
  %v831 = vpop.permute.xlu0 %830
  %832 = vrot.lane.b32.xlu0 %v761, 20
  %v833 = vpop.permute.xlu0 %832
  %834 = vrot.lane.b32.xlu0 %v768, 20
  %v835 = vpop.permute.xlu0 %834
  %836 = vrot.lane.b32.xlu0 %v775, 20
  %v837 = vpop.permute.xlu0 %836
  %838 = vrot.lane.b32.xlu0 %v782, 20
  %v839 = vpop.permute.xlu0 %838
  %840 = vrot.lane.b32.xlu0 %v789, 20
  %v841 = vpop.permute.xlu0 %840
  %842 = vrot.lane.b32.xlu0 %v796, 20
  %v843 = vpop.permute.xlu0 %842
  %844 = vrot.lane.b32.xlu0 %v803, 20
  %v845 = vpop.permute.xlu0 %844
  %846 = vrot.lane.b32.xlu0 %v810, 20
  %v847 = vpop.permute.xlu0 %846
  %848 = vrot.lane.b32.xlu0 %v817, 20
  %v849 = vpop.permute.xlu0 %848
  %v852 = vunpack.c.l.b16 %v108
  %v853 = vunpack.c.l.b16 %v126
  %v854 = vpack.c.b16 %v308, %v308
  %v855 = vpack.c.b16 %v310, %v310
  %v856 = vpack.c.b16 %v312, %v312
  %v857 = vpack.c.b16 %v314, %v314
  %v858 = vpack.c.b16 %v316, %v316
  %v859 = vpack.c.b16 %v318, %v318
  %v860 = vpack.c.b16 %v320, %v320
  %v861 = vpack.c.b16 %v852, %v852
  %v862 = vpack.c.b16 %v324, %v324
  %v863 = vpack.c.b16 %v326, %v326
  %v864 = vpack.c.b16 %v328, %v328
  %v865 = vpack.c.b16 %v330, %v330
  %v866 = vpack.c.b16 %v332, %v332
  %v867 = vpack.c.b16 %v334, %v334
  %v868 = vpack.c.b16 %v336, %v336
  %v869 = vpack.c.b16 %v853, %v853
  %870 = vrot.lane.b32.xlu0 %v854, 24
  %v871 = vpop.permute.xlu0 %870
  %872 = vrot.lane.b32.xlu0 %v855, 24
  %v873 = vpop.permute.xlu0 %872
  %874 = vrot.lane.b32.xlu0 %v856, 24
  %v875 = vpop.permute.xlu0 %874
  %876 = vrot.lane.b32.xlu0 %v857, 24
  %v877 = vpop.permute.xlu0 %876
  %878 = vrot.lane.b32.xlu0 %v858, 24
  %v879 = vpop.permute.xlu0 %878
  %880 = vrot.lane.b32.xlu0 %v859, 24
  %v881 = vpop.permute.xlu0 %880
  %882 = vrot.lane.b32.xlu0 %v860, 24
  %v883 = vpop.permute.xlu0 %882
  %884 = vrot.lane.b32.xlu0 %v861, 24
  %v885 = vpop.permute.xlu0 %884
  %886 = vrot.lane.b32.xlu0 %v862, 24
  %v887 = vpop.permute.xlu0 %886
  %888 = vrot.lane.b32.xlu0 %v863, 24
  %v889 = vpop.permute.xlu0 %888
  %890 = vrot.lane.b32.xlu0 %v864, 24
  %v891 = vpop.permute.xlu0 %890
  %892 = vrot.lane.b32.xlu0 %v865, 24
  %v893 = vpop.permute.xlu0 %892
  %894 = vrot.lane.b32.xlu0 %v866, 24
  %v895 = vpop.permute.xlu0 %894
  %896 = vrot.lane.b32.xlu0 %v867, 24
  %v897 = vpop.permute.xlu0 %896
  %898 = vrot.lane.b32.xlu0 %v868, 24
  %v899 = vpop.permute.xlu0 %898
  %900 = vrot.lane.b32.xlu0 %v869, 24
  %v901 = vpop.permute.xlu0 %900
  %v904 = vunpack.c.l.b16 %v136
  %v905 = vunpack.c.l.b16 %v145
  %v906 = vpack.c.b16 %v904, %v904
  %v907 = vpack.c.b16 %v905, %v905
  %908 = vrot.lane.b32.xlu0 %v227, 28
  %v909 = vpop.permute.xlu0 %908
  %910 = vrot.lane.b32.xlu0 %v228, 28
  %v911 = vpop.permute.xlu0 %910
  %912 = vrot.lane.b32.xlu0 %v229, 28
  %v913 = vpop.permute.xlu0 %912
  %914 = vrot.lane.b32.xlu0 %v230, 28
  %v915 = vpop.permute.xlu0 %914
  %916 = vrot.lane.b32.xlu0 %v231, 28
  %v917 = vpop.permute.xlu0 %916
  %918 = vrot.lane.b32.xlu0 %v232, 28
  %v919 = vpop.permute.xlu0 %918
  %920 = vrot.lane.b32.xlu0 %v233, 28
  %v921 = vpop.permute.xlu0 %920
  %922 = vrot.lane.b32.xlu0 %v906, 28
  %v923 = vpop.permute.xlu0 %922
  %924 = vrot.lane.b32.xlu0 %v235, 28
  %v925 = vpop.permute.xlu0 %924
  %926 = vrot.lane.b32.xlu0 %v236, 28
  %v927 = vpop.permute.xlu0 %926
  %928 = vrot.lane.b32.xlu0 %v237, 28
  %v929 = vpop.permute.xlu0 %928
  %930 = vrot.lane.b32.xlu0 %v238, 28
  %v931 = vpop.permute.xlu0 %930
  %932 = vrot.lane.b32.xlu0 %v239, 28
  %v933 = vpop.permute.xlu0 %932
  %934 = vrot.lane.b32.xlu0 %v240, 28
  %v935 = vpop.permute.xlu0 %934
  %936 = vrot.lane.b32.xlu0 %v241, 28
  %v937 = vpop.permute.xlu0 %936
  %938 = vrot.lane.b32.xlu0 %v907, 28
  %v939 = vpop.permute.xlu0 %938
  %v942 = vunpack.c.l.b16 %v109
  %v943 = vunpack.c.l.b16 %v127
  %v944 = vpack.c.b16 %v942, %v852
  %v945 = vpack.c.b16 %v943, %v853
  %v947 = vshrl.u32 %v944, 16
  %v949 = vshll.u32 %v944, 16
  %v951 = vrot.slane %v949, 1
  %v952 = vor.u32 %v947, %v951
  %v954 = vshrl.u32 %v945, 16
  %v956 = vshll.u32 %v945, 16
  %v958 = vrot.slane %v956, 1
  %v959 = vor.u32 %v954, %v958
  %960 = vrot.lane.b32.xlu0 %v367, 32
  %v961 = vpop.permute.xlu0 %960
  %962 = vrot.lane.b32.xlu0 %v374, 32
  %v963 = vpop.permute.xlu0 %962
  %964 = vrot.lane.b32.xlu0 %v381, 32
  %v965 = vpop.permute.xlu0 %964
  %966 = vrot.lane.b32.xlu0 %v388, 32
  %v967 = vpop.permute.xlu0 %966
  %968 = vrot.lane.b32.xlu0 %v395, 32
  %v969 = vpop.permute.xlu0 %968
  %970 = vrot.lane.b32.xlu0 %v402, 32
  %v971 = vpop.permute.xlu0 %970
  %972 = vrot.lane.b32.xlu0 %v409, 32
  %v973 = vpop.permute.xlu0 %972
  %974 = vrot.lane.b32.xlu0 %v952, 32
  %v975 = vpop.permute.xlu0 %974
  %976 = vrot.lane.b32.xlu0 %v423, 32
  %v977 = vpop.permute.xlu0 %976
  %978 = vrot.lane.b32.xlu0 %v430, 32
  %v979 = vpop.permute.xlu0 %978
  %980 = vrot.lane.b32.xlu0 %v437, 32
  %v981 = vpop.permute.xlu0 %980
  %982 = vrot.lane.b32.xlu0 %v444, 32
  %v983 = vpop.permute.xlu0 %982
  %984 = vrot.lane.b32.xlu0 %v451, 32
  %v985 = vpop.permute.xlu0 %984
  %986 = vrot.lane.b32.xlu0 %v458, 32
  %v987 = vpop.permute.xlu0 %986
  %988 = vrot.lane.b32.xlu0 %v465, 32
  %v989 = vpop.permute.xlu0 %988
  %990 = vrot.lane.b32.xlu0 %v959, 32
  %v991 = vpop.permute.xlu0 %990
  %vm992 = vcmask 31744
  %v995 = vsel %vm992, %v92, %v243
  %v998 = vsel %vm992, %v94, %v245
  %v1001 = vsel %vm992, %v96, %v247
  %v1004 = vsel %vm992, %v98, %v249
  %v1007 = vsel %vm992, %v100, %v251
  %v1010 = vsel %vm992, %v102, %v253
  %v1013 = vsel %vm992, %v104, %v255
  %v1016 = vsel %vm992, %v106, %v257
  %v1019 = vsel %vm992, %v110, %v259
  %v1022 = vsel %vm992, %v112, %v261
  %v1025 = vsel %vm992, %v114, %v263
  %v1028 = vsel %vm992, %v116, %v265
  %v1031 = vsel %vm992, %v118, %v267
  %v1034 = vsel %vm992, %v120, %v269
  %v1037 = vsel %vm992, %v122, %v271
  %v1040 = vsel %vm992, %v124, %v273
  %vm1041 = vcmask 64512
  %v1043 = vsel %vm1041, %v995, %v467
  %v1045 = vsel %vm1041, %v998, %v469
  %v1047 = vsel %vm1041, %v1001, %v471
  %v1049 = vsel %vm1041, %v1004, %v473
  %v1051 = vsel %vm1041, %v1007, %v475
  %v1053 = vsel %vm1041, %v1010, %v477
  %v1055 = vsel %vm1041, %v1013, %v479
  %v1057 = vsel %vm1041, %v1016, %v481
  %v1059 = vsel %vm1041, %v1019, %v483
  %v1061 = vsel %vm1041, %v1022, %v485
  %v1063 = vsel %vm1041, %v1025, %v487
  %v1065 = vsel %vm1041, %v1028, %v489
  %v1067 = vsel %vm1041, %v1031, %v491
  %v1069 = vsel %vm1041, %v1034, %v493
  %v1071 = vsel %vm1041, %v1037, %v495
  %v1073 = vsel %vm1041, %v1040, %v497
  %vm1074 = vcmask 97280
  %v1076 = vsel %vm1074, %v1043, %v547
  %v1078 = vsel %vm1074, %v1045, %v549
  %v1080 = vsel %vm1074, %v1047, %v551
  %v1082 = vsel %vm1074, %v1049, %v553
  %v1084 = vsel %vm1074, %v1051, %v555
  %v1086 = vsel %vm1074, %v1053, %v557
  %v1088 = vsel %vm1074, %v1055, %v559
  %v1090 = vsel %vm1074, %v1057, %v561
  %v1092 = vsel %vm1074, %v1059, %v563
  %v1094 = vsel %vm1074, %v1061, %v565
  %v1096 = vsel %vm1074, %v1063, %v567
  %v1098 = vsel %vm1074, %v1065, %v569
  %v1100 = vsel %vm1074, %v1067, %v571
  %v1102 = vsel %vm1074, %v1069, %v573
  %v1104 = vsel %vm1074, %v1071, %v575
  %v1106 = vsel %vm1074, %v1073, %v577
  %vm1107 = vcmask 130048
  %v1109 = vsel %vm1107, %v1076, %v627
  %v1111 = vsel %vm1107, %v1078, %v629
  %v1113 = vsel %vm1107, %v1080, %v631
  %v1115 = vsel %vm1107, %v1082, %v633
  %v1117 = vsel %vm1107, %v1084, %v635
  %v1119 = vsel %vm1107, %v1086, %v637
  %v1121 = vsel %vm1107, %v1088, %v639
  %v1123 = vsel %vm1107, %v1090, %v641
  %v1125 = vsel %vm1107, %v1092, %v643
  %v1127 = vsel %vm1107, %v1094, %v645
  %v1129 = vsel %vm1107, %v1096, %v647
  %v1131 = vsel %vm1107, %v1098, %v649
  %v1133 = vsel %vm1107, %v1100, %v651
  %v1135 = vsel %vm1107, %v1102, %v653
  %v1137 = vsel %vm1107, %v1104, %v655
  %v1139 = vsel %vm1107, %v1106, %v657
  %vm1140 = vcmask 162816
  %v1142 = vsel %vm1140, %v1109, %v819
  %v1144 = vsel %vm1140, %v1111, %v821
  %v1146 = vsel %vm1140, %v1113, %v823
  %v1148 = vsel %vm1140, %v1115, %v825
  %v1150 = vsel %vm1140, %v1117, %v827
  %v1152 = vsel %vm1140, %v1119, %v829
  %v1154 = vsel %vm1140, %v1121, %v831
  %v1156 = vsel %vm1140, %v1123, %v833
  %v1158 = vsel %vm1140, %v1125, %v835
  %v1160 = vsel %vm1140, %v1127, %v837
  %v1162 = vsel %vm1140, %v1129, %v839
  %v1164 = vsel %vm1140, %v1131, %v841
  %v1166 = vsel %vm1140, %v1133, %v843
  %v1168 = vsel %vm1140, %v1135, %v845
  %v1170 = vsel %vm1140, %v1137, %v847
  %v1172 = vsel %vm1140, %v1139, %v849
  %vm1173 = vcmask 195584
  %v1175 = vsel %vm1173, %v1142, %v871
  %v1177 = vsel %vm1173, %v1144, %v873
  %v1179 = vsel %vm1173, %v1146, %v875
  %v1181 = vsel %vm1173, %v1148, %v877
  %v1183 = vsel %vm1173, %v1150, %v879
  %v1185 = vsel %vm1173, %v1152, %v881
  %v1187 = vsel %vm1173, %v1154, %v883
  %v1189 = vsel %vm1173, %v1156, %v885
  %v1191 = vsel %vm1173, %v1158, %v887
  %v1193 = vsel %vm1173, %v1160, %v889
  %v1195 = vsel %vm1173, %v1162, %v891
  %v1197 = vsel %vm1173, %v1164, %v893
  %v1199 = vsel %vm1173, %v1166, %v895
  %v1201 = vsel %vm1173, %v1168, %v897
  %v1203 = vsel %vm1173, %v1170, %v899
  %v1205 = vsel %vm1173, %v1172, %v901
  %vm1206 = vcmask 228352
  %v1208 = vsel %vm1206, %v1175, %v909
  %v1210 = vsel %vm1206, %v1177, %v911
  %v1212 = vsel %vm1206, %v1179, %v913
  %v1214 = vsel %vm1206, %v1181, %v915
  %v1216 = vsel %vm1206, %v1183, %v917
  %v1218 = vsel %vm1206, %v1185, %v919
  %v1220 = vsel %vm1206, %v1187, %v921
  %v1222 = vsel %vm1206, %v1189, %v923
  %v1224 = vsel %vm1206, %v1191, %v925
  %v1226 = vsel %vm1206, %v1193, %v927
  %v1228 = vsel %vm1206, %v1195, %v929
  %v1230 = vsel %vm1206, %v1197, %v931
  %v1232 = vsel %vm1206, %v1199, %v933
  %v1234 = vsel %vm1206, %v1201, %v935
  %v1236 = vsel %vm1206, %v1203, %v937
  %v1238 = vsel %vm1206, %v1205, %v939
  %vm1239 = vcmask 261120
  %v1241 = vsel %vm1239, %v1208, %v961
  %v1243 = vsel %vm1239, %v1210, %v963
  %v1245 = vsel %vm1239, %v1212, %v965
  %v1247 = vsel %vm1239, %v1214, %v967
  %v1249 = vsel %vm1239, %v1216, %v969
  %v1251 = vsel %vm1239, %v1218, %v971
  %v1253 = vsel %vm1239, %v1220, %v973
  %v1255 = vsel %vm1239, %v1222, %v975
  %v1257 = vsel %vm1239, %v1224, %v977
  %v1259 = vsel %vm1239, %v1226, %v979
  %v1261 = vsel %vm1239, %v1228, %v981
  %v1263 = vsel %vm1239, %v1230, %v983
  %v1265 = vsel %vm1239, %v1232, %v985
  %v1267 = vsel %vm1239, %v1234, %v987
  %v1269 = vsel %vm1239, %v1236, %v989
  %v1271 = vsel %vm1239, %v1238, %v991
  %v1272 = vld [vmem:[%s4] sm:$0xf]
  %v1273 = vld [vmem:[%s4 + $0x4] sm:$0xf]
  %v1274 = vld [vmem:[%s4 + $0x8] sm:$0xf]
  %v1275 = vld [vmem:[%s4 + $0xc] sm:$0xf]
  %v1276 = vld [vmem:[%s4 + $0x10] sm:$0x3]
  %v1293 = vunpack.c.l.b16 %v1241
  %v1294 = vunpack.c.l.b16 %v1243
  %v1295 = vunpack.c.l.b16 %v1245
  %v1296 = vunpack.c.l.b16 %v1247
  %v1297 = vunpack.c.l.b16 %v1249
  %v1298 = vunpack.c.l.b16 %v1251
  %v1299 = vunpack.c.l.b16 %v1253
  %v1300 = vunpack.c.l.b16 %v1255
  %v1301 = vunpack.c.l.b16 %v1257
  %v1302 = vunpack.c.l.b16 %v1259
  %v1303 = vunpack.c.l.b16 %v1261
  %v1304 = vunpack.c.l.b16 %v1263
  %v1305 = vunpack.c.l.b16 %v1265
  %v1306 = vunpack.c.l.b16 %v1267
  %v1307 = vunpack.c.l.b16 %v1269
  %v1308 = vunpack.c.l.b16 %v1271
  %v1309 = vpack.c.b16 %v1294, %v1293
  %v1310 = vpack.c.b16 %v1296, %v1295
  %v1311 = vpack.c.b16 %v1298, %v1297
  %v1312 = vpack.c.b16 %v1300, %v1299
  %v1313 = vpack.c.b16 %v1302, %v1301
  %v1314 = vpack.c.b16 %v1304, %v1303
  %v1315 = vpack.c.b16 %v1306, %v1305
  %v1316 = vpack.c.b16 %v1308, %v1307
  %v1322 = vunpack.c.l.b16 %v1272
  %v1323 = vunpack.c.l.b16 %v1273
  %v1324 = vunpack.c.l.b16 %v1274
  %v1325 = vunpack.c.l.b16 %v1275
  %v1326 = vunpack.c.l.b16 %v1276
  %v1327 = vpack.c.b16 %v1323, %v1322
  %v1328 = vpack.c.b16 %v1325, %v1324
  %v1329 = vpack.c.b16 %v1326, %v1326
  %vm1332 = vcmask 293888
  %v1334 = vsel %vm1332, %v1309, 0
  %v1337 = vsel %vm1332, %v1310, 0
  %v1340 = vsel %vm1332, %v1311, 0
  %v1343 = vsel %vm1332, %v1312, 0
  %v1346 = vsel %vm1332, %v1313, 0
  %v1349 = vsel %vm1332, %v1314, 0
  %v1352 = vsel %vm1332, %v1315, 0
  %v1355 = vsel %vm1332, %v1316, 0
  %vm1357 = vcmask 1041408
  %v1359 = vsel %vm1357, %v1329, 0
  %1361 = vmatprep.subr.bf16.mxu0 0
  %1362 = vmatpush1.bf16.msra.mxu0 0
  %1363 = vmatprep.subr.bf16.mxu0 0
  %1364 = vmatpush1.bf16.msra.mxu0 0
  %1365 = vmatprep.subr.bf16.mxu0 0
  %1366 = vmatpush1.bf16.msra.mxu0 0
  %1367 = vmatprep.subr.bf16.mxu0 0
  %1368 = vmatpush1.bf16.msra.mxu0 0
  %1369 = vmatprep.subr.bf16.mxu0 0
  %1370 = vmatpush1.bf16.msra.mxu0 0
  %1371 = vmatprep.subr.bf16.mxu0 0
  %1372 = vmatpush1.bf16.msra.mxu0 %v1359
  %1373 = vmatprep.subr.bf16.mxu0 0
  %1374 = vmatpush1.bf16.msra.mxu0 %v1328
  %1375 = vmatprep.subr.bf16.mxu0 0
  %1376 = vmatpush1.bf16.msra.mxu0 %v1327
  %1377 = vmatprep.subr.bf16.mxu0 0
  %1378 = vmatpush2.bf16.msra.mxu0 0
  %1379 = vmatprep.subr.bf16.mxu0 0
  %1380 = vmatpush2.bf16.msra.mxu0 0
  %1381 = vmatprep.subr.bf16.mxu0 0
  %1382 = vmatpush2.bf16.msra.mxu0 0
  %1383 = vmatprep.subr.bf16.mxu0 0
  %1384 = vmatpush2.bf16.msra.mxu0 0
  %1385 = vmatprep.subr.bf16.mxu0 0
  %1386 = vmatpush2.bf16.msra.mxu0 0
  %1387 = vmatprep.subr.bf16.mxu0 0
  %1388 = vmatpush2.bf16.msra.mxu0 0
  %1389 = vmatprep.subr.bf16.mxu0 0
  %1390 = vmatpush2.bf16.msra.mxu0 0
  %1391 = vmatprep.subr.bf16.mxu0 0
  %1392 = vmatpush2.bf16.msra.mxu0 0
  %1393 = vmatprep.mubr.bf16.mxu0 0
  %1394 = vmatmul.mubr.bf16.gmra.mxu0 %v1334
  %v1395 = vpop.f32.mrf.mxu0
  %v1396 = vadd.f32 0.0, %v1395
  %v1397 = vpop.f32.mrf.mxu0
  %v1398 = vpop.f32.mrf.mxu0
  %v1399 = vadd.f32 0.0, %v1398
  %v1400 = vpop.f32.mrf.mxu0
  %1401 = vmatprep.mubr.bf16.mxu0 0
  %1402 = vmatmul.mubr.bf16.gmra.mxu0 %v1337
  %v1403 = vpop.f32.mrf.mxu0
  %v1404 = vadd.f32 0.0, %v1403
  %v1405 = vpop.f32.mrf.mxu0
  %v1406 = vpop.f32.mrf.mxu0
  %v1407 = vadd.f32 0.0, %v1406
  %v1408 = vpop.f32.mrf.mxu0
  %1409 = vmatprep.mubr.bf16.mxu0 0
  %1410 = vmatmul.mubr.bf16.gmra.mxu0 %v1340
  %v1411 = vpop.f32.mrf.mxu0
  %v1412 = vadd.f32 0.0, %v1411
  %v1413 = vpop.f32.mrf.mxu0
  %v1414 = vpop.f32.mrf.mxu0
  %v1415 = vadd.f32 0.0, %v1414
  %v1416 = vpop.f32.mrf.mxu0
  %1417 = vmatprep.mubr.bf16.mxu0 0
  %1418 = vmatmul.mubr.bf16.gmra.mxu0 %v1343
  %v1419 = vpop.f32.mrf.mxu0
  %v1420 = vadd.f32 0.0, %v1419
  %v1421 = vpop.f32.mrf.mxu0
  %v1422 = vpop.f32.mrf.mxu0
  %v1423 = vadd.f32 0.0, %v1422
  %v1424 = vpop.f32.mrf.mxu0
  %1425 = vmatprep.mubr.bf16.mxu0 0
  %1426 = vmatmul.mubr.bf16.gmra.mxu0 %v1346
  %v1427 = vpop.f32.mrf.mxu0
  %v1428 = vadd.f32 0.0, %v1427
  %v1429 = vpop.f32.mrf.mxu0
  %v1430 = vpop.f32.mrf.mxu0
  %v1431 = vadd.f32 0.0, %v1430
  %v1432 = vpop.f32.mrf.mxu0
  %1433 = vmatprep.mubr.bf16.mxu0 0
  %1434 = vmatmul.mubr.bf16.gmra.mxu0 %v1349
  %v1435 = vpop.f32.mrf.mxu0
  %v1436 = vadd.f32 0.0, %v1435
  %v1437 = vpop.f32.mrf.mxu0
  %v1438 = vpop.f32.mrf.mxu0
  %v1439 = vadd.f32 0.0, %v1438
  %v1440 = vpop.f32.mrf.mxu0
  %1441 = vmatprep.mubr.bf16.mxu0 0
  %1442 = vmatmul.mubr.bf16.gmra.mxu0 %v1352
  %v1443 = vpop.f32.mrf.mxu0
  %v1444 = vadd.f32 0.0, %v1443
  %v1445 = vpop.f32.mrf.mxu0
  %v1446 = vpop.f32.mrf.mxu0
  %v1447 = vadd.f32 0.0, %v1446
  %v1448 = vpop.f32.mrf.mxu0
  %1449 = vmatprep.mubr.bf16.mxu0 0
  %1450 = vmatmul.mubr.bf16.gmra.mxu0 %v1355
  %v1451 = vpop.f32.mrf.mxu0
  %v1452 = vadd.f32 0.0, %v1451
  %v1453 = vpop.f32.mrf.mxu0
  %v1454 = vpop.f32.mrf.mxu0
  %v1455 = vadd.f32 0.0, %v1454
  %v1456 = vpop.f32.mrf.mxu0
  %1457 = vdwg.mxu0
  %v1458 = vld [vmem:[%s7] sm:$0x1]
  %v1459 = vld [vmem:[%s8] sm:$0x1]
  %v1460 = vsel %vm1041, %v1396, 0.0
  %v1461 = vsel %vm1041, %v1399, 0.0
  %v1462 = vadd.f32 %v1460, %v1461
  %v1463 = vsel %vm1041, %v1404, 0.0
  %v1464 = vadd.f32 %v1462, %v1463
  %v1465 = vsel %vm1041, %v1407, 0.0
  %v1466 = vadd.f32 %v1464, %v1465
  %v1467 = vsel %vm1041, %v1412, 0.0
  %v1468 = vadd.f32 %v1466, %v1467
  %v1469 = vsel %vm1041, %v1415, 0.0
  %v1470 = vadd.f32 %v1468, %v1469
  %v1471 = vsel %vm1041, %v1420, 0.0
  %v1472 = vadd.f32 %v1470, %v1471
  %v1473 = vsel %vm1041, %v1423, 0.0
  %v1474 = vadd.f32 %v1472, %v1473
  %v1475 = vsel %vm1041, %v1428, 0.0
  %v1476 = vadd.f32 %v1474, %v1475
  %v1477 = vsel %vm1041, %v1431, 0.0
  %v1478 = vadd.f32 %v1476, %v1477
  %v1479 = vsel %vm1041, %v1436, 0.0
  %v1480 = vadd.f32 %v1478, %v1479
  %v1481 = vsel %vm1041, %v1439, 0.0
  %v1482 = vadd.f32 %v1480, %v1481
  %v1483 = vsel %vm1041, %v1444, 0.0
  %v1484 = vadd.f32 %v1482, %v1483
  %v1485 = vsel %vm1041, %v1447, 0.0
  %v1486 = vadd.f32 %v1484, %v1485
  %v1487 = vsel %vm1041, %v1452, 0.0
  %v1488 = vadd.f32 %v1486, %v1487
  %v1489 = vsel %vm1041, %v1455, 0.0
  %v1490 = vadd.f32 %v1488, %v1489
  %v1491 = vrot.slane %v1490, 4
  %v1492 = vadd.f32 %v1490, %v1491
  %v1493 = vrot.slane %v1492, 2
  %v1494 = vadd.f32 %v1492, %v1493
  %v1495 = vrot.slane %v1494, 1
  %v1496 = vadd.f32 %v1494, %v1495
  %v1497 = vrcp.pop 128.0
  %v1498 = vmul.f32 %v1496, %v1497
  %v1499 = vsub.f32 %v1396, %v1498
  %v1500 = vsub.f32 %v1399, %v1498
  %v1501 = vsub.f32 %v1404, %v1498
  %v1502 = vsub.f32 %v1407, %v1498
  %v1503 = vsub.f32 %v1412, %v1498
  %v1504 = vsub.f32 %v1415, %v1498
  %v1505 = vsub.f32 %v1420, %v1498
  %v1506 = vsub.f32 %v1423, %v1498
  %v1507 = vsub.f32 %v1428, %v1498
  %v1508 = vsub.f32 %v1431, %v1498
  %v1509 = vsub.f32 %v1436, %v1498
  %v1510 = vsub.f32 %v1439, %v1498
  %v1511 = vsub.f32 %v1444, %v1498
  %v1512 = vsub.f32 %v1447, %v1498
  %v1513 = vsub.f32 %v1452, %v1498
  %v1514 = vsub.f32 %v1455, %v1498
  %v1515 = vmul.f32 %v1499, %v1499
  %v1516 = vmul.f32 %v1500, %v1500
  %v1517 = vmul.f32 %v1501, %v1501
  %v1518 = vmul.f32 %v1502, %v1502
  %v1519 = vmul.f32 %v1503, %v1503
  %v1520 = vmul.f32 %v1504, %v1504
  %v1521 = vmul.f32 %v1505, %v1505
  %v1522 = vmul.f32 %v1506, %v1506
  %v1523 = vmul.f32 %v1507, %v1507
  %v1524 = vmul.f32 %v1508, %v1508
  %v1525 = vmul.f32 %v1509, %v1509
  %v1526 = vmul.f32 %v1510, %v1510
  %v1527 = vmul.f32 %v1511, %v1511
  %v1528 = vmul.f32 %v1512, %v1512
  %v1529 = vmul.f32 %v1513, %v1513
  %v1530 = vmul.f32 %v1514, %v1514
  %v1531 = vsel %vm1041, %v1515, 0.0
  %v1532 = vsel %vm1041, %v1516, 0.0
  %v1533 = vadd.f32 %v1531, %v1532
  %v1534 = vsel %vm1041, %v1517, 0.0
  %v1535 = vadd.f32 %v1533, %v1534
  %v1536 = vsel %vm1041, %v1518, 0.0
  %v1537 = vadd.f32 %v1535, %v1536
  %v1538 = vsel %vm1041, %v1519, 0.0
  %v1539 = vadd.f32 %v1537, %v1538
  %v1540 = vsel %vm1041, %v1520, 0.0
  %v1541 = vadd.f32 %v1539, %v1540
  %v1542 = vsel %vm1041, %v1521, 0.0
  %v1543 = vadd.f32 %v1541, %v1542
  %v1544 = vsel %vm1041, %v1522, 0.0
  %v1545 = vadd.f32 %v1543, %v1544
  %v1546 = vsel %vm1041, %v1523, 0.0
  %v1547 = vadd.f32 %v1545, %v1546
  %v1548 = vsel %vm1041, %v1524, 0.0
  %v1549 = vadd.f32 %v1547, %v1548
  %v1550 = vsel %vm1041, %v1525, 0.0
  %v1551 = vadd.f32 %v1549, %v1550
  %v1552 = vsel %vm1041, %v1526, 0.0
  %v1553 = vadd.f32 %v1551, %v1552
  %v1554 = vsel %vm1041, %v1527, 0.0
  %v1555 = vadd.f32 %v1553, %v1554
  %v1556 = vsel %vm1041, %v1528, 0.0
  %v1557 = vadd.f32 %v1555, %v1556
  %v1558 = vsel %vm1041, %v1529, 0.0
  %v1559 = vadd.f32 %v1557, %v1558
  %v1560 = vsel %vm1041, %v1530, 0.0
  %v1561 = vadd.f32 %v1559, %v1560
  %v1562 = vrot.slane %v1561, 4
  %v1563 = vadd.f32 %v1561, %v1562
  %v1564 = vrot.slane %v1563, 2
  %v1565 = vadd.f32 %v1563, %v1564
  %v1566 = vrot.slane %v1565, 1
  %v1567 = vadd.f32 %v1565, %v1566
  %v1568 = vmul.f32 %v1567, %v1497
  %v1569 = vadd.f32 %v1568, 1e-05
  %v1570 = vrsqrt.pop %v1569
  %v1571 = vmul.f32 %v1499, %v1570
  %v1572 = vmul.f32 %v1500, %v1570
  %v1573 = vmul.f32 %v1501, %v1570
  %v1574 = vmul.f32 %v1502, %v1570
  %v1575 = vmul.f32 %v1503, %v1570
  %v1576 = vmul.f32 %v1504, %v1570
  %v1577 = vmul.f32 %v1505, %v1570
  %v1578 = vmul.f32 %v1506, %v1570
  %v1579 = vmul.f32 %v1507, %v1570
  %v1580 = vmul.f32 %v1508, %v1570
  %v1581 = vmul.f32 %v1509, %v1570
  %v1582 = vmul.f32 %v1510, %v1570
  %v1583 = vmul.f32 %v1511, %v1570
  %v1584 = vmul.f32 %v1512, %v1570
  %v1585 = vmul.f32 %v1513, %v1570
  %v1586 = vmul.f32 %v1514, %v1570
  %v1588 = vlaneseq
  %v1589 = vshrl.u32 %v1588, 7
  %v1590 = vsub.s32 0, %v1589
  %v1591 = vrot.slane %v1458, %v1590
  %v1593 = vmul.f32 %v1571, %v1591
  %v1594 = vmul.f32 %v1572, %v1591
  %v1595 = vmul.f32 %v1573, %v1591
  %v1596 = vmul.f32 %v1574, %v1591
  %v1597 = vmul.f32 %v1575, %v1591
  %v1598 = vmul.f32 %v1576, %v1591
  %v1599 = vmul.f32 %v1577, %v1591
  %v1600 = vmul.f32 %v1578, %v1591
  %v1601 = vmul.f32 %v1579, %v1591
  %v1602 = vmul.f32 %v1580, %v1591
  %v1603 = vmul.f32 %v1581, %v1591
  %v1604 = vmul.f32 %v1582, %v1591
  %v1605 = vmul.f32 %v1583, %v1591
  %v1606 = vmul.f32 %v1584, %v1591
  %v1607 = vmul.f32 %v1585, %v1591
  %v1608 = vmul.f32 %v1586, %v1591
  %v1610 = vlaneseq
  %v1611 = vshrl.u32 %v1610, 7
  %v1612 = vsub.s32 0, %v1611
  %v1613 = vrot.slane %v1459, %v1612
  %v1615 = vadd.f32 %v1593, %v1613
  %v1616 = vadd.f32 %v1594, %v1613
  %v1617 = vadd.f32 %v1595, %v1613
  %v1618 = vadd.f32 %v1596, %v1613
  %v1619 = vadd.f32 %v1597, %v1613
  %v1620 = vadd.f32 %v1598, %v1613
  %v1621 = vadd.f32 %v1599, %v1613
  %v1622 = vadd.f32 %v1600, %v1613
  %v1623 = vadd.f32 %v1601, %v1613
  %v1624 = vadd.f32 %v1602, %v1613
  %v1625 = vadd.f32 %v1603, %v1613
  %v1626 = vadd.f32 %v1604, %v1613
  %v1627 = vadd.f32 %v1605, %v1613
  %v1628 = vadd.f32 %v1606, %v1613
  %v1629 = vadd.f32 %v1607, %v1613
  %v1630 = vadd.f32 %v1608, %v1613
  %v1631 = vmul.f32 %v1615, 0.01
  %v1632 = vmul.f32 %v1616, 0.01
  %v1633 = vmul.f32 %v1617, 0.01
  %v1634 = vmul.f32 %v1618, 0.01
  %v1635 = vmul.f32 %v1619, 0.01
  %v1636 = vmul.f32 %v1620, 0.01
  %v1637 = vmul.f32 %v1621, 0.01
  %v1638 = vmul.f32 %v1622, 0.01
  %v1639 = vmul.f32 %v1623, 0.01
  %v1640 = vmul.f32 %v1624, 0.01
  %v1641 = vmul.f32 %v1625, 0.01
  %v1642 = vmul.f32 %v1626, 0.01
  %v1643 = vmul.f32 %v1627, 0.01
  %v1644 = vmul.f32 %v1628, 0.01
  %v1645 = vmul.f32 %v1629, 0.01
  %v1646 = vmul.f32 %v1630, 0.01
  %v1647 = vmax.f32 %v1615, %v1631
  %v1648 = vmax.f32 %v1616, %v1632
  %v1649 = vmax.f32 %v1617, %v1633
  %v1650 = vmax.f32 %v1618, %v1634
  %v1651 = vmax.f32 %v1619, %v1635
  %v1652 = vmax.f32 %v1620, %v1636
  %v1653 = vmax.f32 %v1621, %v1637
  %v1654 = vmax.f32 %v1622, %v1638
  %v1655 = vmax.f32 %v1623, %v1639
  %v1656 = vmax.f32 %v1624, %v1640
  %v1657 = vmax.f32 %v1625, %v1641
  %v1658 = vmax.f32 %v1626, %v1642
  %v1659 = vmax.f32 %v1627, %v1643
  %v1660 = vmax.f32 %v1628, %v1644
  %v1661 = vmax.f32 %v1629, %v1645
  %v1662 = vmax.f32 %v1630, %v1646
  %v1663 = vpack.c.bf16 %v1648, %v1647
  %v1664 = vpack.c.bf16 %v1650, %v1649
  %v1665 = vpack.c.bf16 %v1652, %v1651
  %v1666 = vpack.c.bf16 %v1654, %v1653
  %v1667 = vpack.c.bf16 %v1656, %v1655
  %v1668 = vpack.c.bf16 %v1658, %v1657
  %v1669 = vpack.c.bf16 %v1660, %v1659
  %v1670 = vpack.c.bf16 %v1662, %v1661
  %v1679 = vunpack.c.l.b16 %v1663
  %v1680 = vunpack.c.h.b16 %v1663
  %v1681 = vunpack.c.l.b16 %v1664
  %v1682 = vunpack.c.h.b16 %v1664
  %v1683 = vunpack.c.l.b16 %v1665
  %v1684 = vunpack.c.h.b16 %v1665
  %v1685 = vunpack.c.l.b16 %v1666
  %v1686 = vunpack.c.h.b16 %v1666
  %v1687 = vunpack.c.l.b16 %v1667
  %v1688 = vunpack.c.h.b16 %v1667
  %v1689 = vunpack.c.l.b16 %v1668
  %v1690 = vunpack.c.h.b16 %v1668
  %v1691 = vunpack.c.l.b16 %v1669
  %v1692 = vunpack.c.h.b16 %v1669
  %v1693 = vunpack.c.l.b16 %v1670
  %v1694 = vunpack.c.h.b16 %v1670
  %v1695 = vpack.c.b16 %v1679, %v1679
  %v1696 = vpack.c.b16 %v1680, %v1680
  %v1697 = vpack.c.b16 %v1681, %v1681
  %v1698 = vpack.c.b16 %v1682, %v1682
  %v1699 = vpack.c.b16 %v1683, %v1683
  %v1700 = vpack.c.b16 %v1684, %v1684
  %v1701 = vpack.c.b16 %v1685, %v1685
  %v1702 = vpack.c.b16 %v1686, %v1686
  %v1703 = vpack.c.b16 %v1687, %v1687
  %v1704 = vpack.c.b16 %v1688, %v1688
  %v1705 = vpack.c.b16 %v1689, %v1689
  %v1706 = vpack.c.b16 %v1690, %v1690
  %v1707 = vpack.c.b16 %v1691, %v1691
  %v1708 = vpack.c.b16 %v1692, %v1692
  %v1709 = vpack.c.b16 %v1693, %v1693
  %v1710 = vpack.c.b16 %v1694, %v1694
  %v1711 = vrot.slane %v1695, 7
  %v1712 = vrot.slane %v1711, 4
  %v1713 = vrot.slane %v1696, 7
  %v1714 = vrot.slane %v1713, 4
  %v1715 = vrot.slane %v1697, 7
  %v1716 = vrot.slane %v1715, 4
  %v1717 = vrot.slane %v1698, 7
  %v1718 = vrot.slane %v1717, 4
  %v1719 = vrot.slane %v1699, 7
  %v1720 = vrot.slane %v1719, 4
  %v1721 = vrot.slane %v1700, 7
  %v1722 = vrot.slane %v1721, 4
  %v1723 = vrot.slane %v1701, 7
  %v1724 = vrot.slane %v1723, 4
  %v1725 = vrot.slane %v1702, 7
  %v1726 = vrot.slane %v1725, 4
  %v1727 = vrot.slane %v1703, 7
  %v1728 = vrot.slane %v1727, 4
  %v1729 = vrot.slane %v1704, 7
  %v1730 = vrot.slane %v1729, 4
  %v1731 = vrot.slane %v1705, 7
  %v1732 = vrot.slane %v1731, 4
  %v1733 = vrot.slane %v1706, 7
  %v1734 = vrot.slane %v1733, 4
  %v1735 = vrot.slane %v1707, 7
  %v1736 = vrot.slane %v1735, 4
  %v1737 = vrot.slane %v1708, 7
  %v1738 = vrot.slane %v1737, 4
  %v1739 = vrot.slane %v1709, 7
  %v1740 = vrot.slane %v1739, 4
  %v1741 = vrot.slane %v1710, 7
  %v1742 = vrot.slane %v1741, 4
  %s1775 = scalar_lea.vmem [#allocation2], 8
  %vm1776 = vcmask 60417
  %1777 = vst.msk [vmem:[%s1775] sm:$0xe] %vm1776, %v1711
  %1778 = vst.msk [vmem:[%s1775 + $0x4] sm:$0x1] %vm50, %v1712
  %1779 = vst.msk [vmem:[%s1775 + $0x8] sm:$0xe] %vm1776, %v1713
  %1780 = vst.msk [vmem:[%s1775 + $0xc] sm:$0x1] %vm50, %v1714
  %1781 = vst.msk [vmem:[%s1775 + $0x10] sm:$0xe] %vm1776, %v1715
  %1782 = vst.msk [vmem:[%s1775 + $0x14] sm:$0x1] %vm50, %v1716
  %1783 = vst.msk [vmem:[%s1775 + $0x18] sm:$0xe] %vm1776, %v1717
  %1784 = vst.msk [vmem:[%s1775 + $0x1c] sm:$0x1] %vm50, %v1718
  %1785 = vst.msk [vmem:[%s1775 + $0x20] sm:$0xe] %vm1776, %v1719
  %1786 = vst.msk [vmem:[%s1775 + $0x24] sm:$0x1] %vm50, %v1720
  %1787 = vst.msk [vmem:[%s1775 + $0x28] sm:$0xe] %vm1776, %v1721
  %1788 = vst.msk [vmem:[%s1775 + $0x2c] sm:$0x1] %vm50, %v1722
  %1789 = vst.msk [vmem:[%s1775 + $0x30] sm:$0xe] %vm1776, %v1723
  %1790 = vst.msk [vmem:[%s1775 + $0x34] sm:$0x1] %vm50, %v1724
  %1791 = vst.msk [vmem:[%s1775 + $0x38] sm:$0xe] %vm1776, %v1725
  %1792 = vst.msk [vmem:[%s1775 + $0x3c] sm:$0x1] %vm50, %v1726
  %1793 = vst.msk [vmem:[%s1775 + $0x50] sm:$0xe] %vm1776, %v1727
  %1794 = vst.msk [vmem:[%s1775 + $0x54] sm:$0x1] %vm50, %v1728
  %1795 = vst.msk [vmem:[%s1775 + $0x58] sm:$0xe] %vm1776, %v1729
  %1796 = vst.msk [vmem:[%s1775 + $0x5c] sm:$0x1] %vm50, %v1730
  %1797 = vst.msk [vmem:[%s1775 + $0x60] sm:$0xe] %vm1776, %v1731
  %1798 = vst.msk [vmem:[%s1775 + $0x64] sm:$0x1] %vm50, %v1732
  %1799 = vst.msk [vmem:[%s1775 + $0x68] sm:$0xe] %vm1776, %v1733
  %1800 = vst.msk [vmem:[%s1775 + $0x6c] sm:$0x1] %vm50, %v1734
  %1801 = vst.msk [vmem:[%s1775 + $0x70] sm:$0xe] %vm1776, %v1735
  %1802 = vst.msk [vmem:[%s1775 + $0x74] sm:$0x1] %vm50, %v1736
  %1803 = vst.msk [vmem:[%s1775 + $0x78] sm:$0xe] %vm1776, %v1737
  %1804 = vst.msk [vmem:[%s1775 + $0x7c] sm:$0x1] %vm50, %v1738
  %1805 = vst.msk [vmem:[%s1775 + $0x80] sm:$0xe] %vm1776, %v1739
  %1806 = vst.msk [vmem:[%s1775 + $0x84] sm:$0x1] %vm50, %v1740
  %1807 = vst.msk [vmem:[%s1775 + $0x88] sm:$0xe] %vm1776, %v1741
  %1808 = vst.msk [vmem:[%s1775 + $0x8c] sm:$0x1] %vm50, %v1742
  %v1809 = vld [vmem:[#allocation2] sm:$0xf]
  %v1810 = vld [vmem:[#allocation2 + $0x4] sm:$0x1]
  %v1811 = vld [vmem:[#allocation2 + $0x8] sm:$0xf]
  %v1812 = vld [vmem:[#allocation2 + $0xc] sm:$0x1]
  %v1813 = vld [vmem:[#allocation2 + $0x10] sm:$0xf]
  %v1814 = vld [vmem:[#allocation2 + $0x14] sm:$0x1]
  %v1815 = vld [vmem:[#allocation2 + $0x18] sm:$0xf]
  %v1816 = vld [vmem:[#allocation2 + $0x1c] sm:$0x1]
  %v1817 = vld [vmem:[#allocation2 + $0x20] sm:$0xf]
  %v1818 = vld [vmem:[#allocation2 + $0x24] sm:$0x1]
  %v1819 = vld [vmem:[#allocation2 + $0x28] sm:$0xf]
  %v1820 = vld [vmem:[#allocation2 + $0x2c] sm:$0x1]
  %v1821 = vld [vmem:[#allocation2 + $0x30] sm:$0xf]
  %v1822 = vld [vmem:[#allocation2 + $0x34] sm:$0x1]
  %v1823 = vld [vmem:[#allocation2 + $0x38] sm:$0xf]
  %v1824 = vld [vmem:[#allocation2 + $0x3c] sm:$0x1]
  %v1825 = vld [vmem:[#allocation2 + $0x50] sm:$0xf]
  %v1826 = vld [vmem:[#allocation2 + $0x54] sm:$0x1]
  %v1827 = vld [vmem:[#allocation2 + $0x58] sm:$0xf]
  %v1828 = vld [vmem:[#allocation2 + $0x5c] sm:$0x1]
  %v1829 = vld [vmem:[#allocation2 + $0x60] sm:$0xf]
  %v1830 = vld [vmem:[#allocation2 + $0x64] sm:$0x1]
  %v1831 = vld [vmem:[#allocation2 + $0x68] sm:$0xf]
  %v1832 = vld [vmem:[#allocation2 + $0x6c] sm:$0x1]
  %v1833 = vld [vmem:[#allocation2 + $0x70] sm:$0xf]
  %v1834 = vld [vmem:[#allocation2 + $0x74] sm:$0x1]
  %v1835 = vld [vmem:[#allocation2 + $0x78] sm:$0xf]
  %v1836 = vld [vmem:[#allocation2 + $0x7c] sm:$0x1]
  %v1837 = vld [vmem:[#allocation2 + $0x80] sm:$0xf]
  %v1838 = vld [vmem:[#allocation2 + $0x84] sm:$0x1]
  %v1839 = vld [vmem:[#allocation2 + $0x88] sm:$0xf]
  %v1840 = vld [vmem:[#allocation2 + $0x8c] sm:$0x1]
  %v1841 = vld [vmem:[#allocation2] sm:$0xe]
  %v1842 = vld [vmem:[#allocation2 + $0x8] sm:$0xe]
  %v1843 = vld [vmem:[#allocation2 + $0x10] sm:$0xe]
  %v1844 = vld [vmem:[#allocation2 + $0x18] sm:$0xe]
  %v1845 = vld [vmem:[#allocation2 + $0x20] sm:$0xe]
  %v1846 = vld [vmem:[#allocation2 + $0x28] sm:$0xe]
  %v1847 = vld [vmem:[#allocation2 + $0x30] sm:$0xe]
  %v1848 = vld [vmem:[#allocation2 + $0x38] sm:$0xe]
  %v1849 = vld [vmem:[#allocation2 + $0x50] sm:$0xe]
  %v1850 = vld [vmem:[#allocation2 + $0x58] sm:$0xe]
  %v1851 = vld [vmem:[#allocation2 + $0x60] sm:$0xe]
  %v1852 = vld [vmem:[#allocation2 + $0x68] sm:$0xe]
  %v1853 = vld [vmem:[#allocation2 + $0x70] sm:$0xe]
  %v1854 = vld [vmem:[#allocation2 + $0x78] sm:$0xe]
  %v1855 = vld [vmem:[#allocation2 + $0x80] sm:$0xe]
  %v1856 = vld [vmem:[#allocation2 + $0x88] sm:$0xe]
  %v1857 = vld [vmem:[#allocation2 + $0x4] sm:$0x3]
  %v1858 = vld [vmem:[#allocation2 + $0xc] sm:$0x3]
  %v1859 = vld [vmem:[#allocation2 + $0x14] sm:$0x3]
  %v1860 = vld [vmem:[#allocation2 + $0x1c] sm:$0x3]
  %v1861 = vld [vmem:[#allocation2 + $0x24] sm:$0x3]
  %v1862 = vld [vmem:[#allocation2 + $0x2c] sm:$0x3]
  %v1863 = vld [vmem:[#allocation2 + $0x34] sm:$0x3]
  %v1864 = vld [vmem:[#allocation2 + $0x3c] sm:$0x3]
  %v1865 = vld [vmem:[#allocation2 + $0x54] sm:$0x3]
  %v1866 = vld [vmem:[#allocation2 + $0x5c] sm:$0x3]
  %v1867 = vld [vmem:[#allocation2 + $0x64] sm:$0x3]
  %v1868 = vld [vmem:[#allocation2 + $0x6c] sm:$0x3]
  %v1869 = vld [vmem:[#allocation2 + $0x74] sm:$0x3]
  %v1870 = vld [vmem:[#allocation2 + $0x7c] sm:$0x3]
  %v1871 = vld [vmem:[#allocation2 + $0x84] sm:$0x3]
  %v1872 = vld [vmem:[#allocation2 + $0x8c] sm:$0x3]
  %v1873 = vld [vmem:[%s1775] sm:$0xf]
  %v1874 = vld [vmem:[%s1775 + $0x4] sm:$0x1]
  %v1875 = vld [vmem:[%s1775 + $0x8] sm:$0xf]
  %v1876 = vld [vmem:[%s1775 + $0xc] sm:$0x1]
  %v1877 = vld [vmem:[%s1775 + $0x10] sm:$0xf]
  %v1878 = vld [vmem:[%s1775 + $0x14] sm:$0x1]
  %v1879 = vld [vmem:[%s1775 + $0x18] sm:$0xf]
  %v1880 = vld [vmem:[%s1775 + $0x1c] sm:$0x1]
  %v1881 = vld [vmem:[%s1775 + $0x20] sm:$0xf]
  %v1882 = vld [vmem:[%s1775 + $0x24] sm:$0x1]
  %v1883 = vld [vmem:[%s1775 + $0x28] sm:$0xf]
  %v1884 = vld [vmem:[%s1775 + $0x2c] sm:$0x1]
  %v1885 = vld [vmem:[%s1775 + $0x30] sm:$0xf]
  %v1886 = vld [vmem:[%s1775 + $0x34] sm:$0x1]
  %v1887 = vld [vmem:[%s1775 + $0x38] sm:$0xf]
  %v1888 = vld [vmem:[%s1775 + $0x3c] sm:$0x1]
  %v1889 = vld [vmem:[%s1775 + $0x50] sm:$0xf]
  %v1890 = vld [vmem:[%s1775 + $0x54] sm:$0x1]
  %v1891 = vld [vmem:[%s1775 + $0x58] sm:$0xf]
  %v1892 = vld [vmem:[%s1775 + $0x5c] sm:$0x1]
  %v1893 = vld [vmem:[%s1775 + $0x60] sm:$0xf]
  %v1894 = vld [vmem:[%s1775 + $0x64] sm:$0x1]
  %v1895 = vld [vmem:[%s1775 + $0x68] sm:$0xf]
  %v1896 = vld [vmem:[%s1775 + $0x6c] sm:$0x1]
  %v1897 = vld [vmem:[%s1775 + $0x70] sm:$0xf]
  %v1898 = vld [vmem:[%s1775 + $0x74] sm:$0x1]
  %v1899 = vld [vmem:[%s1775 + $0x78] sm:$0xf]
  %v1900 = vld [vmem:[%s1775 + $0x7c] sm:$0x1]
  %v1901 = vld [vmem:[%s1775 + $0x80] sm:$0xf]
  %v1902 = vld [vmem:[%s1775 + $0x84] sm:$0x1]
  %v1903 = vld [vmem:[%s1775 + $0x88] sm:$0xf]
  %v1904 = vld [vmem:[%s1775 + $0x8c] sm:$0x1]
  %v1905 = vld [vmem:[%s1775] sm:$0xe]
  %v1906 = vld [vmem:[%s1775 + $0x8] sm:$0xe]
  %v1907 = vld [vmem:[%s1775 + $0x10] sm:$0xe]
  %v1908 = vld [vmem:[%s1775 + $0x18] sm:$0xe]
  %v1909 = vld [vmem:[%s1775 + $0x20] sm:$0xe]
  %v1910 = vld [vmem:[%s1775 + $0x28] sm:$0xe]
  %v1911 = vld [vmem:[%s1775 + $0x30] sm:$0xe]
  %v1912 = vld [vmem:[%s1775 + $0x38] sm:$0xe]
  %v1913 = vld [vmem:[%s1775 + $0x50] sm:$0xe]
  %v1914 = vld [vmem:[%s1775 + $0x58] sm:$0xe]
  %v1915 = vld [vmem:[%s1775 + $0x60] sm:$0xe]
  %v1916 = vld [vmem:[%s1775 + $0x68] sm:$0xe]
  %v1917 = vld [vmem:[%s1775 + $0x70] sm:$0xe]
  %v1918 = vld [vmem:[%s1775 + $0x78] sm:$0xe]
  %v1919 = vld [vmem:[%s1775 + $0x80] sm:$0xe]
  %v1920 = vld [vmem:[%s1775 + $0x88] sm:$0xe]
  %v1921 = vld [vmem:[%s1775 + $0x4] sm:$0x3]
  %v1922 = vld [vmem:[%s1775 + $0xc] sm:$0x3]
  %v1923 = vld [vmem:[%s1775 + $0x14] sm:$0x3]
  %v1924 = vld [vmem:[%s1775 + $0x1c] sm:$0x3]
  %v1925 = vld [vmem:[%s1775 + $0x24] sm:$0x3]
  %v1926 = vld [vmem:[%s1775 + $0x2c] sm:$0x3]
  %v1927 = vld [vmem:[%s1775 + $0x34] sm:$0x3]
  %v1928 = vld [vmem:[%s1775 + $0x3c] sm:$0x3]
  %v1929 = vld [vmem:[%s1775 + $0x54] sm:$0x3]
  %v1930 = vld [vmem:[%s1775 + $0x5c] sm:$0x3]
  %v1931 = vld [vmem:[%s1775 + $0x64] sm:$0x3]
  %v1932 = vld [vmem:[%s1775 + $0x6c] sm:$0x3]
  %v1933 = vld [vmem:[%s1775 + $0x74] sm:$0x3]
  %v1934 = vld [vmem:[%s1775 + $0x7c] sm:$0x3]
  %v1935 = vld [vmem:[%s1775 + $0x84] sm:$0x3]
  %v1936 = vld [vmem:[%s1775 + $0x8c] sm:$0x3]
  %s1937 = scalar_lea.vmem [#allocation2], 16
  %v1938 = vld [vmem:[%s1937] sm:$0xf]
  %v1939 = vld [vmem:[%s1937 + $0x4] sm:$0x1]
  %v1940 = vld [vmem:[%s1937 + $0x8] sm:$0xf]
  %v1941 = vld [vmem:[%s1937 + $0xc] sm:$0x1]
  %v1942 = vld [vmem:[%s1937 + $0x10] sm:$0xf]
  %v1943 = vld [vmem:[%s1937 + $0x14] sm:$0x1]
  %v1944 = vld [vmem:[%s1937 + $0x18] sm:$0xf]
  %v1945 = vld [vmem:[%s1937 + $0x1c] sm:$0x1]
  %v1946 = vld [vmem:[%s1937 + $0x20] sm:$0xf]
  %v1947 = vld [vmem:[%s1937 + $0x24] sm:$0x1]
  %v1948 = vld [vmem:[%s1937 + $0x28] sm:$0xf]
  %v1949 = vld [vmem:[%s1937 + $0x2c] sm:$0x1]
  %v1950 = vld [vmem:[%s1937 + $0x30] sm:$0xf]
  %v1951 = vld [vmem:[%s1937 + $0x34] sm:$0x1]
  %v1952 = vld [vmem:[%s1937 + $0x38] sm:$0xf]
  %v1953 = vld [vmem:[%s1937 + $0x3c] sm:$0x1]
  %v1954 = vld [vmem:[%s1937 + $0x50] sm:$0xf]
  %v1955 = vld [vmem:[%s1937 + $0x54] sm:$0x1]
  %v1956 = vld [vmem:[%s1937 + $0x58] sm:$0xf]
  %v1957 = vld [vmem:[%s1937 + $0x5c] sm:$0x1]
  %v1958 = vld [vmem:[%s1937 + $0x60] sm:$0xf]
  %v1959 = vld [vmem:[%s1937 + $0x64] sm:$0x1]
  %v1960 = vld [vmem:[%s1937 + $0x68] sm:$0xf]
  %v1961 = vld [vmem:[%s1937 + $0x6c] sm:$0x1]
  %v1962 = vld [vmem:[%s1937 + $0x70] sm:$0xf]
  %v1963 = vld [vmem:[%s1937 + $0x74] sm:$0x1]
  %v1964 = vld [vmem:[%s1937 + $0x78] sm:$0xf]
  %v1965 = vld [vmem:[%s1937 + $0x7c] sm:$0x1]
  %v1966 = vld [vmem:[%s1937 + $0x80] sm:$0xf]
  %v1967 = vld [vmem:[%s1937 + $0x84] sm:$0x1]
  %v1968 = vld [vmem:[%s1937 + $0x88] sm:$0xf]
  %v1969 = vld [vmem:[%s1937 + $0x8c] sm:$0x1]
  %v1970 = vld [vmem:[%s1937] sm:$0xe]
  %v1971 = vld [vmem:[%s1937 + $0x8] sm:$0xe]
  %v1972 = vld [vmem:[%s1937 + $0x10] sm:$0xe]
  %v1973 = vld [vmem:[%s1937 + $0x18] sm:$0xe]
  %v1974 = vld [vmem:[%s1937 + $0x20] sm:$0xe]
  %v1975 = vld [vmem:[%s1937 + $0x28] sm:$0xe]
  %v1976 = vld [vmem:[%s1937 + $0x30] sm:$0xe]
  %v1977 = vld [vmem:[%s1937 + $0x38] sm:$0xe]
  %v1978 = vld [vmem:[%s1937 + $0x50] sm:$0xe]
  %v1979 = vld [vmem:[%s1937 + $0x58] sm:$0xe]
  %v1980 = vld [vmem:[%s1937 + $0x60] sm:$0xe]
  %v1981 = vld [vmem:[%s1937 + $0x68] sm:$0xe]
  %v1982 = vld [vmem:[%s1937 + $0x70] sm:$0xe]
  %v1983 = vld [vmem:[%s1937 + $0x78] sm:$0xe]
  %v1984 = vld [vmem:[%s1937 + $0x80] sm:$0xe]
  %v1985 = vld [vmem:[%s1937 + $0x88] sm:$0xe]
  %v1986 = vld [vmem:[%s1937 + $0x4] sm:$0x3]
  %v1987 = vld [vmem:[%s1937 + $0xc] sm:$0x3]
  %v1988 = vld [vmem:[%s1937 + $0x14] sm:$0x3]
  %v1989 = vld [vmem:[%s1937 + $0x1c] sm:$0x3]
  %v1990 = vld [vmem:[%s1937 + $0x24] sm:$0x3]
  %v1991 = vld [vmem:[%s1937 + $0x2c] sm:$0x3]
  %v1992 = vld [vmem:[%s1937 + $0x34] sm:$0x3]
  %v1993 = vld [vmem:[%s1937 + $0x3c] sm:$0x3]
  %v1994 = vld [vmem:[%s1937 + $0x54] sm:$0x3]
  %v1995 = vld [vmem:[%s1937 + $0x5c] sm:$0x3]
  %v1996 = vld [vmem:[%s1937 + $0x64] sm:$0x3]
  %v1997 = vld [vmem:[%s1937 + $0x6c] sm:$0x3]
  %v1998 = vld [vmem:[%s1937 + $0x74] sm:$0x3]
  %v1999 = vld [vmem:[%s1937 + $0x7c] sm:$0x3]
  %v2000 = vld [vmem:[%s1937 + $0x84] sm:$0x3]
  %v2001 = vld [vmem:[%s1937 + $0x8c] sm:$0x3]
  %v2034 = vunpack.c.l.b16 %v1809
  %v2035 = vunpack.c.l.b16 %v1810
  %v2036 = vunpack.c.l.b16 %v1811
  %v2037 = vunpack.c.l.b16 %v1812
  %v2038 = vunpack.c.l.b16 %v1813
  %v2039 = vunpack.c.l.b16 %v1814
  %v2040 = vunpack.c.l.b16 %v1815
  %v2041 = vunpack.c.l.b16 %v1816
  %v2042 = vunpack.c.l.b16 %v1817
  %v2043 = vunpack.c.l.b16 %v1818
  %v2044 = vunpack.c.l.b16 %v1819
  %v2045 = vunpack.c.l.b16 %v1820
  %v2046 = vunpack.c.l.b16 %v1821
  %v2047 = vunpack.c.l.b16 %v1822
  %v2048 = vunpack.c.l.b16 %v1823
  %v2049 = vunpack.c.l.b16 %v1824
  %v2050 = vunpack.c.l.b16 %v1825
  %v2051 = vunpack.c.l.b16 %v1826
  %v2052 = vunpack.c.l.b16 %v1827
  %v2053 = vunpack.c.l.b16 %v1828
  %v2054 = vunpack.c.l.b16 %v1829
  %v2055 = vunpack.c.l.b16 %v1830
  %v2056 = vunpack.c.l.b16 %v1831
  %v2057 = vunpack.c.l.b16 %v1832
  %v2058 = vunpack.c.l.b16 %v1833
  %v2059 = vunpack.c.l.b16 %v1834
  %v2060 = vunpack.c.l.b16 %v1835
  %v2061 = vunpack.c.l.b16 %v1836
  %v2062 = vunpack.c.l.b16 %v1837
  %v2063 = vunpack.c.l.b16 %v1838
  %v2064 = vunpack.c.l.b16 %v1839
  %v2065 = vunpack.c.l.b16 %v1840
  %v2066 = vpack.c.b16 %v2035, %v2034
  %v2067 = vpack.c.b16 %v2037, %v2036
  %v2068 = vpack.c.b16 %v2039, %v2038
  %v2069 = vpack.c.b16 %v2041, %v2040
  %v2070 = vpack.c.b16 %v2043, %v2042
  %v2071 = vpack.c.b16 %v2045, %v2044
  %v2072 = vpack.c.b16 %v2047, %v2046
  %v2073 = vpack.c.b16 %v2049, %v2048
  %v2074 = vpack.c.b16 %v2051, %v2050
  %v2075 = vpack.c.b16 %v2053, %v2052
  %v2076 = vpack.c.b16 %v2055, %v2054
  %v2077 = vpack.c.b16 %v2057, %v2056
  %v2078 = vpack.c.b16 %v2059, %v2058
  %v2079 = vpack.c.b16 %v2061, %v2060
  %v2080 = vpack.c.b16 %v2063, %v2062
  %v2081 = vpack.c.b16 %v2065, %v2064
  %v2098 = vunpack.c.l.b16 %v1841
  %v2099 = vunpack.c.l.b16 %v1842
  %v2100 = vunpack.c.l.b16 %v1843
  %v2101 = vunpack.c.l.b16 %v1844
  %v2102 = vunpack.c.l.b16 %v1845
  %v2103 = vunpack.c.l.b16 %v1846
  %v2104 = vunpack.c.l.b16 %v1847
  %v2105 = vunpack.c.l.b16 %v1848
  %v2106 = vunpack.c.l.b16 %v1849
  %v2107 = vunpack.c.l.b16 %v1850
  %v2108 = vunpack.c.l.b16 %v1851
  %v2109 = vunpack.c.l.b16 %v1852
  %v2110 = vunpack.c.l.b16 %v1853
  %v2111 = vunpack.c.l.b16 %v1854
  %v2112 = vunpack.c.l.b16 %v1855
  %v2113 = vunpack.c.l.b16 %v1856
  %v2114 = vpack.c.b16 %v2035, %v2098
  %v2115 = vpack.c.b16 %v2037, %v2099
  %v2116 = vpack.c.b16 %v2039, %v2100
  %v2117 = vpack.c.b16 %v2041, %v2101
  %v2118 = vpack.c.b16 %v2043, %v2102
  %v2119 = vpack.c.b16 %v2045, %v2103
  %v2120 = vpack.c.b16 %v2047, %v2104
  %v2121 = vpack.c.b16 %v2049, %v2105
  %v2122 = vpack.c.b16 %v2051, %v2106
  %v2123 = vpack.c.b16 %v2053, %v2107
  %v2124 = vpack.c.b16 %v2055, %v2108
  %v2125 = vpack.c.b16 %v2057, %v2109
  %v2126 = vpack.c.b16 %v2059, %v2110
  %v2127 = vpack.c.b16 %v2061, %v2111
  %v2128 = vpack.c.b16 %v2063, %v2112
  %v2129 = vpack.c.b16 %v2065, %v2113
  %v2131 = vshrl.u32 %v2114, 16
  %v2133 = vshll.u32 %v2114, 16
  %v2135 = vrot.slane %v2133, 1
  %v2136 = vor.u32 %v2131, %v2135
  %v2138 = vshrl.u32 %v2115, 16
  %v2140 = vshll.u32 %v2115, 16
  %v2142 = vrot.slane %v2140, 1
  %v2143 = vor.u32 %v2138, %v2142
  %v2145 = vshrl.u32 %v2116, 16
  %v2147 = vshll.u32 %v2116, 16
  %v2149 = vrot.slane %v2147, 1
  %v2150 = vor.u32 %v2145, %v2149
  %v2152 = vshrl.u32 %v2117, 16
  %v2154 = vshll.u32 %v2117, 16
  %v2156 = vrot.slane %v2154, 1
  %v2157 = vor.u32 %v2152, %v2156
  %v2159 = vshrl.u32 %v2118, 16
  %v2161 = vshll.u32 %v2118, 16
  %v2163 = vrot.slane %v2161, 1
  %v2164 = vor.u32 %v2159, %v2163
  %v2166 = vshrl.u32 %v2119, 16
  %v2168 = vshll.u32 %v2119, 16
  %v2170 = vrot.slane %v2168, 1
  %v2171 = vor.u32 %v2166, %v2170
  %v2173 = vshrl.u32 %v2120, 16
  %v2175 = vshll.u32 %v2120, 16
  %v2177 = vrot.slane %v2175, 1
  %v2178 = vor.u32 %v2173, %v2177
  %v2180 = vshrl.u32 %v2121, 16
  %v2182 = vshll.u32 %v2121, 16
  %v2184 = vrot.slane %v2182, 1
  %v2185 = vor.u32 %v2180, %v2184
  %v2187 = vshrl.u32 %v2122, 16
  %v2189 = vshll.u32 %v2122, 16
  %v2191 = vrot.slane %v2189, 1
  %v2192 = vor.u32 %v2187, %v2191
  %v2194 = vshrl.u32 %v2123, 16
  %v2196 = vshll.u32 %v2123, 16
  %v2198 = vrot.slane %v2196, 1
  %v2199 = vor.u32 %v2194, %v2198
  %v2201 = vshrl.u32 %v2124, 16
  %v2203 = vshll.u32 %v2124, 16
  %v2205 = vrot.slane %v2203, 1
  %v2206 = vor.u32 %v2201, %v2205
  %v2208 = vshrl.u32 %v2125, 16
  %v2210 = vshll.u32 %v2125, 16
  %v2212 = vrot.slane %v2210, 1
  %v2213 = vor.u32 %v2208, %v2212
  %v2215 = vshrl.u32 %v2126, 16
  %v2217 = vshll.u32 %v2126, 16
  %v2219 = vrot.slane %v2217, 1
  %v2220 = vor.u32 %v2215, %v2219
  %v2222 = vshrl.u32 %v2127, 16
  %v2224 = vshll.u32 %v2127, 16
  %v2226 = vrot.slane %v2224, 1
  %v2227 = vor.u32 %v2222, %v2226
  %v2229 = vshrl.u32 %v2128, 16
  %v2231 = vshll.u32 %v2128, 16
  %v2233 = vrot.slane %v2231, 1
  %v2234 = vor.u32 %v2229, %v2233
  %v2236 = vshrl.u32 %v2129, 16
  %v2238 = vshll.u32 %v2129, 16
  %v2240 = vrot.slane %v2238, 1
  %v2241 = vor.u32 %v2236, %v2240
  %2242 = vrot.lane.b32.xlu0 %v2136, 8
  %v2243 = vpop.permute.xlu0 %2242
  %2244 = vrot.lane.b32.xlu0 %v2143, 8
  %v2245 = vpop.permute.xlu0 %2244
  %2246 = vrot.lane.b32.xlu0 %v2150, 8
  %v2247 = vpop.permute.xlu0 %2246
  %2248 = vrot.lane.b32.xlu0 %v2157, 8
  %v2249 = vpop.permute.xlu0 %2248
  %2250 = vrot.lane.b32.xlu0 %v2164, 8
  %v2251 = vpop.permute.xlu0 %2250
  %2252 = vrot.lane.b32.xlu0 %v2171, 8
  %v2253 = vpop.permute.xlu0 %2252
  %2254 = vrot.lane.b32.xlu0 %v2178, 8
  %v2255 = vpop.permute.xlu0 %2254
  %2256 = vrot.lane.b32.xlu0 %v2185, 8
  %v2257 = vpop.permute.xlu0 %2256
  %2258 = vrot.lane.b32.xlu0 %v2192, 8
  %v2259 = vpop.permute.xlu0 %2258
  %2260 = vrot.lane.b32.xlu0 %v2199, 8
  %v2261 = vpop.permute.xlu0 %2260
  %2262 = vrot.lane.b32.xlu0 %v2206, 8
  %v2263 = vpop.permute.xlu0 %2262
  %2264 = vrot.lane.b32.xlu0 %v2213, 8
  %v2265 = vpop.permute.xlu0 %2264
  %2266 = vrot.lane.b32.xlu0 %v2220, 8
  %v2267 = vpop.permute.xlu0 %2266
  %2268 = vrot.lane.b32.xlu0 %v2227, 8
  %v2269 = vpop.permute.xlu0 %2268
  %2270 = vrot.lane.b32.xlu0 %v2234, 8
  %v2271 = vpop.permute.xlu0 %2270
  %2272 = vrot.lane.b32.xlu0 %v2241, 8
  %v2273 = vpop.permute.xlu0 %2272
  %v2290 = vunpack.c.l.b16 %v1857
  %v2291 = vunpack.c.l.b16 %v1858
  %v2292 = vunpack.c.l.b16 %v1859
  %v2293 = vunpack.c.l.b16 %v1860
  %v2294 = vunpack.c.l.b16 %v1861
  %v2295 = vunpack.c.l.b16 %v1862
  %v2296 = vunpack.c.l.b16 %v1863
  %v2297 = vunpack.c.l.b16 %v1864
  %v2298 = vunpack.c.l.b16 %v1865
  %v2299 = vunpack.c.l.b16 %v1866
  %v2300 = vunpack.c.l.b16 %v1867
  %v2301 = vunpack.c.l.b16 %v1868
  %v2302 = vunpack.c.l.b16 %v1869
  %v2303 = vunpack.c.l.b16 %v1870
  %v2304 = vunpack.c.l.b16 %v1871
  %v2305 = vunpack.c.l.b16 %v1872
  %v2306 = vpack.c.b16 %v2290, %v2098
  %v2307 = vpack.c.b16 %v2291, %v2099
  %v2308 = vpack.c.b16 %v2292, %v2100
  %v2309 = vpack.c.b16 %v2293, %v2101
  %v2310 = vpack.c.b16 %v2294, %v2102
  %v2311 = vpack.c.b16 %v2295, %v2103
  %v2312 = vpack.c.b16 %v2296, %v2104
  %v2313 = vpack.c.b16 %v2297, %v2105
  %v2314 = vpack.c.b16 %v2298, %v2106
  %v2315 = vpack.c.b16 %v2299, %v2107
  %v2316 = vpack.c.b16 %v2300, %v2108
  %v2317 = vpack.c.b16 %v2301, %v2109
  %v2318 = vpack.c.b16 %v2302, %v2110
  %v2319 = vpack.c.b16 %v2303, %v2111
  %v2320 = vpack.c.b16 %v2304, %v2112
  %v2321 = vpack.c.b16 %v2305, %v2113
  %v2322 = vrot.slane %v2306, 1
  %v2323 = vrot.slane %v2307, 1
  %v2324 = vrot.slane %v2308, 1
  %v2325 = vrot.slane %v2309, 1
  %v2326 = vrot.slane %v2310, 1
  %v2327 = vrot.slane %v2311, 1
  %v2328 = vrot.slane %v2312, 1
  %v2329 = vrot.slane %v2313, 1
  %v2330 = vrot.slane %v2314, 1
  %v2331 = vrot.slane %v2315, 1
  %v2332 = vrot.slane %v2316, 1
  %v2333 = vrot.slane %v2317, 1
  %v2334 = vrot.slane %v2318, 1
  %v2335 = vrot.slane %v2319, 1
  %v2336 = vrot.slane %v2320, 1
  %v2337 = vrot.slane %v2321, 1
  %2338 = vrot.lane.b32.xlu0 %v2322, 16
  %v2339 = vpop.permute.xlu0 %2338
  %2340 = vrot.lane.b32.xlu0 %v2323, 16
  %v2341 = vpop.permute.xlu0 %2340
  %2342 = vrot.lane.b32.xlu0 %v2324, 16
  %v2343 = vpop.permute.xlu0 %2342
  %2344 = vrot.lane.b32.xlu0 %v2325, 16
  %v2345 = vpop.permute.xlu0 %2344
  %2346 = vrot.lane.b32.xlu0 %v2326, 16
  %v2347 = vpop.permute.xlu0 %2346
  %2348 = vrot.lane.b32.xlu0 %v2327, 16
  %v2349 = vpop.permute.xlu0 %2348
  %2350 = vrot.lane.b32.xlu0 %v2328, 16
  %v2351 = vpop.permute.xlu0 %2350
  %2352 = vrot.lane.b32.xlu0 %v2329, 16
  %v2353 = vpop.permute.xlu0 %2352
  %2354 = vrot.lane.b32.xlu0 %v2330, 16
  %v2355 = vpop.permute.xlu0 %2354
  %2356 = vrot.lane.b32.xlu0 %v2331, 16
  %v2357 = vpop.permute.xlu0 %2356
  %2358 = vrot.lane.b32.xlu0 %v2332, 16
  %v2359 = vpop.permute.xlu0 %2358
  %2360 = vrot.lane.b32.xlu0 %v2333, 16
  %v2361 = vpop.permute.xlu0 %2360
  %2362 = vrot.lane.b32.xlu0 %v2334, 16
  %v2363 = vpop.permute.xlu0 %2362
  %2364 = vrot.lane.b32.xlu0 %v2335, 16
  %v2365 = vpop.permute.xlu0 %2364
  %2366 = vrot.lane.b32.xlu0 %v2336, 16
  %v2367 = vpop.permute.xlu0 %2366
  %2368 = vrot.lane.b32.xlu0 %v2337, 16
  %v2369 = vpop.permute.xlu0 %2368
  %v2402 = vunpack.c.l.b16 %v1873
  %v2403 = vunpack.c.l.b16 %v1874
  %v2404 = vunpack.c.l.b16 %v1875
  %v2405 = vunpack.c.l.b16 %v1876
  %v2406 = vunpack.c.l.b16 %v1877
  %v2407 = vunpack.c.l.b16 %v1878
  %v2408 = vunpack.c.l.b16 %v1879
  %v2409 = vunpack.c.l.b16 %v1880
  %v2410 = vunpack.c.l.b16 %v1881
  %v2411 = vunpack.c.l.b16 %v1882
  %v2412 = vunpack.c.l.b16 %v1883
  %v2413 = vunpack.c.l.b16 %v1884
  %v2414 = vunpack.c.l.b16 %v1885
  %v2415 = vunpack.c.l.b16 %v1886
  %v2416 = vunpack.c.l.b16 %v1887
  %v2417 = vunpack.c.l.b16 %v1888
  %v2418 = vunpack.c.l.b16 %v1889
  %v2419 = vunpack.c.l.b16 %v1890
  %v2420 = vunpack.c.l.b16 %v1891
  %v2421 = vunpack.c.l.b16 %v1892
  %v2422 = vunpack.c.l.b16 %v1893
  %v2423 = vunpack.c.l.b16 %v1894
  %v2424 = vunpack.c.l.b16 %v1895
  %v2425 = vunpack.c.l.b16 %v1896
  %v2426 = vunpack.c.l.b16 %v1897
  %v2427 = vunpack.c.l.b16 %v1898
  %v2428 = vunpack.c.l.b16 %v1899
  %v2429 = vunpack.c.l.b16 %v1900
  %v2430 = vunpack.c.l.b16 %v1901
  %v2431 = vunpack.c.l.b16 %v1902
  %v2432 = vunpack.c.l.b16 %v1903
  %v2433 = vunpack.c.l.b16 %v1904
  %v2434 = vpack.c.b16 %v2403, %v2402
  %v2435 = vpack.c.b16 %v2405, %v2404
  %v2436 = vpack.c.b16 %v2407, %v2406
  %v2437 = vpack.c.b16 %v2409, %v2408
  %v2438 = vpack.c.b16 %v2411, %v2410
  %v2439 = vpack.c.b16 %v2413, %v2412
  %v2440 = vpack.c.b16 %v2415, %v2414
  %v2441 = vpack.c.b16 %v2417, %v2416
  %v2442 = vpack.c.b16 %v2419, %v2418
  %v2443 = vpack.c.b16 %v2421, %v2420
  %v2444 = vpack.c.b16 %v2423, %v2422
  %v2445 = vpack.c.b16 %v2425, %v2424
  %v2446 = vpack.c.b16 %v2427, %v2426
  %v2447 = vpack.c.b16 %v2429, %v2428
  %v2448 = vpack.c.b16 %v2431, %v2430
  %v2449 = vpack.c.b16 %v2433, %v2432
  %2450 = vrot.lane.b32.xlu0 %v2434, 24
  %v2451 = vpop.permute.xlu0 %2450
  %2452 = vrot.lane.b32.xlu0 %v2435, 24
  %v2453 = vpop.permute.xlu0 %2452
  %2454 = vrot.lane.b32.xlu0 %v2436, 24
  %v2455 = vpop.permute.xlu0 %2454
  %2456 = vrot.lane.b32.xlu0 %v2437, 24
  %v2457 = vpop.permute.xlu0 %2456
  %2458 = vrot.lane.b32.xlu0 %v2438, 24
  %v2459 = vpop.permute.xlu0 %2458
  %2460 = vrot.lane.b32.xlu0 %v2439, 24
  %v2461 = vpop.permute.xlu0 %2460
  %2462 = vrot.lane.b32.xlu0 %v2440, 24
  %v2463 = vpop.permute.xlu0 %2462
  %2464 = vrot.lane.b32.xlu0 %v2441, 24
  %v2465 = vpop.permute.xlu0 %2464
  %2466 = vrot.lane.b32.xlu0 %v2442, 24
  %v2467 = vpop.permute.xlu0 %2466
  %2468 = vrot.lane.b32.xlu0 %v2443, 24
  %v2469 = vpop.permute.xlu0 %2468
  %2470 = vrot.lane.b32.xlu0 %v2444, 24
  %v2471 = vpop.permute.xlu0 %2470
  %2472 = vrot.lane.b32.xlu0 %v2445, 24
  %v2473 = vpop.permute.xlu0 %2472
  %2474 = vrot.lane.b32.xlu0 %v2446, 24
  %v2475 = vpop.permute.xlu0 %2474
  %2476 = vrot.lane.b32.xlu0 %v2447, 24
  %v2477 = vpop.permute.xlu0 %2476
  %2478 = vrot.lane.b32.xlu0 %v2448, 24
  %v2479 = vpop.permute.xlu0 %2478
  %2480 = vrot.lane.b32.xlu0 %v2449, 24
  %v2481 = vpop.permute.xlu0 %2480
  %v2498 = vunpack.c.l.b16 %v1905
  %v2499 = vunpack.c.l.b16 %v1906
  %v2500 = vunpack.c.l.b16 %v1907
  %v2501 = vunpack.c.l.b16 %v1908
  %v2502 = vunpack.c.l.b16 %v1909
  %v2503 = vunpack.c.l.b16 %v1910
  %v2504 = vunpack.c.l.b16 %v1911
  %v2505 = vunpack.c.l.b16 %v1912
  %v2506 = vunpack.c.l.b16 %v1913
  %v2507 = vunpack.c.l.b16 %v1914
  %v2508 = vunpack.c.l.b16 %v1915
  %v2509 = vunpack.c.l.b16 %v1916
  %v2510 = vunpack.c.l.b16 %v1917
  %v2511 = vunpack.c.l.b16 %v1918
  %v2512 = vunpack.c.l.b16 %v1919
  %v2513 = vunpack.c.l.b16 %v1920
  %v2514 = vpack.c.b16 %v2403, %v2498
  %v2515 = vpack.c.b16 %v2405, %v2499
  %v2516 = vpack.c.b16 %v2407, %v2500
  %v2517 = vpack.c.b16 %v2409, %v2501
  %v2518 = vpack.c.b16 %v2411, %v2502
  %v2519 = vpack.c.b16 %v2413, %v2503
  %v2520 = vpack.c.b16 %v2415, %v2504
  %v2521 = vpack.c.b16 %v2417, %v2505
  %v2522 = vpack.c.b16 %v2419, %v2506
  %v2523 = vpack.c.b16 %v2421, %v2507
  %v2524 = vpack.c.b16 %v2423, %v2508
  %v2525 = vpack.c.b16 %v2425, %v2509
  %v2526 = vpack.c.b16 %v2427, %v2510
  %v2527 = vpack.c.b16 %v2429, %v2511
  %v2528 = vpack.c.b16 %v2431, %v2512
  %v2529 = vpack.c.b16 %v2433, %v2513
  %v2531 = vshrl.u32 %v2514, 16
  %v2533 = vshll.u32 %v2514, 16
  %v2535 = vrot.slane %v2533, 1
  %v2536 = vor.u32 %v2531, %v2535
  %v2538 = vshrl.u32 %v2515, 16
  %v2540 = vshll.u32 %v2515, 16
  %v2542 = vrot.slane %v2540, 1
  %v2543 = vor.u32 %v2538, %v2542
  %v2545 = vshrl.u32 %v2516, 16
  %v2547 = vshll.u32 %v2516, 16
  %v2549 = vrot.slane %v2547, 1
  %v2550 = vor.u32 %v2545, %v2549
  %v2552 = vshrl.u32 %v2517, 16
  %v2554 = vshll.u32 %v2517, 16
  %v2556 = vrot.slane %v2554, 1
  %v2557 = vor.u32 %v2552, %v2556
  %v2559 = vshrl.u32 %v2518, 16
  %v2561 = vshll.u32 %v2518, 16
  %v2563 = vrot.slane %v2561, 1
  %v2564 = vor.u32 %v2559, %v2563
  %v2566 = vshrl.u32 %v2519, 16
  %v2568 = vshll.u32 %v2519, 16
  %v2570 = vrot.slane %v2568, 1
  %v2571 = vor.u32 %v2566, %v2570
  %v2573 = vshrl.u32 %v2520, 16
  %v2575 = vshll.u32 %v2520, 16
  %v2577 = vrot.slane %v2575, 1
  %v2578 = vor.u32 %v2573, %v2577
  %v2580 = vshrl.u32 %v2521, 16
  %v2582 = vshll.u32 %v2521, 16
  %v2584 = vrot.slane %v2582, 1
  %v2585 = vor.u32 %v2580, %v2584
  %v2587 = vshrl.u32 %v2522, 16
  %v2589 = vshll.u32 %v2522, 16
  %v2591 = vrot.slane %v2589, 1
  %v2592 = vor.u32 %v2587, %v2591
  %v2594 = vshrl.u32 %v2523, 16
  %v2596 = vshll.u32 %v2523, 16
  %v2598 = vrot.slane %v2596, 1
  %v2599 = vor.u32 %v2594, %v2598
  %v2601 = vshrl.u32 %v2524, 16
  %v2603 = vshll.u32 %v2524, 16
  %v2605 = vrot.slane %v2603, 1
  %v2606 = vor.u32 %v2601, %v2605
  %v2608 = vshrl.u32 %v2525, 16
  %v2610 = vshll.u32 %v2525, 16
  %v2612 = vrot.slane %v2610, 1
  %v2613 = vor.u32 %v2608, %v2612
  %v2615 = vshrl.u32 %v2526, 16
  %v2617 = vshll.u32 %v2526, 16
  %v2619 = vrot.slane %v2617, 1
  %v2620 = vor.u32 %v2615, %v2619
  %v2622 = vshrl.u32 %v2527, 16
  %v2624 = vshll.u32 %v2527, 16
  %v2626 = vrot.slane %v2624, 1
  %v2627 = vor.u32 %v2622, %v2626
  %v2629 = vshrl.u32 %v2528, 16
  %v2631 = vshll.u32 %v2528, 16
  %v2633 = vrot.slane %v2631, 1
  %v2634 = vor.u32 %v2629, %v2633
  %v2636 = vshrl.u32 %v2529, 16
  %v2638 = vshll.u32 %v2529, 16
  %v2640 = vrot.slane %v2638, 1
  %v2641 = vor.u32 %v2636, %v2640
  %2642 = vrot.lane.b32.xlu0 %v2536, 32
  %v2643 = vpop.permute.xlu0 %2642
  %2644 = vrot.lane.b32.xlu0 %v2543, 32
  %v2645 = vpop.permute.xlu0 %2644
  %2646 = vrot.lane.b32.xlu0 %v2550, 32
  %v2647 = vpop.permute.xlu0 %2646
  %2648 = vrot.lane.b32.xlu0 %v2557, 32
  %v2649 = vpop.permute.xlu0 %2648
  %2650 = vrot.lane.b32.xlu0 %v2564, 32
  %v2651 = vpop.permute.xlu0 %2650
  %2652 = vrot.lane.b32.xlu0 %v2571, 32
  %v2653 = vpop.permute.xlu0 %2652
  %2654 = vrot.lane.b32.xlu0 %v2578, 32
  %v2655 = vpop.permute.xlu0 %2654
  %2656 = vrot.lane.b32.xlu0 %v2585, 32
  %v2657 = vpop.permute.xlu0 %2656
  %2658 = vrot.lane.b32.xlu0 %v2592, 32
  %v2659 = vpop.permute.xlu0 %2658
  %2660 = vrot.lane.b32.xlu0 %v2599, 32
  %v2661 = vpop.permute.xlu0 %2660
  %2662 = vrot.lane.b32.xlu0 %v2606, 32
  %v2663 = vpop.permute.xlu0 %2662
  %2664 = vrot.lane.b32.xlu0 %v2613, 32
  %v2665 = vpop.permute.xlu0 %2664
  %2666 = vrot.lane.b32.xlu0 %v2620, 32
  %v2667 = vpop.permute.xlu0 %2666
  %2668 = vrot.lane.b32.xlu0 %v2627, 32
  %v2669 = vpop.permute.xlu0 %2668
  %2670 = vrot.lane.b32.xlu0 %v2634, 32
  %v2671 = vpop.permute.xlu0 %2670
  %2672 = vrot.lane.b32.xlu0 %v2641, 32
  %v2673 = vpop.permute.xlu0 %2672
  %v2690 = vunpack.c.l.b16 %v1921
  %v2691 = vunpack.c.l.b16 %v1922
  %v2692 = vunpack.c.l.b16 %v1923
  %v2693 = vunpack.c.l.b16 %v1924
  %v2694 = vunpack.c.l.b16 %v1925
  %v2695 = vunpack.c.l.b16 %v1926
  %v2696 = vunpack.c.l.b16 %v1927
  %v2697 = vunpack.c.l.b16 %v1928
  %v2698 = vunpack.c.l.b16 %v1929
  %v2699 = vunpack.c.l.b16 %v1930
  %v2700 = vunpack.c.l.b16 %v1931
  %v2701 = vunpack.c.l.b16 %v1932
  %v2702 = vunpack.c.l.b16 %v1933
  %v2703 = vunpack.c.l.b16 %v1934
  %v2704 = vunpack.c.l.b16 %v1935
  %v2705 = vunpack.c.l.b16 %v1936
  %v2706 = vpack.c.b16 %v2690, %v2498
  %v2707 = vpack.c.b16 %v2691, %v2499
  %v2708 = vpack.c.b16 %v2692, %v2500
  %v2709 = vpack.c.b16 %v2693, %v2501
  %v2710 = vpack.c.b16 %v2694, %v2502
  %v2711 = vpack.c.b16 %v2695, %v2503
  %v2712 = vpack.c.b16 %v2696, %v2504
  %v2713 = vpack.c.b16 %v2697, %v2505
  %v2714 = vpack.c.b16 %v2698, %v2506
  %v2715 = vpack.c.b16 %v2699, %v2507
  %v2716 = vpack.c.b16 %v2700, %v2508
  %v2717 = vpack.c.b16 %v2701, %v2509
  %v2718 = vpack.c.b16 %v2702, %v2510
  %v2719 = vpack.c.b16 %v2703, %v2511
  %v2720 = vpack.c.b16 %v2704, %v2512
  %v2721 = vpack.c.b16 %v2705, %v2513
  %v2722 = vrot.slane %v2706, 1
  %v2723 = vrot.slane %v2707, 1
  %v2724 = vrot.slane %v2708, 1
  %v2725 = vrot.slane %v2709, 1
  %v2726 = vrot.slane %v2710, 1
  %v2727 = vrot.slane %v2711, 1
  %v2728 = vrot.slane %v2712, 1
  %v2729 = vrot.slane %v2713, 1
  %v2730 = vrot.slane %v2714, 1
  %v2731 = vrot.slane %v2715, 1
  %v2732 = vrot.slane %v2716, 1
  %v2733 = vrot.slane %v2717, 1
  %v2734 = vrot.slane %v2718, 1
  %v2735 = vrot.slane %v2719, 1
  %v2736 = vrot.slane %v2720, 1
  %v2737 = vrot.slane %v2721, 1
  %2738 = vrot.lane.b32.xlu0 %v2722, 40
  %v2739 = vpop.permute.xlu0 %2738
  %2740 = vrot.lane.b32.xlu0 %v2723, 40
  %v2741 = vpop.permute.xlu0 %2740
  %2742 = vrot.lane.b32.xlu0 %v2724, 40
  %v2743 = vpop.permute.xlu0 %2742
  %2744 = vrot.lane.b32.xlu0 %v2725, 40
  %v2745 = vpop.permute.xlu0 %2744
  %2746 = vrot.lane.b32.xlu0 %v2726, 40
  %v2747 = vpop.permute.xlu0 %2746
  %2748 = vrot.lane.b32.xlu0 %v2727, 40
  %v2749 = vpop.permute.xlu0 %2748
  %2750 = vrot.lane.b32.xlu0 %v2728, 40
  %v2751 = vpop.permute.xlu0 %2750
  %2752 = vrot.lane.b32.xlu0 %v2729, 40
  %v2753 = vpop.permute.xlu0 %2752
  %2754 = vrot.lane.b32.xlu0 %v2730, 40
  %v2755 = vpop.permute.xlu0 %2754
  %2756 = vrot.lane.b32.xlu0 %v2731, 40
  %v2757 = vpop.permute.xlu0 %2756
  %2758 = vrot.lane.b32.xlu0 %v2732, 40
  %v2759 = vpop.permute.xlu0 %2758
  %2760 = vrot.lane.b32.xlu0 %v2733, 40
  %v2761 = vpop.permute.xlu0 %2760
  %2762 = vrot.lane.b32.xlu0 %v2734, 40
  %v2763 = vpop.permute.xlu0 %2762
  %2764 = vrot.lane.b32.xlu0 %v2735, 40
  %v2765 = vpop.permute.xlu0 %2764
  %2766 = vrot.lane.b32.xlu0 %v2736, 40
  %v2767 = vpop.permute.xlu0 %2766
  %2768 = vrot.lane.b32.xlu0 %v2737, 40
  %v2769 = vpop.permute.xlu0 %2768
  %v2802 = vunpack.c.l.b16 %v1938
  %v2803 = vunpack.c.l.b16 %v1939
  %v2804 = vunpack.c.l.b16 %v1940
  %v2805 = vunpack.c.l.b16 %v1941
  %v2806 = vunpack.c.l.b16 %v1942
  %v2807 = vunpack.c.l.b16 %v1943
  %v2808 = vunpack.c.l.b16 %v1944
  %v2809 = vunpack.c.l.b16 %v1945
  %v2810 = vunpack.c.l.b16 %v1946
  %v2811 = vunpack.c.l.b16 %v1947
  %v2812 = vunpack.c.l.b16 %v1948
  %v2813 = vunpack.c.l.b16 %v1949
  %v2814 = vunpack.c.l.b16 %v1950
  %v2815 = vunpack.c.l.b16 %v1951
  %v2816 = vunpack.c.l.b16 %v1952
  %v2817 = vunpack.c.l.b16 %v1953
  %v2818 = vunpack.c.l.b16 %v1954
  %v2819 = vunpack.c.l.b16 %v1955
  %v2820 = vunpack.c.l.b16 %v1956
  %v2821 = vunpack.c.l.b16 %v1957
  %v2822 = vunpack.c.l.b16 %v1958
  %v2823 = vunpack.c.l.b16 %v1959
  %v2824 = vunpack.c.l.b16 %v1960
  %v2825 = vunpack.c.l.b16 %v1961
  %v2826 = vunpack.c.l.b16 %v1962
  %v2827 = vunpack.c.l.b16 %v1963
  %v2828 = vunpack.c.l.b16 %v1964
  %v2829 = vunpack.c.l.b16 %v1965
  %v2830 = vunpack.c.l.b16 %v1966
  %v2831 = vunpack.c.l.b16 %v1967
  %v2832 = vunpack.c.l.b16 %v1968
  %v2833 = vunpack.c.l.b16 %v1969
  %v2834 = vpack.c.b16 %v2803, %v2802
  %v2835 = vpack.c.b16 %v2805, %v2804
  %v2836 = vpack.c.b16 %v2807, %v2806
  %v2837 = vpack.c.b16 %v2809, %v2808
  %v2838 = vpack.c.b16 %v2811, %v2810
  %v2839 = vpack.c.b16 %v2813, %v2812
  %v2840 = vpack.c.b16 %v2815, %v2814
  %v2841 = vpack.c.b16 %v2817, %v2816
  %v2842 = vpack.c.b16 %v2819, %v2818
  %v2843 = vpack.c.b16 %v2821, %v2820
  %v2844 = vpack.c.b16 %v2823, %v2822
  %v2845 = vpack.c.b16 %v2825, %v2824
  %v2846 = vpack.c.b16 %v2827, %v2826
  %v2847 = vpack.c.b16 %v2829, %v2828
  %v2848 = vpack.c.b16 %v2831, %v2830
  %v2849 = vpack.c.b16 %v2833, %v2832
  %2850 = vrot.lane.b32.xlu0 %v2834, 48
  %v2851 = vpop.permute.xlu0 %2850
  %2852 = vrot.lane.b32.xlu0 %v2835, 48
  %v2853 = vpop.permute.xlu0 %2852
  %2854 = vrot.lane.b32.xlu0 %v2836, 48
  %v2855 = vpop.permute.xlu0 %2854
  %2856 = vrot.lane.b32.xlu0 %v2837, 48
  %v2857 = vpop.permute.xlu0 %2856
  %2858 = vrot.lane.b32.xlu0 %v2838, 48
  %v2859 = vpop.permute.xlu0 %2858
  %2860 = vrot.lane.b32.xlu0 %v2839, 48
  %v2861 = vpop.permute.xlu0 %2860
  %2862 = vrot.lane.b32.xlu0 %v2840, 48
  %v2863 = vpop.permute.xlu0 %2862
  %2864 = vrot.lane.b32.xlu0 %v2841, 48
  %v2865 = vpop.permute.xlu0 %2864
  %2866 = vrot.lane.b32.xlu0 %v2842, 48
  %v2867 = vpop.permute.xlu0 %2866
  %2868 = vrot.lane.b32.xlu0 %v2843, 48
  %v2869 = vpop.permute.xlu0 %2868
  %2870 = vrot.lane.b32.xlu0 %v2844, 48
  %v2871 = vpop.permute.xlu0 %2870
  %2872 = vrot.lane.b32.xlu0 %v2845, 48
  %v2873 = vpop.permute.xlu0 %2872
  %2874 = vrot.lane.b32.xlu0 %v2846, 48
  %v2875 = vpop.permute.xlu0 %2874
  %2876 = vrot.lane.b32.xlu0 %v2847, 48
  %v2877 = vpop.permute.xlu0 %2876
  %2878 = vrot.lane.b32.xlu0 %v2848, 48
  %v2879 = vpop.permute.xlu0 %2878
  %2880 = vrot.lane.b32.xlu0 %v2849, 48
  %v2881 = vpop.permute.xlu0 %2880
  %v2898 = vunpack.c.l.b16 %v1970
  %v2899 = vunpack.c.l.b16 %v1971
  %v2900 = vunpack.c.l.b16 %v1972
  %v2901 = vunpack.c.l.b16 %v1973
  %v2902 = vunpack.c.l.b16 %v1974
  %v2903 = vunpack.c.l.b16 %v1975
  %v2904 = vunpack.c.l.b16 %v1976
  %v2905 = vunpack.c.l.b16 %v1977
  %v2906 = vunpack.c.l.b16 %v1978
  %v2907 = vunpack.c.l.b16 %v1979
  %v2908 = vunpack.c.l.b16 %v1980
  %v2909 = vunpack.c.l.b16 %v1981
  %v2910 = vunpack.c.l.b16 %v1982
  %v2911 = vunpack.c.l.b16 %v1983
  %v2912 = vunpack.c.l.b16 %v1984
  %v2913 = vunpack.c.l.b16 %v1985
  %v2914 = vpack.c.b16 %v2803, %v2898
  %v2915 = vpack.c.b16 %v2805, %v2899
  %v2916 = vpack.c.b16 %v2807, %v2900
  %v2917 = vpack.c.b16 %v2809, %v2901
  %v2918 = vpack.c.b16 %v2811, %v2902
  %v2919 = vpack.c.b16 %v2813, %v2903
  %v2920 = vpack.c.b16 %v2815, %v2904
  %v2921 = vpack.c.b16 %v2817, %v2905
  %v2922 = vpack.c.b16 %v2819, %v2906
  %v2923 = vpack.c.b16 %v2821, %v2907
  %v2924 = vpack.c.b16 %v2823, %v2908
  %v2925 = vpack.c.b16 %v2825, %v2909
  %v2926 = vpack.c.b16 %v2827, %v2910
  %v2927 = vpack.c.b16 %v2829, %v2911
  %v2928 = vpack.c.b16 %v2831, %v2912
  %v2929 = vpack.c.b16 %v2833, %v2913
  %v2931 = vshrl.u32 %v2914, 16
  %v2933 = vshll.u32 %v2914, 16
  %v2935 = vrot.slane %v2933, 1
  %v2936 = vor.u32 %v2931, %v2935
  %v2938 = vshrl.u32 %v2915, 16
  %v2940 = vshll.u32 %v2915, 16
  %v2942 = vrot.slane %v2940, 1
  %v2943 = vor.u32 %v2938, %v2942
  %v2945 = vshrl.u32 %v2916, 16
  %v2947 = vshll.u32 %v2916, 16
  %v2949 = vrot.slane %v2947, 1
  %v2950 = vor.u32 %v2945, %v2949
  %v2952 = vshrl.u32 %v2917, 16
  %v2954 = vshll.u32 %v2917, 16
  %v2956 = vrot.slane %v2954, 1
  %v2957 = vor.u32 %v2952, %v2956
  %v2959 = vshrl.u32 %v2918, 16
  %v2961 = vshll.u32 %v2918, 16
  %v2963 = vrot.slane %v2961, 1
  %v2964 = vor.u32 %v2959, %v2963
  %v2966 = vshrl.u32 %v2919, 16
  %v2968 = vshll.u32 %v2919, 16
  %v2970 = vrot.slane %v2968, 1
  %v2971 = vor.u32 %v2966, %v2970
  %v2973 = vshrl.u32 %v2920, 16
  %v2975 = vshll.u32 %v2920, 16
  %v2977 = vrot.slane %v2975, 1
  %v2978 = vor.u32 %v2973, %v2977
  %v2980 = vshrl.u32 %v2921, 16
  %v2982 = vshll.u32 %v2921, 16
  %v2984 = vrot.slane %v2982, 1
  %v2985 = vor.u32 %v2980, %v2984
  %v2987 = vshrl.u32 %v2922, 16
  %v2989 = vshll.u32 %v2922, 16
  %v2991 = vrot.slane %v2989, 1
  %v2992 = vor.u32 %v2987, %v2991
  %v2994 = vshrl.u32 %v2923, 16
  %v2996 = vshll.u32 %v2923, 16
  %v2998 = vrot.slane %v2996, 1
  %v2999 = vor.u32 %v2994, %v2998
  %v3001 = vshrl.u32 %v2924, 16
  %v3003 = vshll.u32 %v2924, 16
  %v3005 = vrot.slane %v3003, 1
  %v3006 = vor.u32 %v3001, %v3005
  %v3008 = vshrl.u32 %v2925, 16
  %v3010 = vshll.u32 %v2925, 16
  %v3012 = vrot.slane %v3010, 1
  %v3013 = vor.u32 %v3008, %v3012
  %v3015 = vshrl.u32 %v2926, 16
  %v3017 = vshll.u32 %v2926, 16
  %v3019 = vrot.slane %v3017, 1
  %v3020 = vor.u32 %v3015, %v3019
  %v3022 = vshrl.u32 %v2927, 16
  %v3024 = vshll.u32 %v2927, 16
  %v3026 = vrot.slane %v3024, 1
  %v3027 = vor.u32 %v3022, %v3026
  %v3029 = vshrl.u32 %v2928, 16
  %v3031 = vshll.u32 %v2928, 16
  %v3033 = vrot.slane %v3031, 1
  %v3034 = vor.u32 %v3029, %v3033
  %v3036 = vshrl.u32 %v2929, 16
  %v3038 = vshll.u32 %v2929, 16
  %v3040 = vrot.slane %v3038, 1
  %v3041 = vor.u32 %v3036, %v3040
  %3042 = vrot.lane.b32.xlu0 %v2936, 56
  %v3043 = vpop.permute.xlu0 %3042
  %3044 = vrot.lane.b32.xlu0 %v2943, 56
  %v3045 = vpop.permute.xlu0 %3044
  %3046 = vrot.lane.b32.xlu0 %v2950, 56
  %v3047 = vpop.permute.xlu0 %3046
  %3048 = vrot.lane.b32.xlu0 %v2957, 56
  %v3049 = vpop.permute.xlu0 %3048
  %3050 = vrot.lane.b32.xlu0 %v2964, 56
  %v3051 = vpop.permute.xlu0 %3050
  %3052 = vrot.lane.b32.xlu0 %v2971, 56
  %v3053 = vpop.permute.xlu0 %3052
  %3054 = vrot.lane.b32.xlu0 %v2978, 56
  %v3055 = vpop.permute.xlu0 %3054
  %3056 = vrot.lane.b32.xlu0 %v2985, 56
  %v3057 = vpop.permute.xlu0 %3056
  %3058 = vrot.lane.b32.xlu0 %v2992, 56
  %v3059 = vpop.permute.xlu0 %3058
  %3060 = vrot.lane.b32.xlu0 %v2999, 56
  %v3061 = vpop.permute.xlu0 %3060
  %3062 = vrot.lane.b32.xlu0 %v3006, 56
  %v3063 = vpop.permute.xlu0 %3062
  %3064 = vrot.lane.b32.xlu0 %v3013, 56
  %v3065 = vpop.permute.xlu0 %3064
  %3066 = vrot.lane.b32.xlu0 %v3020, 56
  %v3067 = vpop.permute.xlu0 %3066
  %3068 = vrot.lane.b32.xlu0 %v3027, 56
  %v3069 = vpop.permute.xlu0 %3068
  %3070 = vrot.lane.b32.xlu0 %v3034, 56
  %v3071 = vpop.permute.xlu0 %3070
  %3072 = vrot.lane.b32.xlu0 %v3041, 56
  %v3073 = vpop.permute.xlu0 %3072
  %v3090 = vunpack.c.l.b16 %v1986
  %v3091 = vunpack.c.l.b16 %v1987
  %v3092 = vunpack.c.l.b16 %v1988
  %v3093 = vunpack.c.l.b16 %v1989
  %v3094 = vunpack.c.l.b16 %v1990
  %v3095 = vunpack.c.l.b16 %v1991
  %v3096 = vunpack.c.l.b16 %v1992
  %v3097 = vunpack.c.l.b16 %v1993
  %v3098 = vunpack.c.l.b16 %v1994
  %v3099 = vunpack.c.l.b16 %v1995
  %v3100 = vunpack.c.l.b16 %v1996
  %v3101 = vunpack.c.l.b16 %v1997
  %v3102 = vunpack.c.l.b16 %v1998
  %v3103 = vunpack.c.l.b16 %v1999
  %v3104 = vunpack.c.l.b16 %v2000
  %v3105 = vunpack.c.l.b16 %v2001
  %v3106 = vpack.c.b16 %v3090, %v2898
  %v3107 = vpack.c.b16 %v3091, %v2899
  %v3108 = vpack.c.b16 %v3092, %v2900
  %v3109 = vpack.c.b16 %v3093, %v2901
  %v3110 = vpack.c.b16 %v3094, %v2902
  %v3111 = vpack.c.b16 %v3095, %v2903
  %v3112 = vpack.c.b16 %v3096, %v2904
  %v3113 = vpack.c.b16 %v3097, %v2905
  %v3114 = vpack.c.b16 %v3098, %v2906
  %v3115 = vpack.c.b16 %v3099, %v2907
  %v3116 = vpack.c.b16 %v3100, %v2908
  %v3117 = vpack.c.b16 %v3101, %v2909
  %v3118 = vpack.c.b16 %v3102, %v2910
  %v3119 = vpack.c.b16 %v3103, %v2911
  %v3120 = vpack.c.b16 %v3104, %v2912
  %v3121 = vpack.c.b16 %v3105, %v2913
  %v3122 = vrot.slane %v3106, 1
  %v3123 = vrot.slane %v3107, 1
  %v3124 = vrot.slane %v3108, 1
  %v3125 = vrot.slane %v3109, 1
  %v3126 = vrot.slane %v3110, 1
  %v3127 = vrot.slane %v3111, 1
  %v3128 = vrot.slane %v3112, 1
  %v3129 = vrot.slane %v3113, 1
  %v3130 = vrot.slane %v3114, 1
  %v3131 = vrot.slane %v3115, 1
  %v3132 = vrot.slane %v3116, 1
  %v3133 = vrot.slane %v3117, 1
  %v3134 = vrot.slane %v3118, 1
  %v3135 = vrot.slane %v3119, 1
  %v3136 = vrot.slane %v3120, 1
  %v3137 = vrot.slane %v3121, 1
  %3138 = vrot.lane.b32.xlu0 %v3122, 64
  %v3139 = vpop.permute.xlu0 %3138
  %3140 = vrot.lane.b32.xlu0 %v3123, 64
  %v3141 = vpop.permute.xlu0 %3140
  %3142 = vrot.lane.b32.xlu0 %v3124, 64
  %v3143 = vpop.permute.xlu0 %3142
  %3144 = vrot.lane.b32.xlu0 %v3125, 64
  %v3145 = vpop.permute.xlu0 %3144
  %3146 = vrot.lane.b32.xlu0 %v3126, 64
  %v3147 = vpop.permute.xlu0 %3146
  %3148 = vrot.lane.b32.xlu0 %v3127, 64
  %v3149 = vpop.permute.xlu0 %3148
  %3150 = vrot.lane.b32.xlu0 %v3128, 64
  %v3151 = vpop.permute.xlu0 %3150
  %3152 = vrot.lane.b32.xlu0 %v3129, 64
  %v3153 = vpop.permute.xlu0 %3152
  %3154 = vrot.lane.b32.xlu0 %v3130, 64
  %v3155 = vpop.permute.xlu0 %3154
  %3156 = vrot.lane.b32.xlu0 %v3131, 64
  %v3157 = vpop.permute.xlu0 %3156
  %3158 = vrot.lane.b32.xlu0 %v3132, 64
  %v3159 = vpop.permute.xlu0 %3158
  %3160 = vrot.lane.b32.xlu0 %v3133, 64
  %v3161 = vpop.permute.xlu0 %3160
  %3162 = vrot.lane.b32.xlu0 %v3134, 64
  %v3163 = vpop.permute.xlu0 %3162
  %3164 = vrot.lane.b32.xlu0 %v3135, 64
  %v3165 = vpop.permute.xlu0 %3164
  %3166 = vrot.lane.b32.xlu0 %v3136, 64
  %v3167 = vpop.permute.xlu0 %3166
  %3168 = vrot.lane.b32.xlu0 %v3137, 64
  %v3169 = vpop.permute.xlu0 %3168
  %v3172 = vsel %vm1041, %v2066, %v2243
  %v3175 = vsel %vm1041, %v2067, %v2245
  %v3178 = vsel %vm1041, %v2068, %v2247
  %v3181 = vsel %vm1041, %v2069, %v2249
  %v3184 = vsel %vm1041, %v2070, %v2251
  %v3187 = vsel %vm1041, %v2071, %v2253
  %v3190 = vsel %vm1041, %v2072, %v2255
  %v3193 = vsel %vm1041, %v2073, %v2257
  %v3196 = vsel %vm1041, %v2074, %v2259
  %v3199 = vsel %vm1041, %v2075, %v2261
  %v3202 = vsel %vm1041, %v2076, %v2263
  %v3205 = vsel %vm1041, %v2077, %v2265
  %v3208 = vsel %vm1041, %v2078, %v2267
  %v3211 = vsel %vm1041, %v2079, %v2269
  %v3214 = vsel %vm1041, %v2080, %v2271
  %v3217 = vsel %vm1041, %v2081, %v2273
  %v3219 = vsel %vm1107, %v3172, %v2339
  %v3221 = vsel %vm1107, %v3175, %v2341
  %v3223 = vsel %vm1107, %v3178, %v2343
  %v3225 = vsel %vm1107, %v3181, %v2345
  %v3227 = vsel %vm1107, %v3184, %v2347
  %v3229 = vsel %vm1107, %v3187, %v2349
  %v3231 = vsel %vm1107, %v3190, %v2351
  %v3233 = vsel %vm1107, %v3193, %v2353
  %v3235 = vsel %vm1107, %v3196, %v2355
  %v3237 = vsel %vm1107, %v3199, %v2357
  %v3239 = vsel %vm1107, %v3202, %v2359
  %v3241 = vsel %vm1107, %v3205, %v2361
  %v3243 = vsel %vm1107, %v3208, %v2363
  %v3245 = vsel %vm1107, %v3211, %v2365
  %v3247 = vsel %vm1107, %v3214, %v2367
  %v3249 = vsel %vm1107, %v3217, %v2369
  %v3251 = vsel %vm1173, %v3219, %v2451
  %v3253 = vsel %vm1173, %v3221, %v2453
  %v3255 = vsel %vm1173, %v3223, %v2455
  %v3257 = vsel %vm1173, %v3225, %v2457
  %v3259 = vsel %vm1173, %v3227, %v2459
  %v3261 = vsel %vm1173, %v3229, %v2461
  %v3263 = vsel %vm1173, %v3231, %v2463
  %v3265 = vsel %vm1173, %v3233, %v2465
  %v3267 = vsel %vm1173, %v3235, %v2467
  %v3269 = vsel %vm1173, %v3237, %v2469
  %v3271 = vsel %vm1173, %v3239, %v2471
  %v3273 = vsel %vm1173, %v3241, %v2473
  %v3275 = vsel %vm1173, %v3243, %v2475
  %v3277 = vsel %vm1173, %v3245, %v2477
  %v3279 = vsel %vm1173, %v3247, %v2479
  %v3281 = vsel %vm1173, %v3249, %v2481
  %v3283 = vsel %vm1239, %v3251, %v2643
  %v3285 = vsel %vm1239, %v3253, %v2645
  %v3287 = vsel %vm1239, %v3255, %v2647
  %v3289 = vsel %vm1239, %v3257, %v2649
  %v3291 = vsel %vm1239, %v3259, %v2651
  %v3293 = vsel %vm1239, %v3261, %v2653
  %v3295 = vsel %vm1239, %v3263, %v2655
  %v3297 = vsel %vm1239, %v3265, %v2657
  %v3299 = vsel %vm1239, %v3267, %v2659
  %v3301 = vsel %vm1239, %v3269, %v2661
  %v3303 = vsel %vm1239, %v3271, %v2663
  %v3305 = vsel %vm1239, %v3273, %v2665
  %v3307 = vsel %vm1239, %v3275, %v2667
  %v3309 = vsel %vm1239, %v3277, %v2669
  %v3311 = vsel %vm1239, %v3279, %v2671
  %v3313 = vsel %vm1239, %v3281, %v2673
  %vm3314 = vcmask 326656
  %v3316 = vsel %vm3314, %v3283, %v2739
  %v3318 = vsel %vm3314, %v3285, %v2741
  %v3320 = vsel %vm3314, %v3287, %v2743
  %v3322 = vsel %vm3314, %v3289, %v2745
  %v3324 = vsel %vm3314, %v3291, %v2747
  %v3326 = vsel %vm3314, %v3293, %v2749
  %v3328 = vsel %vm3314, %v3295, %v2751
  %v3330 = vsel %vm3314, %v3297, %v2753
  %v3332 = vsel %vm3314, %v3299, %v2755
  %v3334 = vsel %vm3314, %v3301, %v2757
  %v3336 = vsel %vm3314, %v3303, %v2759
  %v3338 = vsel %vm3314, %v3305, %v2761
  %v3340 = vsel %vm3314, %v3307, %v2763
  %v3342 = vsel %vm3314, %v3309, %v2765
  %v3344 = vsel %vm3314, %v3311, %v2767
  %v3346 = vsel %vm3314, %v3313, %v2769
  %vm3347 = vcmask 392192
  %v3349 = vsel %vm3347, %v3316, %v2851
  %v3351 = vsel %vm3347, %v3318, %v2853
  %v3353 = vsel %vm3347, %v3320, %v2855
  %v3355 = vsel %vm3347, %v3322, %v2857
  %v3357 = vsel %vm3347, %v3324, %v2859
  %v3359 = vsel %vm3347, %v3326, %v2861
  %v3361 = vsel %vm3347, %v3328, %v2863
  %v3363 = vsel %vm3347, %v3330, %v2865
  %v3365 = vsel %vm3347, %v3332, %v2867
  %v3367 = vsel %vm3347, %v3334, %v2869
  %v3369 = vsel %vm3347, %v3336, %v2871
  %v3371 = vsel %vm3347, %v3338, %v2873
  %v3373 = vsel %vm3347, %v3340, %v2875
  %v3375 = vsel %vm3347, %v3342, %v2877
  %v3377 = vsel %vm3347, %v3344, %v2879
  %v3379 = vsel %vm3347, %v3346, %v2881
  %vm3380 = vcmask 457728
  %v3382 = vsel %vm3380, %v3349, %v3043
  %v3384 = vsel %vm3380, %v3351, %v3045
  %v3386 = vsel %vm3380, %v3353, %v3047
  %v3388 = vsel %vm3380, %v3355, %v3049
  %v3390 = vsel %vm3380, %v3357, %v3051
  %v3392 = vsel %vm3380, %v3359, %v3053
  %v3394 = vsel %vm3380, %v3361, %v3055
  %v3396 = vsel %vm3380, %v3363, %v3057
  %v3398 = vsel %vm3380, %v3365, %v3059
  %v3400 = vsel %vm3380, %v3367, %v3061
  %v3402 = vsel %vm3380, %v3369, %v3063
  %v3404 = vsel %vm3380, %v3371, %v3065
  %v3406 = vsel %vm3380, %v3373, %v3067
  %v3408 = vsel %vm3380, %v3375, %v3069
  %v3410 = vsel %vm3380, %v3377, %v3071
  %v3412 = vsel %vm3380, %v3379, %v3073
  %vm3413 = vcmask 523264
  %v3415 = vsel %vm3413, %v3382, %v3139
  %v3417 = vsel %vm3413, %v3384, %v3141
  %v3419 = vsel %vm3413, %v3386, %v3143
  %v3421 = vsel %vm3413, %v3388, %v3145
  %v3423 = vsel %vm3413, %v3390, %v3147
  %v3425 = vsel %vm3413, %v3392, %v3149
  %v3427 = vsel %vm3413, %v3394, %v3151
  %v3429 = vsel %vm3413, %v3396, %v3153
  %v3431 = vsel %vm3413, %v3398, %v3155
  %v3433 = vsel %vm3413, %v3400, %v3157
  %v3435 = vsel %vm3413, %v3402, %v3159
  %v3437 = vsel %vm3413, %v3404, %v3161
  %v3439 = vsel %vm3413, %v3406, %v3163
  %v3441 = vsel %vm3413, %v3408, %v3165
  %v3443 = vsel %vm3413, %v3410, %v3167
  %v3445 = vsel %vm3413, %v3412, %v3169
  %v3462 = vunpack.c.l.b16 %v3415
  %v3463 = vunpack.c.h.b16 %v3415
  %v3464 = vunpack.c.l.b16 %v3417
  %v3465 = vunpack.c.h.b16 %v3417
  %v3466 = vunpack.c.l.b16 %v3419
  %v3467 = vunpack.c.h.b16 %v3419
  %v3468 = vunpack.c.l.b16 %v3421
  %v3469 = vunpack.c.h.b16 %v3421
  %v3470 = vunpack.c.l.b16 %v3423
  %v3471 = vunpack.c.h.b16 %v3423
  %v3472 = vunpack.c.l.b16 %v3425
  %v3473 = vunpack.c.h.b16 %v3425
  %v3474 = vunpack.c.l.b16 %v3427
  %v3475 = vunpack.c.h.b16 %v3427
  %v3476 = vunpack.c.l.b16 %v3429
  %v3477 = vunpack.c.h.b16 %v3429
  %v3478 = vunpack.c.l.b16 %v3431
  %v3479 = vunpack.c.h.b16 %v3431
  %v3480 = vunpack.c.l.b16 %v3433
  %v3481 = vunpack.c.h.b16 %v3433
  %v3482 = vunpack.c.l.b16 %v3435
  %v3483 = vunpack.c.h.b16 %v3435
  %v3484 = vunpack.c.l.b16 %v3437
  %v3485 = vunpack.c.h.b16 %v3437
  %v3486 = vunpack.c.l.b16 %v3439
  %v3487 = vunpack.c.h.b16 %v3439
  %v3488 = vunpack.c.l.b16 %v3441
  %v3489 = vunpack.c.h.b16 %v3441
  %v3490 = vunpack.c.l.b16 %v3443
  %v3491 = vunpack.c.h.b16 %v3443
  %v3492 = vunpack.c.l.b16 %v3445
  %v3493 = vunpack.c.h.b16 %v3445
  %v3494 = vpack.c.b16 %v3462, %v3462
  %v3495 = vpack.c.b16 %v3463, %v3463
  %v3496 = vpack.c.b16 %v3464, %v3464
  %v3497 = vpack.c.b16 %v3465, %v3465
  %v3498 = vpack.c.b16 %v3466, %v3466
  %v3499 = vpack.c.b16 %v3467, %v3467
  %v3500 = vpack.c.b16 %v3468, %v3468
  %v3501 = vpack.c.b16 %v3469, %v3469
  %v3502 = vpack.c.b16 %v3470, %v3470
  %v3503 = vpack.c.b16 %v3471, %v3471
  %v3504 = vpack.c.b16 %v3472, %v3472
  %v3505 = vpack.c.b16 %v3473, %v3473
  %v3506 = vpack.c.b16 %v3474, %v3474
  %v3507 = vpack.c.b16 %v3475, %v3475
  %v3508 = vpack.c.b16 %v3476, %v3476
  %v3509 = vpack.c.b16 %v3477, %v3477
  %v3510 = vpack.c.b16 %v3478, %v3478
  %v3511 = vpack.c.b16 %v3479, %v3479
  %v3512 = vpack.c.b16 %v3480, %v3480
  %v3513 = vpack.c.b16 %v3481, %v3481
  %v3514 = vpack.c.b16 %v3482, %v3482
  %v3515 = vpack.c.b16 %v3483, %v3483
  %v3516 = vpack.c.b16 %v3484, %v3484
  %v3517 = vpack.c.b16 %v3485, %v3485
  %v3518 = vpack.c.b16 %v3486, %v3486
  %v3519 = vpack.c.b16 %v3487, %v3487
  %v3520 = vpack.c.b16 %v3488, %v3488
  %v3521 = vpack.c.b16 %v3489, %v3489
  %v3522 = vpack.c.b16 %v3490, %v3490
  %v3523 = vpack.c.b16 %v3491, %v3491
  %v3524 = vpack.c.b16 %v3492, %v3492
  %v3525 = vpack.c.b16 %v3493, %v3493
  %vm3526 = vsmask.f32 3328
  %vm3527 = vsmask.f32 7440
  %vm3528 = vmor %vm3526, %vm3527
  %v3530 = vshrl.u32 %v3494, 16
  %v3532 = vrot.slane %v3530, 4
  %v3533 = vshll.u32 %v3494, 16
  %v3535 = vrot.slane %v3533, 5
  %v3536 = vor.u32 %v3532, %v3535
  %v3537 = vrot.slane %v3536, 4
  %v3539 = vshll.u32 %v3495, 16
  %v3541 = vrot.slane %v3539, 5
  %v3542 = vsel %vm3528, %v3537, %v3541
  %v3544 = vshrl.u32 %v3496, 16
  %v3546 = vrot.slane %v3544, 4
  %v3547 = vshll.u32 %v3496, 16
  %v3549 = vrot.slane %v3547, 5
  %v3550 = vor.u32 %v3546, %v3549
  %v3551 = vrot.slane %v3550, 4
  %v3553 = vshll.u32 %v3497, 16
  %v3555 = vrot.slane %v3553, 5
  %v3556 = vsel %vm3528, %v3551, %v3555
  %v3558 = vshrl.u32 %v3498, 16
  %v3560 = vrot.slane %v3558, 4
  %v3561 = vshll.u32 %v3498, 16
  %v3563 = vrot.slane %v3561, 5
  %v3564 = vor.u32 %v3560, %v3563
  %v3565 = vrot.slane %v3564, 4
  %v3567 = vshll.u32 %v3499, 16
  %v3569 = vrot.slane %v3567, 5
  %v3570 = vsel %vm3528, %v3565, %v3569
  %v3572 = vshrl.u32 %v3500, 16
  %v3574 = vrot.slane %v3572, 4
  %v3575 = vshll.u32 %v3500, 16
  %v3577 = vrot.slane %v3575, 5
  %v3578 = vor.u32 %v3574, %v3577
  %v3579 = vrot.slane %v3578, 4
  %v3581 = vshll.u32 %v3501, 16
  %v3583 = vrot.slane %v3581, 5
  %v3584 = vsel %vm3528, %v3579, %v3583
  %v3586 = vshrl.u32 %v3502, 16
  %v3588 = vrot.slane %v3586, 4
  %v3589 = vshll.u32 %v3502, 16
  %v3591 = vrot.slane %v3589, 5
  %v3592 = vor.u32 %v3588, %v3591
  %v3593 = vrot.slane %v3592, 4
  %v3595 = vshll.u32 %v3503, 16
  %v3597 = vrot.slane %v3595, 5
  %v3598 = vsel %vm3528, %v3593, %v3597
  %v3600 = vshrl.u32 %v3504, 16
  %v3602 = vrot.slane %v3600, 4
  %v3603 = vshll.u32 %v3504, 16
  %v3605 = vrot.slane %v3603, 5
  %v3606 = vor.u32 %v3602, %v3605
  %v3607 = vrot.slane %v3606, 4
  %v3609 = vshll.u32 %v3505, 16
  %v3611 = vrot.slane %v3609, 5
  %v3612 = vsel %vm3528, %v3607, %v3611
  %v3614 = vshrl.u32 %v3506, 16
  %v3616 = vrot.slane %v3614, 4
  %v3617 = vshll.u32 %v3506, 16
  %v3619 = vrot.slane %v3617, 5
  %v3620 = vor.u32 %v3616, %v3619
  %v3621 = vrot.slane %v3620, 4
  %v3623 = vshll.u32 %v3507, 16
  %v3625 = vrot.slane %v3623, 5
  %v3626 = vsel %vm3528, %v3621, %v3625
  %v3628 = vshrl.u32 %v3508, 16
  %v3630 = vrot.slane %v3628, 4
  %v3631 = vshll.u32 %v3508, 16
  %v3633 = vrot.slane %v3631, 5
  %v3634 = vor.u32 %v3630, %v3633
  %v3635 = vrot.slane %v3634, 4
  %v3637 = vshll.u32 %v3509, 16
  %v3639 = vrot.slane %v3637, 5
  %v3640 = vsel %vm3528, %v3635, %v3639
  %v3642 = vshrl.u32 %v3510, 16
  %v3644 = vrot.slane %v3642, 4
  %v3645 = vshll.u32 %v3510, 16
  %v3647 = vrot.slane %v3645, 5
  %v3648 = vor.u32 %v3644, %v3647
  %v3649 = vrot.slane %v3648, 4
  %v3651 = vshll.u32 %v3511, 16
  %v3653 = vrot.slane %v3651, 5
  %v3654 = vsel %vm3528, %v3649, %v3653
  %v3656 = vshrl.u32 %v3512, 16
  %v3658 = vrot.slane %v3656, 4
  %v3659 = vshll.u32 %v3512, 16
  %v3661 = vrot.slane %v3659, 5
  %v3662 = vor.u32 %v3658, %v3661
  %v3663 = vrot.slane %v3662, 4
  %v3665 = vshll.u32 %v3513, 16
  %v3667 = vrot.slane %v3665, 5
  %v3668 = vsel %vm3528, %v3663, %v3667
  %v3670 = vshrl.u32 %v3514, 16
  %v3672 = vrot.slane %v3670, 4
  %v3673 = vshll.u32 %v3514, 16
  %v3675 = vrot.slane %v3673, 5
  %v3676 = vor.u32 %v3672, %v3675
  %v3677 = vrot.slane %v3676, 4
  %v3679 = vshll.u32 %v3515, 16
  %v3681 = vrot.slane %v3679, 5
  %v3682 = vsel %vm3528, %v3677, %v3681
  %v3684 = vshrl.u32 %v3516, 16
  %v3686 = vrot.slane %v3684, 4
  %v3687 = vshll.u32 %v3516, 16
  %v3689 = vrot.slane %v3687, 5
  %v3690 = vor.u32 %v3686, %v3689
  %v3691 = vrot.slane %v3690, 4
  %v3693 = vshll.u32 %v3517, 16
  %v3695 = vrot.slane %v3693, 5
  %v3696 = vsel %vm3528, %v3691, %v3695
  %v3698 = vshrl.u32 %v3518, 16
  %v3700 = vrot.slane %v3698, 4
  %v3701 = vshll.u32 %v3518, 16
  %v3703 = vrot.slane %v3701, 5
  %v3704 = vor.u32 %v3700, %v3703
  %v3705 = vrot.slane %v3704, 4
  %v3707 = vshll.u32 %v3519, 16
  %v3709 = vrot.slane %v3707, 5
  %v3710 = vsel %vm3528, %v3705, %v3709
  %v3712 = vshrl.u32 %v3520, 16
  %v3714 = vrot.slane %v3712, 4
  %v3715 = vshll.u32 %v3520, 16
  %v3717 = vrot.slane %v3715, 5
  %v3718 = vor.u32 %v3714, %v3717
  %v3719 = vrot.slane %v3718, 4
  %v3721 = vshll.u32 %v3521, 16
  %v3723 = vrot.slane %v3721, 5
  %v3724 = vsel %vm3528, %v3719, %v3723
  %v3726 = vshrl.u32 %v3522, 16
  %v3728 = vrot.slane %v3726, 4
  %v3729 = vshll.u32 %v3522, 16
  %v3731 = vrot.slane %v3729, 5
  %v3732 = vor.u32 %v3728, %v3731
  %v3733 = vrot.slane %v3732, 4
  %v3735 = vshll.u32 %v3523, 16
  %v3737 = vrot.slane %v3735, 5
  %v3738 = vsel %vm3528, %v3733, %v3737
  %v3740 = vshrl.u32 %v3524, 16
  %v3742 = vrot.slane %v3740, 4
  %v3743 = vshll.u32 %v3524, 16
  %v3745 = vrot.slane %v3743, 5
  %v3746 = vor.u32 %v3742, %v3745
  %v3747 = vrot.slane %v3746, 4
  %v3749 = vshll.u32 %v3525, 16
  %v3751 = vrot.slane %v3749, 5
  %v3752 = vsel %vm3528, %v3747, %v3751
  %v3753 = vld [vmem:[%s5] sm:$0xf]
  %v3754 = vld [vmem:[%s5 + $0x4] sm:$0xf]
  %v3755 = vld [vmem:[%s5 + $0x8] sm:$0xf]
  %v3756 = vld [vmem:[%s5 + $0xc] sm:$0xf]
  %v3757 = vld [vmem:[%s5 + $0x10] sm:$0xf]
  %v3758 = vld [vmem:[%s5 + $0x14] sm:$0xf]
  %v3759 = vld [vmem:[%s5 + $0x18] sm:$0xf]
  %v3760 = vld [vmem:[%s5 + $0x1c] sm:$0xf]
  %v3761 = vld [vmem:[%s5 + $0x20] sm:$0xf]
  %v3762 = vunpack.c.l.b16 %v3542
  %v3763 = vunpack.c.l.b16 %v3556
  %v3764 = vunpack.c.l.b16 %v3570
  %v3765 = vunpack.c.l.b16 %v3584
  %v3766 = vunpack.c.l.b16 %v3598
  %v3767 = vunpack.c.l.b16 %v3612
  %v3768 = vunpack.c.l.b16 %v3626
  %v3769 = vunpack.c.l.b16 %v3640
  %v3770 = vunpack.c.l.b16 %v3654
  %v3771 = vunpack.c.l.b16 %v3668
  %v3772 = vunpack.c.l.b16 %v3682
  %v3773 = vunpack.c.l.b16 %v3696
  %v3774 = vunpack.c.l.b16 %v3710
  %v3775 = vunpack.c.l.b16 %v3724
  %v3776 = vunpack.c.l.b16 %v3738
  %v3777 = vunpack.c.l.b16 %v3752
  %v3778 = vpack.c.b16 %v3763, %v3762
  %v3779 = vpack.c.b16 %v3765, %v3764
  %v3780 = vpack.c.b16 %v3767, %v3766
  %v3781 = vpack.c.b16 %v3769, %v3768
  %v3782 = vpack.c.b16 %v3771, %v3770
  %v3783 = vpack.c.b16 %v3773, %v3772
  %v3784 = vpack.c.b16 %v3775, %v3774
  %v3785 = vpack.c.b16 %v3777, %v3776
  %v3795 = vunpack.c.l.b16 %v3753
  %v3796 = vunpack.c.l.b16 %v3754
  %v3797 = vunpack.c.l.b16 %v3755
  %v3798 = vunpack.c.l.b16 %v3756
  %v3799 = vunpack.c.l.b16 %v3757
  %v3800 = vunpack.c.l.b16 %v3758
  %v3801 = vunpack.c.l.b16 %v3759
  %v3802 = vunpack.c.l.b16 %v3760
  %v3803 = vunpack.c.l.b16 %v3761
  %v3804 = vpack.c.b16 %v3796, %v3795
  %v3805 = vpack.c.b16 %v3798, %v3797
  %v3806 = vpack.c.b16 %v3800, %v3799
  %v3807 = vpack.c.b16 %v3802, %v3801
  %v3808 = vpack.c.b16 %v3803, %v3803
  %vm3813 = vcmask 588800
  %v3815 = vsel %vm3813, %v3778, 0
  %v3818 = vsel %vm3813, %v3779, 0
  %v3821 = vsel %vm3813, %v3780, 0
  %v3824 = vsel %vm3813, %v3781, 0
  %v3827 = vsel %vm3813, %v3782, 0
  %v3830 = vsel %vm3813, %v3783, 0
  %v3833 = vsel %vm3813, %v3784, 0
  %v3836 = vsel %vm3813, %v3785, 0
  %vm3838 = vcmask 1043456
  %v3840 = vsel %vm3838, %v3808, 0
  %3842 = vmatprep.subr.bf16.mxu0 0
  %3843 = vmatpush1.bf16.msra.mxu0 0
  %3844 = vmatprep.subr.bf16.mxu0 0
  %3845 = vmatpush1.bf16.msra.mxu0 0
  %3846 = vmatprep.subr.bf16.mxu0 0
  %3847 = vmatpush1.bf16.msra.mxu0 0
  %3848 = vmatprep.subr.bf16.mxu0 0
  %3849 = vmatpush1.bf16.msra.mxu0 %v3840
  %3850 = vmatprep.subr.bf16.mxu0 0
  %3851 = vmatpush1.bf16.msra.mxu0 %v3807
  %3852 = vmatprep.subr.bf16.mxu0 0
  %3853 = vmatpush1.bf16.msra.mxu0 %v3806
  %3854 = vmatprep.subr.bf16.mxu0 0
  %3855 = vmatpush1.bf16.msra.mxu0 %v3805
  %3856 = vmatprep.subr.bf16.mxu0 0
  %3857 = vmatpush1.bf16.msra.mxu0 %v3804
  %3858 = vmatprep.subr.bf16.mxu0 0
  %3859 = vmatpush2.bf16.msra.mxu0 0
  %3860 = vmatprep.subr.bf16.mxu0 0
  %3861 = vmatpush2.bf16.msra.mxu0 0
  %3862 = vmatprep.subr.bf16.mxu0 0
  %3863 = vmatpush2.bf16.msra.mxu0 0
  %3864 = vmatprep.subr.bf16.mxu0 0
  %3865 = vmatpush2.bf16.msra.mxu0 0
  %3866 = vmatprep.subr.bf16.mxu0 0
  %3867 = vmatpush2.bf16.msra.mxu0 0
  %3868 = vmatprep.subr.bf16.mxu0 0
  %3869 = vmatpush2.bf16.msra.mxu0 0
  %3870 = vmatprep.subr.bf16.mxu0 0
  %3871 = vmatpush2.bf16.msra.mxu0 0
  %3872 = vmatprep.subr.bf16.mxu0 0
  %3873 = vmatpush2.bf16.msra.mxu0 0
  %3874 = vmatprep.mubr.bf16.mxu0 0
  %3875 = vmatmul.mubr.bf16.gmra.mxu0 %v3815
  %v3876 = vpop.f32.mrf.mxu0
  %v3877 = vadd.f32 0.0, %v3876
  %v3878 = vpop.f32.mrf.mxu0
  %v3879 = vpop.f32.mrf.mxu0
  %v3880 = vadd.f32 0.0, %v3879
  %v3881 = vpop.f32.mrf.mxu0
  %3882 = vmatprep.mubr.bf16.mxu0 0
  %3883 = vmatmul.mubr.bf16.gmra.mxu0 %v3818
  %v3884 = vpop.f32.mrf.mxu0
  %v3885 = vadd.f32 0.0, %v3884
  %v3886 = vpop.f32.mrf.mxu0
  %v3887 = vpop.f32.mrf.mxu0
  %v3888 = vadd.f32 0.0, %v3887
  %v3889 = vpop.f32.mrf.mxu0
  %3890 = vmatprep.mubr.bf16.mxu0 0
  %3891 = vmatmul.mubr.bf16.gmra.mxu0 %v3821
  %v3892 = vpop.f32.mrf.mxu0
  %v3893 = vadd.f32 0.0, %v3892
  %v3894 = vpop.f32.mrf.mxu0
  %v3895 = vpop.f32.mrf.mxu0
  %v3896 = vadd.f32 0.0, %v3895
  %v3897 = vpop.f32.mrf.mxu0
  %3898 = vmatprep.mubr.bf16.mxu0 0
  %3899 = vmatmul.mubr.bf16.gmra.mxu0 %v3824
  %v3900 = vpop.f32.mrf.mxu0
  %v3901 = vadd.f32 0.0, %v3900
  %v3902 = vpop.f32.mrf.mxu0
  %v3903 = vpop.f32.mrf.mxu0
  %v3904 = vadd.f32 0.0, %v3903
  %v3905 = vpop.f32.mrf.mxu0
  %3906 = vmatprep.mubr.bf16.mxu0 0
  %3907 = vmatmul.mubr.bf16.gmra.mxu0 %v3827
  %v3908 = vpop.f32.mrf.mxu0
  %v3909 = vadd.f32 0.0, %v3908
  %v3910 = vpop.f32.mrf.mxu0
  %v3911 = vpop.f32.mrf.mxu0
  %v3912 = vadd.f32 0.0, %v3911
  %v3913 = vpop.f32.mrf.mxu0
  %3914 = vmatprep.mubr.bf16.mxu0 0
  %3915 = vmatmul.mubr.bf16.gmra.mxu0 %v3830
  %v3916 = vpop.f32.mrf.mxu0
  %v3917 = vadd.f32 0.0, %v3916
  %v3918 = vpop.f32.mrf.mxu0
  %v3919 = vpop.f32.mrf.mxu0
  %v3920 = vadd.f32 0.0, %v3919
  %v3921 = vpop.f32.mrf.mxu0
  %3922 = vmatprep.mubr.bf16.mxu0 0
  %3923 = vmatmul.mubr.bf16.gmra.mxu0 %v3833
  %v3924 = vpop.f32.mrf.mxu0
  %v3925 = vadd.f32 0.0, %v3924
  %v3926 = vpop.f32.mrf.mxu0
  %v3927 = vpop.f32.mrf.mxu0
  %v3928 = vadd.f32 0.0, %v3927
  %v3929 = vpop.f32.mrf.mxu0
  %3930 = vmatprep.mubr.bf16.mxu0 0
  %3931 = vmatmul.mubr.bf16.gmra.mxu0 %v3836
  %v3932 = vpop.f32.mrf.mxu0
  %v3933 = vadd.f32 0.0, %v3932
  %v3934 = vpop.f32.mrf.mxu0
  %v3935 = vpop.f32.mrf.mxu0
  %v3936 = vadd.f32 0.0, %v3935
  %v3937 = vpop.f32.mrf.mxu0
  %3938 = vdwg.mxu0
  %v3939 = vld [vmem:[%s9] sm:$0x1]
  %v3940 = vld [vmem:[%s10] sm:$0x1]
  %v3941 = vsel %vm1041, %v3877, 0.0
  %v3942 = vsel %vm1041, %v3880, 0.0
  %v3943 = vadd.f32 %v3941, %v3942
  %v3944 = vsel %vm1041, %v3885, 0.0
  %v3945 = vadd.f32 %v3943, %v3944
  %v3946 = vsel %vm1041, %v3888, 0.0
  %v3947 = vadd.f32 %v3945, %v3946
  %v3948 = vsel %vm1041, %v3893, 0.0
  %v3949 = vadd.f32 %v3947, %v3948
  %v3950 = vsel %vm1041, %v3896, 0.0
  %v3951 = vadd.f32 %v3949, %v3950
  %v3952 = vsel %vm1041, %v3901, 0.0
  %v3953 = vadd.f32 %v3951, %v3952
  %v3954 = vsel %vm1041, %v3904, 0.0
  %v3955 = vadd.f32 %v3953, %v3954
  %v3956 = vsel %vm1041, %v3909, 0.0
  %v3957 = vadd.f32 %v3955, %v3956
  %v3958 = vsel %vm1041, %v3912, 0.0
  %v3959 = vadd.f32 %v3957, %v3958
  %v3960 = vsel %vm1041, %v3917, 0.0
  %v3961 = vadd.f32 %v3959, %v3960
  %v3962 = vsel %vm1041, %v3920, 0.0
  %v3963 = vadd.f32 %v3961, %v3962
  %v3964 = vsel %vm1041, %v3925, 0.0
  %v3965 = vadd.f32 %v3963, %v3964
  %v3966 = vsel %vm1041, %v3928, 0.0
  %v3967 = vadd.f32 %v3965, %v3966
  %v3968 = vsel %vm1041, %v3933, 0.0
  %v3969 = vadd.f32 %v3967, %v3968
  %v3970 = vsel %vm1041, %v3936, 0.0
  %v3971 = vadd.f32 %v3969, %v3970
  %v3972 = vrot.slane %v3971, 4
  %v3973 = vadd.f32 %v3971, %v3972
  %v3974 = vrot.slane %v3973, 2
  %v3975 = vadd.f32 %v3973, %v3974
  %v3976 = vrot.slane %v3975, 1
  %v3977 = vadd.f32 %v3975, %v3976
  %v3978 = vmul.f32 %v3977, %v1497
  %v3979 = vsub.f32 %v3877, %v3978
  %v3980 = vsub.f32 %v3880, %v3978
  %v3981 = vsub.f32 %v3885, %v3978
  %v3982 = vsub.f32 %v3888, %v3978
  %v3983 = vsub.f32 %v3893, %v3978
  %v3984 = vsub.f32 %v3896, %v3978
  %v3985 = vsub.f32 %v3901, %v3978
  %v3986 = vsub.f32 %v3904, %v3978
  %v3987 = vsub.f32 %v3909, %v3978
  %v3988 = vsub.f32 %v3912, %v3978
  %v3989 = vsub.f32 %v3917, %v3978
  %v3990 = vsub.f32 %v3920, %v3978
  %v3991 = vsub.f32 %v3925, %v3978
  %v3992 = vsub.f32 %v3928, %v3978
  %v3993 = vsub.f32 %v3933, %v3978
  %v3994 = vsub.f32 %v3936, %v3978
  %v3995 = vmul.f32 %v3979, %v3979
  %v3996 = vmul.f32 %v3980, %v3980
  %v3997 = vmul.f32 %v3981, %v3981
  %v3998 = vmul.f32 %v3982, %v3982
  %v3999 = vmul.f32 %v3983, %v3983
  %v4000 = vmul.f32 %v3984, %v3984
  %v4001 = vmul.f32 %v3985, %v3985
  %v4002 = vmul.f32 %v3986, %v3986
  %v4003 = vmul.f32 %v3987, %v3987
  %v4004 = vmul.f32 %v3988, %v3988
  %v4005 = vmul.f32 %v3989, %v3989
  %v4006 = vmul.f32 %v3990, %v3990
  %v4007 = vmul.f32 %v3991, %v3991
  %v4008 = vmul.f32 %v3992, %v3992
  %v4009 = vmul.f32 %v3993, %v3993
  %v4010 = vmul.f32 %v3994, %v3994
  %v4011 = vsel %vm1041, %v3995, 0.0
  %v4012 = vsel %vm1041, %v3996, 0.0
  %v4013 = vadd.f32 %v4011, %v4012
  %v4014 = vsel %vm1041, %v3997, 0.0
  %v4015 = vadd.f32 %v4013, %v4014
  %v4016 = vsel %vm1041, %v3998, 0.0
  %v4017 = vadd.f32 %v4015, %v4016
  %v4018 = vsel %vm1041, %v3999, 0.0
  %v4019 = vadd.f32 %v4017, %v4018
  %v4020 = vsel %vm1041, %v4000, 0.0
  %v4021 = vadd.f32 %v4019, %v4020
  %v4022 = vsel %vm1041, %v4001, 0.0
  %v4023 = vadd.f32 %v4021, %v4022
  %v4024 = vsel %vm1041, %v4002, 0.0
  %v4025 = vadd.f32 %v4023, %v4024
  %v4026 = vsel %vm1041, %v4003, 0.0
  %v4027 = vadd.f32 %v4025, %v4026
  %v4028 = vsel %vm1041, %v4004, 0.0
  %v4029 = vadd.f32 %v4027, %v4028
  %v4030 = vsel %vm1041, %v4005, 0.0
  %v4031 = vadd.f32 %v4029, %v4030
  %v4032 = vsel %vm1041, %v4006, 0.0
  %v4033 = vadd.f32 %v4031, %v4032
  %v4034 = vsel %vm1041, %v4007, 0.0
  %v4035 = vadd.f32 %v4033, %v4034
  %v4036 = vsel %vm1041, %v4008, 0.0
  %v4037 = vadd.f32 %v4035, %v4036
  %v4038 = vsel %vm1041, %v4009, 0.0
  %v4039 = vadd.f32 %v4037, %v4038
  %v4040 = vsel %vm1041, %v4010, 0.0
  %v4041 = vadd.f32 %v4039, %v4040
  %v4042 = vrot.slane %v4041, 4
  %v4043 = vadd.f32 %v4041, %v4042
  %v4044 = vrot.slane %v4043, 2
  %v4045 = vadd.f32 %v4043, %v4044
  %v4046 = vrot.slane %v4045, 1
  %v4047 = vadd.f32 %v4045, %v4046
  %v4048 = vmul.f32 %v4047, %v1497
  %v4049 = vadd.f32 %v4048, 1e-05
  %v4050 = vrsqrt.pop %v4049
  %v4051 = vmul.f32 %v3979, %v4050
  %v4052 = vmul.f32 %v3980, %v4050
  %v4053 = vmul.f32 %v3981, %v4050
  %v4054 = vmul.f32 %v3982, %v4050
  %v4055 = vmul.f32 %v3983, %v4050
  %v4056 = vmul.f32 %v3984, %v4050
  %v4057 = vmul.f32 %v3985, %v4050
  %v4058 = vmul.f32 %v3986, %v4050
  %v4059 = vmul.f32 %v3987, %v4050
  %v4060 = vmul.f32 %v3988, %v4050
  %v4061 = vmul.f32 %v3989, %v4050
  %v4062 = vmul.f32 %v3990, %v4050
  %v4063 = vmul.f32 %v3991, %v4050
  %v4064 = vmul.f32 %v3992, %v4050
  %v4065 = vmul.f32 %v3993, %v4050
  %v4066 = vmul.f32 %v3994, %v4050
  %v4068 = vlaneseq
  %v4069 = vshrl.u32 %v4068, 7
  %v4070 = vsub.s32 0, %v4069
  %v4071 = vrot.slane %v3939, %v4070
  %v4073 = vmul.f32 %v4051, %v4071
  %v4074 = vmul.f32 %v4052, %v4071
  %v4075 = vmul.f32 %v4053, %v4071
  %v4076 = vmul.f32 %v4054, %v4071
  %v4077 = vmul.f32 %v4055, %v4071
  %v4078 = vmul.f32 %v4056, %v4071
  %v4079 = vmul.f32 %v4057, %v4071
  %v4080 = vmul.f32 %v4058, %v4071
  %v4081 = vmul.f32 %v4059, %v4071
  %v4082 = vmul.f32 %v4060, %v4071
  %v4083 = vmul.f32 %v4061, %v4071
  %v4084 = vmul.f32 %v4062, %v4071
  %v4085 = vmul.f32 %v4063, %v4071
  %v4086 = vmul.f32 %v4064, %v4071
  %v4087 = vmul.f32 %v4065, %v4071
  %v4088 = vmul.f32 %v4066, %v4071
  %v4090 = vlaneseq
  %v4091 = vshrl.u32 %v4090, 7
  %v4092 = vsub.s32 0, %v4091
  %v4093 = vrot.slane %v3940, %v4092
  %v4095 = vadd.f32 %v4073, %v4093
  %v4096 = vadd.f32 %v4074, %v4093
  %v4097 = vadd.f32 %v4075, %v4093
  %v4098 = vadd.f32 %v4076, %v4093
  %v4099 = vadd.f32 %v4077, %v4093
  %v4100 = vadd.f32 %v4078, %v4093
  %v4101 = vadd.f32 %v4079, %v4093
  %v4102 = vadd.f32 %v4080, %v4093
  %v4103 = vadd.f32 %v4081, %v4093
  %v4104 = vadd.f32 %v4082, %v4093
  %v4105 = vadd.f32 %v4083, %v4093
  %v4106 = vadd.f32 %v4084, %v4093
  %v4107 = vadd.f32 %v4085, %v4093
  %v4108 = vadd.f32 %v4086, %v4093
  %v4109 = vadd.f32 %v4087, %v4093
  %v4110 = vadd.f32 %v4088, %v4093
  %v4111 = vmul.f32 %v4095, 0.01
  %v4112 = vmul.f32 %v4096, 0.01
  %v4113 = vmul.f32 %v4097, 0.01
  %v4114 = vmul.f32 %v4098, 0.01
  %v4115 = vmul.f32 %v4099, 0.01
  %v4116 = vmul.f32 %v4100, 0.01
  %v4117 = vmul.f32 %v4101, 0.01
  %v4118 = vmul.f32 %v4102, 0.01
  %v4119 = vmul.f32 %v4103, 0.01
  %v4120 = vmul.f32 %v4104, 0.01
  %v4121 = vmul.f32 %v4105, 0.01
  %v4122 = vmul.f32 %v4106, 0.01
  %v4123 = vmul.f32 %v4107, 0.01
  %v4124 = vmul.f32 %v4108, 0.01
  %v4125 = vmul.f32 %v4109, 0.01
  %v4126 = vmul.f32 %v4110, 0.01
  %v4127 = vmax.f32 %v4095, %v4111
  %v4128 = vmax.f32 %v4096, %v4112
  %v4129 = vmax.f32 %v4097, %v4113
  %v4130 = vmax.f32 %v4098, %v4114
  %v4131 = vmax.f32 %v4099, %v4115
  %v4132 = vmax.f32 %v4100, %v4116
  %v4133 = vmax.f32 %v4101, %v4117
  %v4134 = vmax.f32 %v4102, %v4118
  %v4135 = vmax.f32 %v4103, %v4119
  %v4136 = vmax.f32 %v4104, %v4120
  %v4137 = vmax.f32 %v4105, %v4121
  %v4138 = vmax.f32 %v4106, %v4122
  %v4139 = vmax.f32 %v4107, %v4123
  %v4140 = vmax.f32 %v4108, %v4124
  %v4141 = vmax.f32 %v4109, %v4125
  %v4142 = vmax.f32 %v4110, %v4126
  %v4143 = vpack.c.bf16 %v4128, %v4127
  %v4144 = vpack.c.bf16 %v4130, %v4129
  %v4145 = vpack.c.bf16 %v4132, %v4131
  %v4146 = vpack.c.bf16 %v4134, %v4133
  %v4147 = vpack.c.bf16 %v4136, %v4135
  %v4148 = vpack.c.bf16 %v4138, %v4137
  %v4149 = vpack.c.bf16 %v4140, %v4139
  %v4150 = vpack.c.bf16 %v4142, %v4141
  %v4159 = vunpack.c.l.b16 %v4143
  %v4160 = vunpack.c.h.b16 %v4143
  %v4161 = vunpack.c.l.b16 %v4144
  %v4162 = vunpack.c.h.b16 %v4144
  %v4163 = vunpack.c.l.b16 %v4145
  %v4164 = vunpack.c.h.b16 %v4145
  %v4165 = vunpack.c.l.b16 %v4146
  %v4166 = vunpack.c.h.b16 %v4146
  %v4167 = vunpack.c.l.b16 %v4147
  %v4168 = vunpack.c.h.b16 %v4147
  %v4169 = vunpack.c.l.b16 %v4148
  %v4170 = vunpack.c.h.b16 %v4148
  %v4171 = vunpack.c.l.b16 %v4149
  %v4172 = vunpack.c.h.b16 %v4149
  %v4173 = vunpack.c.l.b16 %v4150
  %v4174 = vunpack.c.h.b16 %v4150
  %v4175 = vpack.c.b16 %v4159, %v4159
  %v4176 = vpack.c.b16 %v4160, %v4160
  %v4177 = vpack.c.b16 %v4161, %v4161
  %v4178 = vpack.c.b16 %v4162, %v4162
  %v4179 = vpack.c.b16 %v4163, %v4163
  %v4180 = vpack.c.b16 %v4164, %v4164
  %v4181 = vpack.c.b16 %v4165, %v4165
  %v4182 = vpack.c.b16 %v4166, %v4166
  %v4183 = vpack.c.b16 %v4167, %v4167
  %v4184 = vpack.c.b16 %v4168, %v4168
  %v4185 = vpack.c.b16 %v4169, %v4169
  %v4186 = vpack.c.b16 %v4170, %v4170
  %v4187 = vpack.c.b16 %v4171, %v4171
  %v4188 = vpack.c.b16 %v4172, %v4172
  %v4189 = vpack.c.b16 %v4173, %v4173
  %v4190 = vpack.c.b16 %v4174, %v4174
  %v4191 = vrot.slane %v4175, 7
  %v4192 = vrot.slane %v4191, 4
  %v4193 = vrot.slane %v4176, 7
  %v4194 = vrot.slane %v4193, 4
  %v4195 = vrot.slane %v4177, 7
  %v4196 = vrot.slane %v4195, 4
  %v4197 = vrot.slane %v4178, 7
  %v4198 = vrot.slane %v4197, 4
  %v4199 = vrot.slane %v4179, 7
  %v4200 = vrot.slane %v4199, 4
  %v4201 = vrot.slane %v4180, 7
  %v4202 = vrot.slane %v4201, 4
  %v4203 = vrot.slane %v4181, 7
  %v4204 = vrot.slane %v4203, 4
  %v4205 = vrot.slane %v4182, 7
  %v4206 = vrot.slane %v4205, 4
  %v4207 = vrot.slane %v4183, 7
  %v4208 = vrot.slane %v4207, 4
  %v4209 = vrot.slane %v4184, 7
  %v4210 = vrot.slane %v4209, 4
  %v4211 = vrot.slane %v4185, 7
  %v4212 = vrot.slane %v4211, 4
  %v4213 = vrot.slane %v4186, 7
  %v4214 = vrot.slane %v4213, 4
  %v4215 = vrot.slane %v4187, 7
  %v4216 = vrot.slane %v4215, 4
  %v4217 = vrot.slane %v4188, 7
  %v4218 = vrot.slane %v4217, 4
  %v4219 = vrot.slane %v4189, 7
  %v4220 = vrot.slane %v4219, 4
  %v4221 = vrot.slane %v4190, 7
  %v4222 = vrot.slane %v4221, 4
  %4255 = vst.msk [vmem:[%s1775] sm:$0xe] %vm1776, %v4191
  %4256 = vst.msk [vmem:[%s1775 + $0x4] sm:$0x1] %vm50, %v4192
  %4257 = vst.msk [vmem:[%s1775 + $0x8] sm:$0xe] %vm1776, %v4193
  %4258 = vst.msk [vmem:[%s1775 + $0xc] sm:$0x1] %vm50, %v4194
  %4259 = vst.msk [vmem:[%s1775 + $0x10] sm:$0xe] %vm1776, %v4195
  %4260 = vst.msk [vmem:[%s1775 + $0x14] sm:$0x1] %vm50, %v4196
  %4261 = vst.msk [vmem:[%s1775 + $0x18] sm:$0xe] %vm1776, %v4197
  %4262 = vst.msk [vmem:[%s1775 + $0x1c] sm:$0x1] %vm50, %v4198
  %4263 = vst.msk [vmem:[%s1775 + $0x20] sm:$0xe] %vm1776, %v4199
  %4264 = vst.msk [vmem:[%s1775 + $0x24] sm:$0x1] %vm50, %v4200
  %4265 = vst.msk [vmem:[%s1775 + $0x28] sm:$0xe] %vm1776, %v4201
  %4266 = vst.msk [vmem:[%s1775 + $0x2c] sm:$0x1] %vm50, %v4202
  %4267 = vst.msk [vmem:[%s1775 + $0x30] sm:$0xe] %vm1776, %v4203
  %4268 = vst.msk [vmem:[%s1775 + $0x34] sm:$0x1] %vm50, %v4204
  %4269 = vst.msk [vmem:[%s1775 + $0x38] sm:$0xe] %vm1776, %v4205
  %4270 = vst.msk [vmem:[%s1775 + $0x3c] sm:$0x1] %vm50, %v4206
  %4271 = vst.msk [vmem:[%s1775 + $0x50] sm:$0xe] %vm1776, %v4207
  %4272 = vst.msk [vmem:[%s1775 + $0x54] sm:$0x1] %vm50, %v4208
  %4273 = vst.msk [vmem:[%s1775 + $0x58] sm:$0xe] %vm1776, %v4209
  %4274 = vst.msk [vmem:[%s1775 + $0x5c] sm:$0x1] %vm50, %v4210
  %4275 = vst.msk [vmem:[%s1775 + $0x60] sm:$0xe] %vm1776, %v4211
  %4276 = vst.msk [vmem:[%s1775 + $0x64] sm:$0x1] %vm50, %v4212
  %4277 = vst.msk [vmem:[%s1775 + $0x68] sm:$0xe] %vm1776, %v4213
  %4278 = vst.msk [vmem:[%s1775 + $0x6c] sm:$0x1] %vm50, %v4214
  %4279 = vst.msk [vmem:[%s1775 + $0x70] sm:$0xe] %vm1776, %v4215
  %4280 = vst.msk [vmem:[%s1775 + $0x74] sm:$0x1] %vm50, %v4216
  %4281 = vst.msk [vmem:[%s1775 + $0x78] sm:$0xe] %vm1776, %v4217
  %4282 = vst.msk [vmem:[%s1775 + $0x7c] sm:$0x1] %vm50, %v4218
  %4283 = vst.msk [vmem:[%s1775 + $0x80] sm:$0xe] %vm1776, %v4219
  %4284 = vst.msk [vmem:[%s1775 + $0x84] sm:$0x1] %vm50, %v4220
  %4285 = vst.msk [vmem:[%s1775 + $0x88] sm:$0xe] %vm1776, %v4221
  %4286 = vst.msk [vmem:[%s1775 + $0x8c] sm:$0x1] %vm50, %v4222
  %v4287 = vld [vmem:[#allocation2] sm:$0xf]
  %v4288 = vld [vmem:[#allocation2 + $0x4] sm:$0x1]
  %v4289 = vld [vmem:[#allocation2 + $0x8] sm:$0xf]
  %v4290 = vld [vmem:[#allocation2 + $0xc] sm:$0x1]
  %v4291 = vld [vmem:[#allocation2 + $0x10] sm:$0xf]
  %v4292 = vld [vmem:[#allocation2 + $0x14] sm:$0x1]
  %v4293 = vld [vmem:[#allocation2 + $0x18] sm:$0xf]
  %v4294 = vld [vmem:[#allocation2 + $0x1c] sm:$0x1]
  %v4295 = vld [vmem:[#allocation2 + $0x20] sm:$0xf]
  %v4296 = vld [vmem:[#allocation2 + $0x24] sm:$0x1]
  %v4297 = vld [vmem:[#allocation2 + $0x28] sm:$0xf]
  %v4298 = vld [vmem:[#allocation2 + $0x2c] sm:$0x1]
  %v4299 = vld [vmem:[#allocation2 + $0x30] sm:$0xf]
  %v4300 = vld [vmem:[#allocation2 + $0x34] sm:$0x1]
  %v4301 = vld [vmem:[#allocation2 + $0x38] sm:$0xf]
  %v4302 = vld [vmem:[#allocation2 + $0x3c] sm:$0x1]
  %v4303 = vld [vmem:[#allocation2 + $0x50] sm:$0xf]
  %v4304 = vld [vmem:[#allocation2 + $0x54] sm:$0x1]
  %v4305 = vld [vmem:[#allocation2 + $0x58] sm:$0xf]
  %v4306 = vld [vmem:[#allocation2 + $0x5c] sm:$0x1]
  %v4307 = vld [vmem:[#allocation2 + $0x60] sm:$0xf]
  %v4308 = vld [vmem:[#allocation2 + $0x64] sm:$0x1]
  %v4309 = vld [vmem:[#allocation2 + $0x68] sm:$0xf]
  %v4310 = vld [vmem:[#allocation2 + $0x6c] sm:$0x1]
  %v4311 = vld [vmem:[#allocation2 + $0x70] sm:$0xf]
  %v4312 = vld [vmem:[#allocation2 + $0x74] sm:$0x1]
  %v4313 = vld [vmem:[#allocation2 + $0x78] sm:$0xf]
  %v4314 = vld [vmem:[#allocation2 + $0x7c] sm:$0x1]
  %v4315 = vld [vmem:[#allocation2 + $0x80] sm:$0xf]
  %v4316 = vld [vmem:[#allocation2 + $0x84] sm:$0x1]
  %v4317 = vld [vmem:[#allocation2 + $0x88] sm:$0xf]
  %v4318 = vld [vmem:[#allocation2 + $0x8c] sm:$0x1]
  %v4319 = vld [vmem:[#allocation2] sm:$0xe]
  %v4320 = vld [vmem:[#allocation2 + $0x8] sm:$0xe]
  %v4321 = vld [vmem:[#allocation2 + $0x10] sm:$0xe]
  %v4322 = vld [vmem:[#allocation2 + $0x18] sm:$0xe]
  %v4323 = vld [vmem:[#allocation2 + $0x20] sm:$0xe]
  %v4324 = vld [vmem:[#allocation2 + $0x28] sm:$0xe]
  %v4325 = vld [vmem:[#allocation2 + $0x30] sm:$0xe]
  %v4326 = vld [vmem:[#allocation2 + $0x38] sm:$0xe]
  %v4327 = vld [vmem:[#allocation2 + $0x50] sm:$0xe]
  %v4328 = vld [vmem:[#allocation2 + $0x58] sm:$0xe]
  %v4329 = vld [vmem:[#allocation2 + $0x60] sm:$0xe]
  %v4330 = vld [vmem:[#allocation2 + $0x68] sm:$0xe]
  %v4331 = vld [vmem:[#allocation2 + $0x70] sm:$0xe]
  %v4332 = vld [vmem:[#allocation2 + $0x78] sm:$0xe]
  %v4333 = vld [vmem:[#allocation2 + $0x80] sm:$0xe]
  %v4334 = vld [vmem:[#allocation2 + $0x88] sm:$0xe]
  %v4335 = vld [vmem:[#allocation2 + $0x4] sm:$0x3]
  %v4336 = vld [vmem:[#allocation2 + $0xc] sm:$0x3]
  %v4337 = vld [vmem:[#allocation2 + $0x14] sm:$0x3]
  %v4338 = vld [vmem:[#allocation2 + $0x1c] sm:$0x3]
  %v4339 = vld [vmem:[#allocation2 + $0x24] sm:$0x3]
  %v4340 = vld [vmem:[#allocation2 + $0x2c] sm:$0x3]
  %v4341 = vld [vmem:[#allocation2 + $0x34] sm:$0x3]
  %v4342 = vld [vmem:[#allocation2 + $0x3c] sm:$0x3]
  %v4343 = vld [vmem:[#allocation2 + $0x54] sm:$0x3]
  %v4344 = vld [vmem:[#allocation2 + $0x5c] sm:$0x3]
  %v4345 = vld [vmem:[#allocation2 + $0x64] sm:$0x3]
  %v4346 = vld [vmem:[#allocation2 + $0x6c] sm:$0x3]
  %v4347 = vld [vmem:[#allocation2 + $0x74] sm:$0x3]
  %v4348 = vld [vmem:[#allocation2 + $0x7c] sm:$0x3]
  %v4349 = vld [vmem:[#allocation2 + $0x84] sm:$0x3]
  %v4350 = vld [vmem:[#allocation2 + $0x8c] sm:$0x3]
  %v4351 = vld [vmem:[%s1775] sm:$0xf]
  %v4352 = vld [vmem:[%s1775 + $0x4] sm:$0x1]
  %v4353 = vld [vmem:[%s1775 + $0x8] sm:$0xf]
  %v4354 = vld [vmem:[%s1775 + $0xc] sm:$0x1]
  %v4355 = vld [vmem:[%s1775 + $0x10] sm:$0xf]
  %v4356 = vld [vmem:[%s1775 + $0x14] sm:$0x1]
  %v4357 = vld [vmem:[%s1775 + $0x18] sm:$0xf]
  %v4358 = vld [vmem:[%s1775 + $0x1c] sm:$0x1]
  %v4359 = vld [vmem:[%s1775 + $0x20] sm:$0xf]
  %v4360 = vld [vmem:[%s1775 + $0x24] sm:$0x1]
  %v4361 = vld [vmem:[%s1775 + $0x28] sm:$0xf]
  %v4362 = vld [vmem:[%s1775 + $0x2c] sm:$0x1]
  %v4363 = vld [vmem:[%s1775 + $0x30] sm:$0xf]
  %v4364 = vld [vmem:[%s1775 + $0x34] sm:$0x1]
  %v4365 = vld [vmem:[%s1775 + $0x38] sm:$0xf]
  %v4366 = vld [vmem:[%s1775 + $0x3c] sm:$0x1]
  %v4367 = vld [vmem:[%s1775 + $0x50] sm:$0xf]
  %v4368 = vld [vmem:[%s1775 + $0x54] sm:$0x1]
  %v4369 = vld [vmem:[%s1775 + $0x58] sm:$0xf]
  %v4370 = vld [vmem:[%s1775 + $0x5c] sm:$0x1]
  %v4371 = vld [vmem:[%s1775 + $0x60] sm:$0xf]
  %v4372 = vld [vmem:[%s1775 + $0x64] sm:$0x1]
  %v4373 = vld [vmem:[%s1775 + $0x68] sm:$0xf]
  %v4374 = vld [vmem:[%s1775 + $0x6c] sm:$0x1]
  %v4375 = vld [vmem:[%s1775 + $0x70] sm:$0xf]
  %v4376 = vld [vmem:[%s1775 + $0x74] sm:$0x1]
  %v4377 = vld [vmem:[%s1775 + $0x78] sm:$0xf]
  %v4378 = vld [vmem:[%s1775 + $0x7c] sm:$0x1]
  %v4379 = vld [vmem:[%s1775 + $0x80] sm:$0xf]
  %v4380 = vld [vmem:[%s1775 + $0x84] sm:$0x1]
  %v4381 = vld [vmem:[%s1775 + $0x88] sm:$0xf]
  %v4382 = vld [vmem:[%s1775 + $0x8c] sm:$0x1]
  %v4383 = vld [vmem:[%s1775] sm:$0xe]
  %v4384 = vld [vmem:[%s1775 + $0x8] sm:$0xe]
  %v4385 = vld [vmem:[%s1775 + $0x10] sm:$0xe]
  %v4386 = vld [vmem:[%s1775 + $0x18] sm:$0xe]
  %v4387 = vld [vmem:[%s1775 + $0x20] sm:$0xe]
  %v4388 = vld [vmem:[%s1775 + $0x28] sm:$0xe]
  %v4389 = vld [vmem:[%s1775 + $0x30] sm:$0xe]
  %v4390 = vld [vmem:[%s1775 + $0x38] sm:$0xe]
  %v4391 = vld [vmem:[%s1775 + $0x50] sm:$0xe]
  %v4392 = vld [vmem:[%s1775 + $0x58] sm:$0xe]
  %v4393 = vld [vmem:[%s1775 + $0x60] sm:$0xe]
  %v4394 = vld [vmem:[%s1775 + $0x68] sm:$0xe]
  %v4395 = vld [vmem:[%s1775 + $0x70] sm:$0xe]
  %v4396 = vld [vmem:[%s1775 + $0x78] sm:$0xe]
  %v4397 = vld [vmem:[%s1775 + $0x80] sm:$0xe]
  %v4398 = vld [vmem:[%s1775 + $0x88] sm:$0xe]
  %v4399 = vld [vmem:[%s1775 + $0x4] sm:$0x3]
  %v4400 = vld [vmem:[%s1775 + $0xc] sm:$0x3]
  %v4401 = vld [vmem:[%s1775 + $0x14] sm:$0x3]
  %v4402 = vld [vmem:[%s1775 + $0x1c] sm:$0x3]
  %v4403 = vld [vmem:[%s1775 + $0x24] sm:$0x3]
  %v4404 = vld [vmem:[%s1775 + $0x2c] sm:$0x3]
  %v4405 = vld [vmem:[%s1775 + $0x34] sm:$0x3]
  %v4406 = vld [vmem:[%s1775 + $0x3c] sm:$0x3]
  %v4407 = vld [vmem:[%s1775 + $0x54] sm:$0x3]
  %v4408 = vld [vmem:[%s1775 + $0x5c] sm:$0x3]
  %v4409 = vld [vmem:[%s1775 + $0x64] sm:$0x3]
  %v4410 = vld [vmem:[%s1775 + $0x6c] sm:$0x3]
  %v4411 = vld [vmem:[%s1775 + $0x74] sm:$0x3]
  %v4412 = vld [vmem:[%s1775 + $0x7c] sm:$0x3]
  %v4413 = vld [vmem:[%s1775 + $0x84] sm:$0x3]
  %v4414 = vld [vmem:[%s1775 + $0x8c] sm:$0x3]
  %v4415 = vld [vmem:[%s1937] sm:$0xf]
  %v4416 = vld [vmem:[%s1937 + $0x4] sm:$0x1]
  %v4417 = vld [vmem:[%s1937 + $0x8] sm:$0xf]
  %v4418 = vld [vmem:[%s1937 + $0xc] sm:$0x1]
  %v4419 = vld [vmem:[%s1937 + $0x10] sm:$0xf]
  %v4420 = vld [vmem:[%s1937 + $0x14] sm:$0x1]
  %v4421 = vld [vmem:[%s1937 + $0x18] sm:$0xf]
  %v4422 = vld [vmem:[%s1937 + $0x1c] sm:$0x1]
  %v4423 = vld [vmem:[%s1937 + $0x20] sm:$0xf]
  %v4424 = vld [vmem:[%s1937 + $0x24] sm:$0x1]
  %v4425 = vld [vmem:[%s1937 + $0x28] sm:$0xf]
  %v4426 = vld [vmem:[%s1937 + $0x2c] sm:$0x1]
  %v4427 = vld [vmem:[%s1937 + $0x30] sm:$0xf]
  %v4428 = vld [vmem:[%s1937 + $0x34] sm:$0x1]
  %v4429 = vld [vmem:[%s1937 + $0x38] sm:$0xf]
  %v4430 = vld [vmem:[%s1937 + $0x3c] sm:$0x1]
  %v4431 = vld [vmem:[%s1937 + $0x50] sm:$0xf]
  %v4432 = vld [vmem:[%s1937 + $0x54] sm:$0x1]
  %v4433 = vld [vmem:[%s1937 + $0x58] sm:$0xf]
  %v4434 = vld [vmem:[%s1937 + $0x5c] sm:$0x1]
  %v4435 = vld [vmem:[%s1937 + $0x60] sm:$0xf]
  %v4436 = vld [vmem:[%s1937 + $0x64] sm:$0x1]
  %v4437 = vld [vmem:[%s1937 + $0x68] sm:$0xf]
  %v4438 = vld [vmem:[%s1937 + $0x6c] sm:$0x1]
  %v4439 = vld [vmem:[%s1937 + $0x70] sm:$0xf]
  %v4440 = vld [vmem:[%s1937 + $0x74] sm:$0x1]
  %v4441 = vld [vmem:[%s1937 + $0x78] sm:$0xf]
  %v4442 = vld [vmem:[%s1937 + $0x7c] sm:$0x1]
  %v4443 = vld [vmem:[%s1937 + $0x80] sm:$0xf]
  %v4444 = vld [vmem:[%s1937 + $0x84] sm:$0x1]
  %v4445 = vld [vmem:[%s1937 + $0x88] sm:$0xf]
  %v4446 = vld [vmem:[%s1937 + $0x8c] sm:$0x1]
  %v4447 = vld [vmem:[%s1937] sm:$0xe]
  %v4448 = vld [vmem:[%s1937 + $0x8] sm:$0xe]
  %v4449 = vld [vmem:[%s1937 + $0x10] sm:$0xe]
  %v4450 = vld [vmem:[%s1937 + $0x18] sm:$0xe]
  %v4451 = vld [vmem:[%s1937 + $0x20] sm:$0xe]
  %v4452 = vld [vmem:[%s1937 + $0x28] sm:$0xe]
  %v4453 = vld [vmem:[%s1937 + $0x30] sm:$0xe]
  %v4454 = vld [vmem:[%s1937 + $0x38] sm:$0xe]
  %v4455 = vld [vmem:[%s1937 + $0x50] sm:$0xe]
  %v4456 = vld [vmem:[%s1937 + $0x58] sm:$0xe]
  %v4457 = vld [vmem:[%s1937 + $0x60] sm:$0xe]
  %v4458 = vld [vmem:[%s1937 + $0x68] sm:$0xe]
  %v4459 = vld [vmem:[%s1937 + $0x70] sm:$0xe]
  %v4460 = vld [vmem:[%s1937 + $0x78] sm:$0xe]
  %v4461 = vld [vmem:[%s1937 + $0x80] sm:$0xe]
  %v4462 = vld [vmem:[%s1937 + $0x88] sm:$0xe]
  %v4463 = vld [vmem:[%s1937 + $0x4] sm:$0x3]
  %v4464 = vld [vmem:[%s1937 + $0xc] sm:$0x3]
  %v4465 = vld [vmem:[%s1937 + $0x14] sm:$0x3]
  %v4466 = vld [vmem:[%s1937 + $0x1c] sm:$0x3]
  %v4467 = vld [vmem:[%s1937 + $0x24] sm:$0x3]
  %v4468 = vld [vmem:[%s1937 + $0x2c] sm:$0x3]
  %v4469 = vld [vmem:[%s1937 + $0x34] sm:$0x3]
  %v4470 = vld [vmem:[%s1937 + $0x3c] sm:$0x3]
  %v4471 = vld [vmem:[%s1937 + $0x54] sm:$0x3]
  %v4472 = vld [vmem:[%s1937 + $0x5c] sm:$0x3]
  %v4473 = vld [vmem:[%s1937 + $0x64] sm:$0x3]
  %v4474 = vld [vmem:[%s1937 + $0x6c] sm:$0x3]
  %v4475 = vld [vmem:[%s1937 + $0x74] sm:$0x3]
  %v4476 = vld [vmem:[%s1937 + $0x7c] sm:$0x3]
  %v4477 = vld [vmem:[%s1937 + $0x84] sm:$0x3]
  %v4478 = vld [vmem:[%s1937 + $0x8c] sm:$0x3]
  %v4511 = vunpack.c.l.b16 %v4287
  %v4512 = vunpack.c.l.b16 %v4288
  %v4513 = vunpack.c.l.b16 %v4289
  %v4514 = vunpack.c.l.b16 %v4290
  %v4515 = vunpack.c.l.b16 %v4291
  %v4516 = vunpack.c.l.b16 %v4292
  %v4517 = vunpack.c.l.b16 %v4293
  %v4518 = vunpack.c.l.b16 %v4294
  %v4519 = vunpack.c.l.b16 %v4295
  %v4520 = vunpack.c.l.b16 %v4296
  %v4521 = vunpack.c.l.b16 %v4297
  %v4522 = vunpack.c.l.b16 %v4298
  %v4523 = vunpack.c.l.b16 %v4299
  %v4524 = vunpack.c.l.b16 %v4300
  %v4525 = vunpack.c.l.b16 %v4301
  %v4526 = vunpack.c.l.b16 %v4302
  %v4527 = vunpack.c.l.b16 %v4303
  %v4528 = vunpack.c.l.b16 %v4304
  %v4529 = vunpack.c.l.b16 %v4305
  %v4530 = vunpack.c.l.b16 %v4306
  %v4531 = vunpack.c.l.b16 %v4307
  %v4532 = vunpack.c.l.b16 %v4308
  %v4533 = vunpack.c.l.b16 %v4309
  %v4534 = vunpack.c.l.b16 %v4310
  %v4535 = vunpack.c.l.b16 %v4311
  %v4536 = vunpack.c.l.b16 %v4312
  %v4537 = vunpack.c.l.b16 %v4313
  %v4538 = vunpack.c.l.b16 %v4314
  %v4539 = vunpack.c.l.b16 %v4315
  %v4540 = vunpack.c.l.b16 %v4316
  %v4541 = vunpack.c.l.b16 %v4317
  %v4542 = vunpack.c.l.b16 %v4318
  %v4543 = vpack.c.b16 %v4512, %v4511
  %v4544 = vpack.c.b16 %v4514, %v4513
  %v4545 = vpack.c.b16 %v4516, %v4515
  %v4546 = vpack.c.b16 %v4518, %v4517
  %v4547 = vpack.c.b16 %v4520, %v4519
  %v4548 = vpack.c.b16 %v4522, %v4521
  %v4549 = vpack.c.b16 %v4524, %v4523
  %v4550 = vpack.c.b16 %v4526, %v4525
  %v4551 = vpack.c.b16 %v4528, %v4527
  %v4552 = vpack.c.b16 %v4530, %v4529
  %v4553 = vpack.c.b16 %v4532, %v4531
  %v4554 = vpack.c.b16 %v4534, %v4533
  %v4555 = vpack.c.b16 %v4536, %v4535
  %v4556 = vpack.c.b16 %v4538, %v4537
  %v4557 = vpack.c.b16 %v4540, %v4539
  %v4558 = vpack.c.b16 %v4542, %v4541
  %v4575 = vunpack.c.l.b16 %v4319
  %v4576 = vunpack.c.l.b16 %v4320
  %v4577 = vunpack.c.l.b16 %v4321
  %v4578 = vunpack.c.l.b16 %v4322
  %v4579 = vunpack.c.l.b16 %v4323
  %v4580 = vunpack.c.l.b16 %v4324
  %v4581 = vunpack.c.l.b16 %v4325
  %v4582 = vunpack.c.l.b16 %v4326
  %v4583 = vunpack.c.l.b16 %v4327
  %v4584 = vunpack.c.l.b16 %v4328
  %v4585 = vunpack.c.l.b16 %v4329
  %v4586 = vunpack.c.l.b16 %v4330
  %v4587 = vunpack.c.l.b16 %v4331
  %v4588 = vunpack.c.l.b16 %v4332
  %v4589 = vunpack.c.l.b16 %v4333
  %v4590 = vunpack.c.l.b16 %v4334
  %v4591 = vpack.c.b16 %v4512, %v4575
  %v4592 = vpack.c.b16 %v4514, %v4576
  %v4593 = vpack.c.b16 %v4516, %v4577
  %v4594 = vpack.c.b16 %v4518, %v4578
  %v4595 = vpack.c.b16 %v4520, %v4579
  %v4596 = vpack.c.b16 %v4522, %v4580
  %v4597 = vpack.c.b16 %v4524, %v4581
  %v4598 = vpack.c.b16 %v4526, %v4582
  %v4599 = vpack.c.b16 %v4528, %v4583
  %v4600 = vpack.c.b16 %v4530, %v4584
  %v4601 = vpack.c.b16 %v4532, %v4585
  %v4602 = vpack.c.b16 %v4534, %v4586
  %v4603 = vpack.c.b16 %v4536, %v4587
  %v4604 = vpack.c.b16 %v4538, %v4588
  %v4605 = vpack.c.b16 %v4540, %v4589
  %v4606 = vpack.c.b16 %v4542, %v4590
  %v4608 = vshrl.u32 %v4591, 16
  %v4610 = vshll.u32 %v4591, 16
  %v4612 = vrot.slane %v4610, 1
  %v4613 = vor.u32 %v4608, %v4612
  %v4615 = vshrl.u32 %v4592, 16
  %v4617 = vshll.u32 %v4592, 16
  %v4619 = vrot.slane %v4617, 1
  %v4620 = vor.u32 %v4615, %v4619
  %v4622 = vshrl.u32 %v4593, 16
  %v4624 = vshll.u32 %v4593, 16
  %v4626 = vrot.slane %v4624, 1
  %v4627 = vor.u32 %v4622, %v4626
  %v4629 = vshrl.u32 %v4594, 16
  %v4631 = vshll.u32 %v4594, 16
  %v4633 = vrot.slane %v4631, 1
  %v4634 = vor.u32 %v4629, %v4633
  %v4636 = vshrl.u32 %v4595, 16
  %v4638 = vshll.u32 %v4595, 16
  %v4640 = vrot.slane %v4638, 1
  %v4641 = vor.u32 %v4636, %v4640
  %v4643 = vshrl.u32 %v4596, 16
  %v4645 = vshll.u32 %v4596, 16
  %v4647 = vrot.slane %v4645, 1
  %v4648 = vor.u32 %v4643, %v4647
  %v4650 = vshrl.u32 %v4597, 16
  %v4652 = vshll.u32 %v4597, 16
  %v4654 = vrot.slane %v4652, 1
  %v4655 = vor.u32 %v4650, %v4654
  %v4657 = vshrl.u32 %v4598, 16
  %v4659 = vshll.u32 %v4598, 16
  %v4661 = vrot.slane %v4659, 1
  %v4662 = vor.u32 %v4657, %v4661
  %v4664 = vshrl.u32 %v4599, 16
  %v4666 = vshll.u32 %v4599, 16
  %v4668 = vrot.slane %v4666, 1
  %v4669 = vor.u32 %v4664, %v4668
  %v4671 = vshrl.u32 %v4600, 16
  %v4673 = vshll.u32 %v4600, 16
  %v4675 = vrot.slane %v4673, 1
  %v4676 = vor.u32 %v4671, %v4675
  %v4678 = vshrl.u32 %v4601, 16
  %v4680 = vshll.u32 %v4601, 16
  %v4682 = vrot.slane %v4680, 1
  %v4683 = vor.u32 %v4678, %v4682
  %v4685 = vshrl.u32 %v4602, 16
  %v4687 = vshll.u32 %v4602, 16
  %v4689 = vrot.slane %v4687, 1
  %v4690 = vor.u32 %v4685, %v4689
  %v4692 = vshrl.u32 %v4603, 16
  %v4694 = vshll.u32 %v4603, 16
  %v4696 = vrot.slane %v4694, 1
  %v4697 = vor.u32 %v4692, %v4696
  %v4699 = vshrl.u32 %v4604, 16
  %v4701 = vshll.u32 %v4604, 16
  %v4703 = vrot.slane %v4701, 1
  %v4704 = vor.u32 %v4699, %v4703
  %v4706 = vshrl.u32 %v4605, 16
  %v4708 = vshll.u32 %v4605, 16
  %v4710 = vrot.slane %v4708, 1
  %v4711 = vor.u32 %v4706, %v4710
  %v4713 = vshrl.u32 %v4606, 16
  %v4715 = vshll.u32 %v4606, 16
  %v4717 = vrot.slane %v4715, 1
  %v4718 = vor.u32 %v4713, %v4717
  %4719 = vrot.lane.b32.xlu0 %v4613, 8
  %v4720 = vpop.permute.xlu0 %4719
  %4721 = vrot.lane.b32.xlu0 %v4620, 8
  %v4722 = vpop.permute.xlu0 %4721
  %4723 = vrot.lane.b32.xlu0 %v4627, 8
  %v4724 = vpop.permute.xlu0 %4723
  %4725 = vrot.lane.b32.xlu0 %v4634, 8
  %v4726 = vpop.permute.xlu0 %4725
  %4727 = vrot.lane.b32.xlu0 %v4641, 8
  %v4728 = vpop.permute.xlu0 %4727
  %4729 = vrot.lane.b32.xlu0 %v4648, 8
  %v4730 = vpop.permute.xlu0 %4729
  %4731 = vrot.lane.b32.xlu0 %v4655, 8
  %v4732 = vpop.permute.xlu0 %4731
  %4733 = vrot.lane.b32.xlu0 %v4662, 8
  %v4734 = vpop.permute.xlu0 %4733
  %4735 = vrot.lane.b32.xlu0 %v4669, 8
  %v4736 = vpop.permute.xlu0 %4735
  %4737 = vrot.lane.b32.xlu0 %v4676, 8
  %v4738 = vpop.permute.xlu0 %4737
  %4739 = vrot.lane.b32.xlu0 %v4683, 8
  %v4740 = vpop.permute.xlu0 %4739
  %4741 = vrot.lane.b32.xlu0 %v4690, 8
  %v4742 = vpop.permute.xlu0 %4741
  %4743 = vrot.lane.b32.xlu0 %v4697, 8
  %v4744 = vpop.permute.xlu0 %4743
  %4745 = vrot.lane.b32.xlu0 %v4704, 8
  %v4746 = vpop.permute.xlu0 %4745
  %4747 = vrot.lane.b32.xlu0 %v4711, 8
  %v4748 = vpop.permute.xlu0 %4747
  %4749 = vrot.lane.b32.xlu0 %v4718, 8
  %v4750 = vpop.permute.xlu0 %4749
  %v4767 = vunpack.c.l.b16 %v4335
  %v4768 = vunpack.c.l.b16 %v4336
  %v4769 = vunpack.c.l.b16 %v4337
  %v4770 = vunpack.c.l.b16 %v4338
  %v4771 = vunpack.c.l.b16 %v4339
  %v4772 = vunpack.c.l.b16 %v4340
  %v4773 = vunpack.c.l.b16 %v4341
  %v4774 = vunpack.c.l.b16 %v4342
  %v4775 = vunpack.c.l.b16 %v4343
  %v4776 = vunpack.c.l.b16 %v4344
  %v4777 = vunpack.c.l.b16 %v4345
  %v4778 = vunpack.c.l.b16 %v4346
  %v4779 = vunpack.c.l.b16 %v4347
  %v4780 = vunpack.c.l.b16 %v4348
  %v4781 = vunpack.c.l.b16 %v4349
  %v4782 = vunpack.c.l.b16 %v4350
  %v4783 = vpack.c.b16 %v4767, %v4575
  %v4784 = vpack.c.b16 %v4768, %v4576
  %v4785 = vpack.c.b16 %v4769, %v4577
  %v4786 = vpack.c.b16 %v4770, %v4578
  %v4787 = vpack.c.b16 %v4771, %v4579
  %v4788 = vpack.c.b16 %v4772, %v4580
  %v4789 = vpack.c.b16 %v4773, %v4581
  %v4790 = vpack.c.b16 %v4774, %v4582
  %v4791 = vpack.c.b16 %v4775, %v4583
  %v4792 = vpack.c.b16 %v4776, %v4584
  %v4793 = vpack.c.b16 %v4777, %v4585
  %v4794 = vpack.c.b16 %v4778, %v4586
  %v4795 = vpack.c.b16 %v4779, %v4587
  %v4796 = vpack.c.b16 %v4780, %v4588
  %v4797 = vpack.c.b16 %v4781, %v4589
  %v4798 = vpack.c.b16 %v4782, %v4590
  %v4799 = vrot.slane %v4783, 1
  %v4800 = vrot.slane %v4784, 1
  %v4801 = vrot.slane %v4785, 1
  %v4802 = vrot.slane %v4786, 1
  %v4803 = vrot.slane %v4787, 1
  %v4804 = vrot.slane %v4788, 1
  %v4805 = vrot.slane %v4789, 1
  %v4806 = vrot.slane %v4790, 1
  %v4807 = vrot.slane %v4791, 1
  %v4808 = vrot.slane %v4792, 1
  %v4809 = vrot.slane %v4793, 1
  %v4810 = vrot.slane %v4794, 1
  %v4811 = vrot.slane %v4795, 1
  %v4812 = vrot.slane %v4796, 1
  %v4813 = vrot.slane %v4797, 1
  %v4814 = vrot.slane %v4798, 1
  %4815 = vrot.lane.b32.xlu0 %v4799, 16
  %v4816 = vpop.permute.xlu0 %4815
  %4817 = vrot.lane.b32.xlu0 %v4800, 16
  %v4818 = vpop.permute.xlu0 %4817
  %4819 = vrot.lane.b32.xlu0 %v4801, 16
  %v4820 = vpop.permute.xlu0 %4819
  %4821 = vrot.lane.b32.xlu0 %v4802, 16
  %v4822 = vpop.permute.xlu0 %4821
  %4823 = vrot.lane.b32.xlu0 %v4803, 16
  %v4824 = vpop.permute.xlu0 %4823
  %4825 = vrot.lane.b32.xlu0 %v4804, 16
  %v4826 = vpop.permute.xlu0 %4825
  %4827 = vrot.lane.b32.xlu0 %v4805, 16
  %v4828 = vpop.permute.xlu0 %4827
  %4829 = vrot.lane.b32.xlu0 %v4806, 16
  %v4830 = vpop.permute.xlu0 %4829
  %4831 = vrot.lane.b32.xlu0 %v4807, 16
  %v4832 = vpop.permute.xlu0 %4831
  %4833 = vrot.lane.b32.xlu0 %v4808, 16
  %v4834 = vpop.permute.xlu0 %4833
  %4835 = vrot.lane.b32.xlu0 %v4809, 16
  %v4836 = vpop.permute.xlu0 %4835
  %4837 = vrot.lane.b32.xlu0 %v4810, 16
  %v4838 = vpop.permute.xlu0 %4837
  %4839 = vrot.lane.b32.xlu0 %v4811, 16
  %v4840 = vpop.permute.xlu0 %4839
  %4841 = vrot.lane.b32.xlu0 %v4812, 16
  %v4842 = vpop.permute.xlu0 %4841
  %4843 = vrot.lane.b32.xlu0 %v4813, 16
  %v4844 = vpop.permute.xlu0 %4843
  %4845 = vrot.lane.b32.xlu0 %v4814, 16
  %v4846 = vpop.permute.xlu0 %4845
  %v4879 = vunpack.c.l.b16 %v4351
  %v4880 = vunpack.c.l.b16 %v4352
  %v4881 = vunpack.c.l.b16 %v4353
  %v4882 = vunpack.c.l.b16 %v4354
  %v4883 = vunpack.c.l.b16 %v4355
  %v4884 = vunpack.c.l.b16 %v4356
  %v4885 = vunpack.c.l.b16 %v4357
  %v4886 = vunpack.c.l.b16 %v4358
  %v4887 = vunpack.c.l.b16 %v4359
  %v4888 = vunpack.c.l.b16 %v4360
  %v4889 = vunpack.c.l.b16 %v4361
  %v4890 = vunpack.c.l.b16 %v4362
  %v4891 = vunpack.c.l.b16 %v4363
  %v4892 = vunpack.c.l.b16 %v4364
  %v4893 = vunpack.c.l.b16 %v4365
  %v4894 = vunpack.c.l.b16 %v4366
  %v4895 = vunpack.c.l.b16 %v4367
  %v4896 = vunpack.c.l.b16 %v4368
  %v4897 = vunpack.c.l.b16 %v4369
  %v4898 = vunpack.c.l.b16 %v4370
  %v4899 = vunpack.c.l.b16 %v4371
  %v4900 = vunpack.c.l.b16 %v4372
  %v4901 = vunpack.c.l.b16 %v4373
  %v4902 = vunpack.c.l.b16 %v4374
  %v4903 = vunpack.c.l.b16 %v4375
  %v4904 = vunpack.c.l.b16 %v4376
  %v4905 = vunpack.c.l.b16 %v4377
  %v4906 = vunpack.c.l.b16 %v4378
  %v4907 = vunpack.c.l.b16 %v4379
  %v4908 = vunpack.c.l.b16 %v4380
  %v4909 = vunpack.c.l.b16 %v4381
  %v4910 = vunpack.c.l.b16 %v4382
  %v4911 = vpack.c.b16 %v4880, %v4879
  %v4912 = vpack.c.b16 %v4882, %v4881
  %v4913 = vpack.c.b16 %v4884, %v4883
  %v4914 = vpack.c.b16 %v4886, %v4885
  %v4915 = vpack.c.b16 %v4888, %v4887
  %v4916 = vpack.c.b16 %v4890, %v4889
  %v4917 = vpack.c.b16 %v4892, %v4891
  %v4918 = vpack.c.b16 %v4894, %v4893
  %v4919 = vpack.c.b16 %v4896, %v4895
  %v4920 = vpack.c.b16 %v4898, %v4897
  %v4921 = vpack.c.b16 %v4900, %v4899
  %v4922 = vpack.c.b16 %v4902, %v4901
  %v4923 = vpack.c.b16 %v4904, %v4903
  %v4924 = vpack.c.b16 %v4906, %v4905
  %v4925 = vpack.c.b16 %v4908, %v4907
  %v4926 = vpack.c.b16 %v4910, %v4909
  %4927 = vrot.lane.b32.xlu0 %v4911, 24
  %v4928 = vpop.permute.xlu0 %4927
  %4929 = vrot.lane.b32.xlu0 %v4912, 24
  %v4930 = vpop.permute.xlu0 %4929
  %4931 = vrot.lane.b32.xlu0 %v4913, 24
  %v4932 = vpop.permute.xlu0 %4931
  %4933 = vrot.lane.b32.xlu0 %v4914, 24
  %v4934 = vpop.permute.xlu0 %4933
  %4935 = vrot.lane.b32.xlu0 %v4915, 24
  %v4936 = vpop.permute.xlu0 %4935
  %4937 = vrot.lane.b32.xlu0 %v4916, 24
  %v4938 = vpop.permute.xlu0 %4937
  %4939 = vrot.lane.b32.xlu0 %v4917, 24
  %v4940 = vpop.permute.xlu0 %4939
  %4941 = vrot.lane.b32.xlu0 %v4918, 24
  %v4942 = vpop.permute.xlu0 %4941
  %4943 = vrot.lane.b32.xlu0 %v4919, 24
  %v4944 = vpop.permute.xlu0 %4943
  %4945 = vrot.lane.b32.xlu0 %v4920, 24
  %v4946 = vpop.permute.xlu0 %4945
  %4947 = vrot.lane.b32.xlu0 %v4921, 24
  %v4948 = vpop.permute.xlu0 %4947
  %4949 = vrot.lane.b32.xlu0 %v4922, 24
  %v4950 = vpop.permute.xlu0 %4949
  %4951 = vrot.lane.b32.xlu0 %v4923, 24
  %v4952 = vpop.permute.xlu0 %4951
  %4953 = vrot.lane.b32.xlu0 %v4924, 24
  %v4954 = vpop.permute.xlu0 %4953
  %4955 = vrot.lane.b32.xlu0 %v4925, 24
  %v4956 = vpop.permute.xlu0 %4955
  %4957 = vrot.lane.b32.xlu0 %v4926, 24
  %v4958 = vpop.permute.xlu0 %4957
  %v4975 = vunpack.c.l.b16 %v4383
  %v4976 = vunpack.c.l.b16 %v4384
  %v4977 = vunpack.c.l.b16 %v4385
  %v4978 = vunpack.c.l.b16 %v4386
  %v4979 = vunpack.c.l.b16 %v4387
  %v4980 = vunpack.c.l.b16 %v4388
  %v4981 = vunpack.c.l.b16 %v4389
  %v4982 = vunpack.c.l.b16 %v4390
  %v4983 = vunpack.c.l.b16 %v4391
  %v4984 = vunpack.c.l.b16 %v4392
  %v4985 = vunpack.c.l.b16 %v4393
  %v4986 = vunpack.c.l.b16 %v4394
  %v4987 = vunpack.c.l.b16 %v4395
  %v4988 = vunpack.c.l.b16 %v4396
  %v4989 = vunpack.c.l.b16 %v4397
  %v4990 = vunpack.c.l.b16 %v4398
  %v4991 = vpack.c.b16 %v4880, %v4975
  %v4992 = vpack.c.b16 %v4882, %v4976
  %v4993 = vpack.c.b16 %v4884, %v4977
  %v4994 = vpack.c.b16 %v4886, %v4978
  %v4995 = vpack.c.b16 %v4888, %v4979
  %v4996 = vpack.c.b16 %v4890, %v4980
  %v4997 = vpack.c.b16 %v4892, %v4981
  %v4998 = vpack.c.b16 %v4894, %v4982
  %v4999 = vpack.c.b16 %v4896, %v4983
  %v5000 = vpack.c.b16 %v4898, %v4984
  %v5001 = vpack.c.b16 %v4900, %v4985
  %v5002 = vpack.c.b16 %v4902, %v4986
  %v5003 = vpack.c.b16 %v4904, %v4987
  %v5004 = vpack.c.b16 %v4906, %v4988
  %v5005 = vpack.c.b16 %v4908, %v4989
  %v5006 = vpack.c.b16 %v4910, %v4990
  %v5008 = vshrl.u32 %v4991, 16
  %v5010 = vshll.u32 %v4991, 16
  %v5012 = vrot.slane %v5010, 1
  %v5013 = vor.u32 %v5008, %v5012
  %v5015 = vshrl.u32 %v4992, 16
  %v5017 = vshll.u32 %v4992, 16
  %v5019 = vrot.slane %v5017, 1
  %v5020 = vor.u32 %v5015, %v5019
  %v5022 = vshrl.u32 %v4993, 16
  %v5024 = vshll.u32 %v4993, 16
  %v5026 = vrot.slane %v5024, 1
  %v5027 = vor.u32 %v5022, %v5026
  %v5029 = vshrl.u32 %v4994, 16
  %v5031 = vshll.u32 %v4994, 16
  %v5033 = vrot.slane %v5031, 1
  %v5034 = vor.u32 %v5029, %v5033
  %v5036 = vshrl.u32 %v4995, 16
  %v5038 = vshll.u32 %v4995, 16
  %v5040 = vrot.slane %v5038, 1
  %v5041 = vor.u32 %v5036, %v5040
  %v5043 = vshrl.u32 %v4996, 16
  %v5045 = vshll.u32 %v4996, 16
  %v5047 = vrot.slane %v5045, 1
  %v5048 = vor.u32 %v5043, %v5047
  %v5050 = vshrl.u32 %v4997, 16
  %v5052 = vshll.u32 %v4997, 16
  %v5054 = vrot.slane %v5052, 1
  %v5055 = vor.u32 %v5050, %v5054
  %v5057 = vshrl.u32 %v4998, 16
  %v5059 = vshll.u32 %v4998, 16
  %v5061 = vrot.slane %v5059, 1
  %v5062 = vor.u32 %v5057, %v5061
  %v5064 = vshrl.u32 %v4999, 16
  %v5066 = vshll.u32 %v4999, 16
  %v5068 = vrot.slane %v5066, 1
  %v5069 = vor.u32 %v5064, %v5068
  %v5071 = vshrl.u32 %v5000, 16
  %v5073 = vshll.u32 %v5000, 16
  %v5075 = vrot.slane %v5073, 1
  %v5076 = vor.u32 %v5071, %v5075
  %v5078 = vshrl.u32 %v5001, 16
  %v5080 = vshll.u32 %v5001, 16
  %v5082 = vrot.slane %v5080, 1
  %v5083 = vor.u32 %v5078, %v5082
  %v5085 = vshrl.u32 %v5002, 16
  %v5087 = vshll.u32 %v5002, 16
  %v5089 = vrot.slane %v5087, 1
  %v5090 = vor.u32 %v5085, %v5089
  %v5092 = vshrl.u32 %v5003, 16
  %v5094 = vshll.u32 %v5003, 16
  %v5096 = vrot.slane %v5094, 1
  %v5097 = vor.u32 %v5092, %v5096
  %v5099 = vshrl.u32 %v5004, 16
  %v5101 = vshll.u32 %v5004, 16
  %v5103 = vrot.slane %v5101, 1
  %v5104 = vor.u32 %v5099, %v5103
  %v5106 = vshrl.u32 %v5005, 16
  %v5108 = vshll.u32 %v5005, 16
  %v5110 = vrot.slane %v5108, 1
  %v5111 = vor.u32 %v5106, %v5110
  %v5113 = vshrl.u32 %v5006, 16
  %v5115 = vshll.u32 %v5006, 16
  %v5117 = vrot.slane %v5115, 1
  %v5118 = vor.u32 %v5113, %v5117
  %5119 = vrot.lane.b32.xlu0 %v5013, 32
  %v5120 = vpop.permute.xlu0 %5119
  %5121 = vrot.lane.b32.xlu0 %v5020, 32
  %v5122 = vpop.permute.xlu0 %5121
  %5123 = vrot.lane.b32.xlu0 %v5027, 32
  %v5124 = vpop.permute.xlu0 %5123
  %5125 = vrot.lane.b32.xlu0 %v5034, 32
  %v5126 = vpop.permute.xlu0 %5125
  %5127 = vrot.lane.b32.xlu0 %v5041, 32
  %v5128 = vpop.permute.xlu0 %5127
  %5129 = vrot.lane.b32.xlu0 %v5048, 32
  %v5130 = vpop.permute.xlu0 %5129
  %5131 = vrot.lane.b32.xlu0 %v5055, 32
  %v5132 = vpop.permute.xlu0 %5131
  %5133 = vrot.lane.b32.xlu0 %v5062, 32
  %v5134 = vpop.permute.xlu0 %5133
  %5135 = vrot.lane.b32.xlu0 %v5069, 32
  %v5136 = vpop.permute.xlu0 %5135
  %5137 = vrot.lane.b32.xlu0 %v5076, 32
  %v5138 = vpop.permute.xlu0 %5137
  %5139 = vrot.lane.b32.xlu0 %v5083, 32
  %v5140 = vpop.permute.xlu0 %5139
  %5141 = vrot.lane.b32.xlu0 %v5090, 32
  %v5142 = vpop.permute.xlu0 %5141
  %5143 = vrot.lane.b32.xlu0 %v5097, 32
  %v5144 = vpop.permute.xlu0 %5143
  %5145 = vrot.lane.b32.xlu0 %v5104, 32
  %v5146 = vpop.permute.xlu0 %5145
  %5147 = vrot.lane.b32.xlu0 %v5111, 32
  %v5148 = vpop.permute.xlu0 %5147
  %5149 = vrot.lane.b32.xlu0 %v5118, 32
  %v5150 = vpop.permute.xlu0 %5149
  %v5167 = vunpack.c.l.b16 %v4399
  %v5168 = vunpack.c.l.b16 %v4400
  %v5169 = vunpack.c.l.b16 %v4401
  %v5170 = vunpack.c.l.b16 %v4402
  %v5171 = vunpack.c.l.b16 %v4403
  %v5172 = vunpack.c.l.b16 %v4404
  %v5173 = vunpack.c.l.b16 %v4405
  %v5174 = vunpack.c.l.b16 %v4406
  %v5175 = vunpack.c.l.b16 %v4407
  %v5176 = vunpack.c.l.b16 %v4408
  %v5177 = vunpack.c.l.b16 %v4409
  %v5178 = vunpack.c.l.b16 %v4410
  %v5179 = vunpack.c.l.b16 %v4411
  %v5180 = vunpack.c.l.b16 %v4412
  %v5181 = vunpack.c.l.b16 %v4413
  %v5182 = vunpack.c.l.b16 %v4414
  %v5183 = vpack.c.b16 %v5167, %v4975
  %v5184 = vpack.c.b16 %v5168, %v4976
  %v5185 = vpack.c.b16 %v5169, %v4977
  %v5186 = vpack.c.b16 %v5170, %v4978
  %v5187 = vpack.c.b16 %v5171, %v4979
  %v5188 = vpack.c.b16 %v5172, %v4980
  %v5189 = vpack.c.b16 %v5173, %v4981
  %v5190 = vpack.c.b16 %v5174, %v4982
  %v5191 = vpack.c.b16 %v5175, %v4983
  %v5192 = vpack.c.b16 %v5176, %v4984
  %v5193 = vpack.c.b16 %v5177, %v4985
  %v5194 = vpack.c.b16 %v5178, %v4986
  %v5195 = vpack.c.b16 %v5179, %v4987
  %v5196 = vpack.c.b16 %v5180, %v4988
  %v5197 = vpack.c.b16 %v5181, %v4989
  %v5198 = vpack.c.b16 %v5182, %v4990
  %v5199 = vrot.slane %v5183, 1
  %v5200 = vrot.slane %v5184, 1
  %v5201 = vrot.slane %v5185, 1
  %v5202 = vrot.slane %v5186, 1
  %v5203 = vrot.slane %v5187, 1
  %v5204 = vrot.slane %v5188, 1
  %v5205 = vrot.slane %v5189, 1
  %v5206 = vrot.slane %v5190, 1
  %v5207 = vrot.slane %v5191, 1
  %v5208 = vrot.slane %v5192, 1
  %v5209 = vrot.slane %v5193, 1
  %v5210 = vrot.slane %v5194, 1
  %v5211 = vrot.slane %v5195, 1
  %v5212 = vrot.slane %v5196, 1
  %v5213 = vrot.slane %v5197, 1
  %v5214 = vrot.slane %v5198, 1
  %5215 = vrot.lane.b32.xlu0 %v5199, 40
  %v5216 = vpop.permute.xlu0 %5215
  %5217 = vrot.lane.b32.xlu0 %v5200, 40
  %v5218 = vpop.permute.xlu0 %5217
  %5219 = vrot.lane.b32.xlu0 %v5201, 40
  %v5220 = vpop.permute.xlu0 %5219
  %5221 = vrot.lane.b32.xlu0 %v5202, 40
  %v5222 = vpop.permute.xlu0 %5221
  %5223 = vrot.lane.b32.xlu0 %v5203, 40
  %v5224 = vpop.permute.xlu0 %5223
  %5225 = vrot.lane.b32.xlu0 %v5204, 40
  %v5226 = vpop.permute.xlu0 %5225
  %5227 = vrot.lane.b32.xlu0 %v5205, 40
  %v5228 = vpop.permute.xlu0 %5227
  %5229 = vrot.lane.b32.xlu0 %v5206, 40
  %v5230 = vpop.permute.xlu0 %5229
  %5231 = vrot.lane.b32.xlu0 %v5207, 40
  %v5232 = vpop.permute.xlu0 %5231
  %5233 = vrot.lane.b32.xlu0 %v5208, 40
  %v5234 = vpop.permute.xlu0 %5233
  %5235 = vrot.lane.b32.xlu0 %v5209, 40
  %v5236 = vpop.permute.xlu0 %5235
  %5237 = vrot.lane.b32.xlu0 %v5210, 40
  %v5238 = vpop.permute.xlu0 %5237
  %5239 = vrot.lane.b32.xlu0 %v5211, 40
  %v5240 = vpop.permute.xlu0 %5239
  %5241 = vrot.lane.b32.xlu0 %v5212, 40
  %v5242 = vpop.permute.xlu0 %5241
  %5243 = vrot.lane.b32.xlu0 %v5213, 40
  %v5244 = vpop.permute.xlu0 %5243
  %5245 = vrot.lane.b32.xlu0 %v5214, 40
  %v5246 = vpop.permute.xlu0 %5245
  %v5279 = vunpack.c.l.b16 %v4415
  %v5280 = vunpack.c.l.b16 %v4416
  %v5281 = vunpack.c.l.b16 %v4417
  %v5282 = vunpack.c.l.b16 %v4418
  %v5283 = vunpack.c.l.b16 %v4419
  %v5284 = vunpack.c.l.b16 %v4420
  %v5285 = vunpack.c.l.b16 %v4421
  %v5286 = vunpack.c.l.b16 %v4422
  %v5287 = vunpack.c.l.b16 %v4423
  %v5288 = vunpack.c.l.b16 %v4424
  %v5289 = vunpack.c.l.b16 %v4425
  %v5290 = vunpack.c.l.b16 %v4426
  %v5291 = vunpack.c.l.b16 %v4427
  %v5292 = vunpack.c.l.b16 %v4428
  %v5293 = vunpack.c.l.b16 %v4429
  %v5294 = vunpack.c.l.b16 %v4430
  %v5295 = vunpack.c.l.b16 %v4431
  %v5296 = vunpack.c.l.b16 %v4432
  %v5297 = vunpack.c.l.b16 %v4433
  %v5298 = vunpack.c.l.b16 %v4434
  %v5299 = vunpack.c.l.b16 %v4435
  %v5300 = vunpack.c.l.b16 %v4436
  %v5301 = vunpack.c.l.b16 %v4437
  %v5302 = vunpack.c.l.b16 %v4438
  %v5303 = vunpack.c.l.b16 %v4439
  %v5304 = vunpack.c.l.b16 %v4440
  %v5305 = vunpack.c.l.b16 %v4441
  %v5306 = vunpack.c.l.b16 %v4442
  %v5307 = vunpack.c.l.b16 %v4443
  %v5308 = vunpack.c.l.b16 %v4444
  %v5309 = vunpack.c.l.b16 %v4445
  %v5310 = vunpack.c.l.b16 %v4446
  %v5311 = vpack.c.b16 %v5280, %v5279
  %v5312 = vpack.c.b16 %v5282, %v5281
  %v5313 = vpack.c.b16 %v5284, %v5283
  %v5314 = vpack.c.b16 %v5286, %v5285
  %v5315 = vpack.c.b16 %v5288, %v5287
  %v5316 = vpack.c.b16 %v5290, %v5289
  %v5317 = vpack.c.b16 %v5292, %v5291
  %v5318 = vpack.c.b16 %v5294, %v5293
  %v5319 = vpack.c.b16 %v5296, %v5295
  %v5320 = vpack.c.b16 %v5298, %v5297
  %v5321 = vpack.c.b16 %v5300, %v5299
  %v5322 = vpack.c.b16 %v5302, %v5301
  %v5323 = vpack.c.b16 %v5304, %v5303
  %v5324 = vpack.c.b16 %v5306, %v5305
  %v5325 = vpack.c.b16 %v5308, %v5307
  %v5326 = vpack.c.b16 %v5310, %v5309
  %5327 = vrot.lane.b32.xlu0 %v5311, 48
  %v5328 = vpop.permute.xlu0 %5327
  %5329 = vrot.lane.b32.xlu0 %v5312, 48
  %v5330 = vpop.permute.xlu0 %5329
  %5331 = vrot.lane.b32.xlu0 %v5313, 48
  %v5332 = vpop.permute.xlu0 %5331
  %5333 = vrot.lane.b32.xlu0 %v5314, 48
  %v5334 = vpop.permute.xlu0 %5333
  %5335 = vrot.lane.b32.xlu0 %v5315, 48
  %v5336 = vpop.permute.xlu0 %5335
  %5337 = vrot.lane.b32.xlu0 %v5316, 48
  %v5338 = vpop.permute.xlu0 %5337
  %5339 = vrot.lane.b32.xlu0 %v5317, 48
  %v5340 = vpop.permute.xlu0 %5339
  %5341 = vrot.lane.b32.xlu0 %v5318, 48
  %v5342 = vpop.permute.xlu0 %5341
  %5343 = vrot.lane.b32.xlu0 %v5319, 48
  %v5344 = vpop.permute.xlu0 %5343
  %5345 = vrot.lane.b32.xlu0 %v5320, 48
  %v5346 = vpop.permute.xlu0 %5345
  %5347 = vrot.lane.b32.xlu0 %v5321, 48
  %v5348 = vpop.permute.xlu0 %5347
  %5349 = vrot.lane.b32.xlu0 %v5322, 48
  %v5350 = vpop.permute.xlu0 %5349
  %5351 = vrot.lane.b32.xlu0 %v5323, 48
  %v5352 = vpop.permute.xlu0 %5351
  %5353 = vrot.lane.b32.xlu0 %v5324, 48
  %v5354 = vpop.permute.xlu0 %5353
  %5355 = vrot.lane.b32.xlu0 %v5325, 48
  %v5356 = vpop.permute.xlu0 %5355
  %5357 = vrot.lane.b32.xlu0 %v5326, 48
  %v5358 = vpop.permute.xlu0 %5357
  %v5375 = vunpack.c.l.b16 %v4447
  %v5376 = vunpack.c.l.b16 %v4448
  %v5377 = vunpack.c.l.b16 %v4449
  %v5378 = vunpack.c.l.b16 %v4450
  %v5379 = vunpack.c.l.b16 %v4451
  %v5380 = vunpack.c.l.b16 %v4452
  %v5381 = vunpack.c.l.b16 %v4453
  %v5382 = vunpack.c.l.b16 %v4454
  %v5383 = vunpack.c.l.b16 %v4455
  %v5384 = vunpack.c.l.b16 %v4456
  %v5385 = vunpack.c.l.b16 %v4457
  %v5386 = vunpack.c.l.b16 %v4458
  %v5387 = vunpack.c.l.b16 %v4459
  %v5388 = vunpack.c.l.b16 %v4460
  %v5389 = vunpack.c.l.b16 %v4461
  %v5390 = vunpack.c.l.b16 %v4462
  %v5391 = vpack.c.b16 %v5280, %v5375
  %v5392 = vpack.c.b16 %v5282, %v5376
  %v5393 = vpack.c.b16 %v5284, %v5377
  %v5394 = vpack.c.b16 %v5286, %v5378
  %v5395 = vpack.c.b16 %v5288, %v5379
  %v5396 = vpack.c.b16 %v5290, %v5380
  %v5397 = vpack.c.b16 %v5292, %v5381
  %v5398 = vpack.c.b16 %v5294, %v5382
  %v5399 = vpack.c.b16 %v5296, %v5383
  %v5400 = vpack.c.b16 %v5298, %v5384
  %v5401 = vpack.c.b16 %v5300, %v5385
  %v5402 = vpack.c.b16 %v5302, %v5386
  %v5403 = vpack.c.b16 %v5304, %v5387
  %v5404 = vpack.c.b16 %v5306, %v5388
  %v5405 = vpack.c.b16 %v5308, %v5389
  %v5406 = vpack.c.b16 %v5310, %v5390
  %v5408 = vshrl.u32 %v5391, 16
  %v5410 = vshll.u32 %v5391, 16
  %v5412 = vrot.slane %v5410, 1
  %v5413 = vor.u32 %v5408, %v5412
  %v5415 = vshrl.u32 %v5392, 16
  %v5417 = vshll.u32 %v5392, 16
  %v5419 = vrot.slane %v5417, 1
  %v5420 = vor.u32 %v5415, %v5419
  %v5422 = vshrl.u32 %v5393, 16
  %v5424 = vshll.u32 %v5393, 16
  %v5426 = vrot.slane %v5424, 1
  %v5427 = vor.u32 %v5422, %v5426
  %v5429 = vshrl.u32 %v5394, 16
  %v5431 = vshll.u32 %v5394, 16
  %v5433 = vrot.slane %v5431, 1
  %v5434 = vor.u32 %v5429, %v5433
  %v5436 = vshrl.u32 %v5395, 16
  %v5438 = vshll.u32 %v5395, 16
  %v5440 = vrot.slane %v5438, 1
  %v5441 = vor.u32 %v5436, %v5440
  %v5443 = vshrl.u32 %v5396, 16
  %v5445 = vshll.u32 %v5396, 16
  %v5447 = vrot.slane %v5445, 1
  %v5448 = vor.u32 %v5443, %v5447
  %v5450 = vshrl.u32 %v5397, 16
  %v5452 = vshll.u32 %v5397, 16
  %v5454 = vrot.slane %v5452, 1
  %v5455 = vor.u32 %v5450, %v5454
  %v5457 = vshrl.u32 %v5398, 16
  %v5459 = vshll.u32 %v5398, 16
  %v5461 = vrot.slane %v5459, 1
  %v5462 = vor.u32 %v5457, %v5461
  %v5464 = vshrl.u32 %v5399, 16
  %v5466 = vshll.u32 %v5399, 16
  %v5468 = vrot.slane %v5466, 1
  %v5469 = vor.u32 %v5464, %v5468
  %v5471 = vshrl.u32 %v5400, 16
  %v5473 = vshll.u32 %v5400, 16
  %v5475 = vrot.slane %v5473, 1
  %v5476 = vor.u32 %v5471, %v5475
  %v5478 = vshrl.u32 %v5401, 16
  %v5480 = vshll.u32 %v5401, 16
  %v5482 = vrot.slane %v5480, 1
  %v5483 = vor.u32 %v5478, %v5482
  %v5485 = vshrl.u32 %v5402, 16
  %v5487 = vshll.u32 %v5402, 16
  %v5489 = vrot.slane %v5487, 1
  %v5490 = vor.u32 %v5485, %v5489
  %v5492 = vshrl.u32 %v5403, 16
  %v5494 = vshll.u32 %v5403, 16
  %v5496 = vrot.slane %v5494, 1
  %v5497 = vor.u32 %v5492, %v5496
  %v5499 = vshrl.u32 %v5404, 16
  %v5501 = vshll.u32 %v5404, 16
  %v5503 = vrot.slane %v5501, 1
  %v5504 = vor.u32 %v5499, %v5503
  %v5506 = vshrl.u32 %v5405, 16
  %v5508 = vshll.u32 %v5405, 16
  %v5510 = vrot.slane %v5508, 1
  %v5511 = vor.u32 %v5506, %v5510
  %v5513 = vshrl.u32 %v5406, 16
  %v5515 = vshll.u32 %v5406, 16
  %v5517 = vrot.slane %v5515, 1
  %v5518 = vor.u32 %v5513, %v5517
  %5519 = vrot.lane.b32.xlu0 %v5413, 56
  %v5520 = vpop.permute.xlu0 %5519
  %5521 = vrot.lane.b32.xlu0 %v5420, 56
  %v5522 = vpop.permute.xlu0 %5521
  %5523 = vrot.lane.b32.xlu0 %v5427, 56
  %v5524 = vpop.permute.xlu0 %5523
  %5525 = vrot.lane.b32.xlu0 %v5434, 56
  %v5526 = vpop.permute.xlu0 %5525
  %5527 = vrot.lane.b32.xlu0 %v5441, 56
  %v5528 = vpop.permute.xlu0 %5527
  %5529 = vrot.lane.b32.xlu0 %v5448, 56
  %v5530 = vpop.permute.xlu0 %5529
  %5531 = vrot.lane.b32.xlu0 %v5455, 56
  %v5532 = vpop.permute.xlu0 %5531
  %5533 = vrot.lane.b32.xlu0 %v5462, 56
  %v5534 = vpop.permute.xlu0 %5533
  %5535 = vrot.lane.b32.xlu0 %v5469, 56
  %v5536 = vpop.permute.xlu0 %5535
  %5537 = vrot.lane.b32.xlu0 %v5476, 56
  %v5538 = vpop.permute.xlu0 %5537
  %5539 = vrot.lane.b32.xlu0 %v5483, 56
  %v5540 = vpop.permute.xlu0 %5539
  %5541 = vrot.lane.b32.xlu0 %v5490, 56
  %v5542 = vpop.permute.xlu0 %5541
  %5543 = vrot.lane.b32.xlu0 %v5497, 56
  %v5544 = vpop.permute.xlu0 %5543
  %5545 = vrot.lane.b32.xlu0 %v5504, 56
  %v5546 = vpop.permute.xlu0 %5545
  %5547 = vrot.lane.b32.xlu0 %v5511, 56
  %v5548 = vpop.permute.xlu0 %5547
  %5549 = vrot.lane.b32.xlu0 %v5518, 56
  %v5550 = vpop.permute.xlu0 %5549
  %v5567 = vunpack.c.l.b16 %v4463
  %v5568 = vunpack.c.l.b16 %v4464
  %v5569 = vunpack.c.l.b16 %v4465
  %v5570 = vunpack.c.l.b16 %v4466
  %v5571 = vunpack.c.l.b16 %v4467
  %v5572 = vunpack.c.l.b16 %v4468
  %v5573 = vunpack.c.l.b16 %v4469
  %v5574 = vunpack.c.l.b16 %v4470
  %v5575 = vunpack.c.l.b16 %v4471
  %v5576 = vunpack.c.l.b16 %v4472
  %v5577 = vunpack.c.l.b16 %v4473
  %v5578 = vunpack.c.l.b16 %v4474
  %v5579 = vunpack.c.l.b16 %v4475
  %v5580 = vunpack.c.l.b16 %v4476
  %v5581 = vunpack.c.l.b16 %v4477
  %v5582 = vunpack.c.l.b16 %v4478
  %v5583 = vpack.c.b16 %v5567, %v5375
  %v5584 = vpack.c.b16 %v5568, %v5376
  %v5585 = vpack.c.b16 %v5569, %v5377
  %v5586 = vpack.c.b16 %v5570, %v5378
  %v5587 = vpack.c.b16 %v5571, %v5379
  %v5588 = vpack.c.b16 %v5572, %v5380
  %v5589 = vpack.c.b16 %v5573, %v5381
  %v5590 = vpack.c.b16 %v5574, %v5382
  %v5591 = vpack.c.b16 %v5575, %v5383
  %v5592 = vpack.c.b16 %v5576, %v5384
  %v5593 = vpack.c.b16 %v5577, %v5385
  %v5594 = vpack.c.b16 %v5578, %v5386
  %v5595 = vpack.c.b16 %v5579, %v5387
  %v5596 = vpack.c.b16 %v5580, %v5388
  %v5597 = vpack.c.b16 %v5581, %v5389
  %v5598 = vpack.c.b16 %v5582, %v5390
  %v5599 = vrot.slane %v5583, 1
  %v5600 = vrot.slane %v5584, 1
  %v5601 = vrot.slane %v5585, 1
  %v5602 = vrot.slane %v5586, 1
  %v5603 = vrot.slane %v5587, 1
  %v5604 = vrot.slane %v5588, 1
  %v5605 = vrot.slane %v5589, 1
  %v5606 = vrot.slane %v5590, 1
  %v5607 = vrot.slane %v5591, 1
  %v5608 = vrot.slane %v5592, 1
  %v5609 = vrot.slane %v5593, 1
  %v5610 = vrot.slane %v5594, 1
  %v5611 = vrot.slane %v5595, 1
  %v5612 = vrot.slane %v5596, 1
  %v5613 = vrot.slane %v5597, 1
  %v5614 = vrot.slane %v5598, 1
  %5615 = vrot.lane.b32.xlu0 %v5599, 64
  %v5616 = vpop.permute.xlu0 %5615
  %5617 = vrot.lane.b32.xlu0 %v5600, 64
  %v5618 = vpop.permute.xlu0 %5617
  %5619 = vrot.lane.b32.xlu0 %v5601, 64
  %v5620 = vpop.permute.xlu0 %5619
  %5621 = vrot.lane.b32.xlu0 %v5602, 64
  %v5622 = vpop.permute.xlu0 %5621
  %5623 = vrot.lane.b32.xlu0 %v5603, 64
  %v5624 = vpop.permute.xlu0 %5623
  %5625 = vrot.lane.b32.xlu0 %v5604, 64
  %v5626 = vpop.permute.xlu0 %5625
  %5627 = vrot.lane.b32.xlu0 %v5605, 64
  %v5628 = vpop.permute.xlu0 %5627
  %5629 = vrot.lane.b32.xlu0 %v5606, 64
  %v5630 = vpop.permute.xlu0 %5629
  %5631 = vrot.lane.b32.xlu0 %v5607, 64
  %v5632 = vpop.permute.xlu0 %5631
  %5633 = vrot.lane.b32.xlu0 %v5608, 64
  %v5634 = vpop.permute.xlu0 %5633
  %5635 = vrot.lane.b32.xlu0 %v5609, 64
  %v5636 = vpop.permute.xlu0 %5635
  %5637 = vrot.lane.b32.xlu0 %v5610, 64
  %v5638 = vpop.permute.xlu0 %5637
  %5639 = vrot.lane.b32.xlu0 %v5611, 64
  %v5640 = vpop.permute.xlu0 %5639
  %5641 = vrot.lane.b32.xlu0 %v5612, 64
  %v5642 = vpop.permute.xlu0 %5641
  %5643 = vrot.lane.b32.xlu0 %v5613, 64
  %v5644 = vpop.permute.xlu0 %5643
  %5645 = vrot.lane.b32.xlu0 %v5614, 64
  %v5646 = vpop.permute.xlu0 %5645
  %v5649 = vsel %vm1041, %v4543, %v4720
  %v5652 = vsel %vm1041, %v4544, %v4722
  %v5655 = vsel %vm1041, %v4545, %v4724
  %v5658 = vsel %vm1041, %v4546, %v4726
  %v5661 = vsel %vm1041, %v4547, %v4728
  %v5664 = vsel %vm1041, %v4548, %v4730
  %v5667 = vsel %vm1041, %v4549, %v4732
  %v5670 = vsel %vm1041, %v4550, %v4734
  %v5673 = vsel %vm1041, %v4551, %v4736
  %v5676 = vsel %vm1041, %v4552, %v4738
  %v5679 = vsel %vm1041, %v4553, %v4740
  %v5682 = vsel %vm1041, %v4554, %v4742
  %v5685 = vsel %vm1041, %v4555, %v4744
  %v5688 = vsel %vm1041, %v4556, %v4746
  %v5691 = vsel %vm1041, %v4557, %v4748
  %v5694 = vsel %vm1041, %v4558, %v4750
  %v5696 = vsel %vm1107, %v5649, %v4816
  %v5698 = vsel %vm1107, %v5652, %v4818
  %v5700 = vsel %vm1107, %v5655, %v4820
  %v5702 = vsel %vm1107, %v5658, %v4822
  %v5704 = vsel %vm1107, %v5661, %v4824
  %v5706 = vsel %vm1107, %v5664, %v4826
  %v5708 = vsel %vm1107, %v5667, %v4828
  %v5710 = vsel %vm1107, %v5670, %v4830
  %v5712 = vsel %vm1107, %v5673, %v4832
  %v5714 = vsel %vm1107, %v5676, %v4834
  %v5716 = vsel %vm1107, %v5679, %v4836
  %v5718 = vsel %vm1107, %v5682, %v4838
  %v5720 = vsel %vm1107, %v5685, %v4840
  %v5722 = vsel %vm1107, %v5688, %v4842
  %v5724 = vsel %vm1107, %v5691, %v4844
  %v5726 = vsel %vm1107, %v5694, %v4846
  %v5728 = vsel %vm1173, %v5696, %v4928
  %v5730 = vsel %vm1173, %v5698, %v4930
  %v5732 = vsel %vm1173, %v5700, %v4932
  %v5734 = vsel %vm1173, %v5702, %v4934
  %v5736 = vsel %vm1173, %v5704, %v4936
  %v5738 = vsel %vm1173, %v5706, %v4938
  %v5740 = vsel %vm1173, %v5708, %v4940
  %v5742 = vsel %vm1173, %v5710, %v4942
  %v5744 = vsel %vm1173, %v5712, %v4944
  %v5746 = vsel %vm1173, %v5714, %v4946
  %v5748 = vsel %vm1173, %v5716, %v4948
  %v5750 = vsel %vm1173, %v5718, %v4950
  %v5752 = vsel %vm1173, %v5720, %v4952
  %v5754 = vsel %vm1173, %v5722, %v4954
  %v5756 = vsel %vm1173, %v5724, %v4956
  %v5758 = vsel %vm1173, %v5726, %v4958
  %v5760 = vsel %vm1239, %v5728, %v5120
  %v5762 = vsel %vm1239, %v5730, %v5122
  %v5764 = vsel %vm1239, %v5732, %v5124
  %v5766 = vsel %vm1239, %v5734, %v5126
  %v5768 = vsel %vm1239, %v5736, %v5128
  %v5770 = vsel %vm1239, %v5738, %v5130
  %v5772 = vsel %vm1239, %v5740, %v5132
  %v5774 = vsel %vm1239, %v5742, %v5134
  %v5776 = vsel %vm1239, %v5744, %v5136
  %v5778 = vsel %vm1239, %v5746, %v5138
  %v5780 = vsel %vm1239, %v5748, %v5140
  %v5782 = vsel %vm1239, %v5750, %v5142
  %v5784 = vsel %vm1239, %v5752, %v5144
  %v5786 = vsel %vm1239, %v5754, %v5146
  %v5788 = vsel %vm1239, %v5756, %v5148
  %v5790 = vsel %vm1239, %v5758, %v5150
  %v5792 = vsel %vm3314, %v5760, %v5216
  %v5794 = vsel %vm3314, %v5762, %v5218
  %v5796 = vsel %vm3314, %v5764, %v5220
  %v5798 = vsel %vm3314, %v5766, %v5222
  %v5800 = vsel %vm3314, %v5768, %v5224
  %v5802 = vsel %vm3314, %v5770, %v5226
  %v5804 = vsel %vm3314, %v5772, %v5228
  %v5806 = vsel %vm3314, %v5774, %v5230
  %v5808 = vsel %vm3314, %v5776, %v5232
  %v5810 = vsel %vm3314, %v5778, %v5234
  %v5812 = vsel %vm3314, %v5780, %v5236
  %v5814 = vsel %vm3314, %v5782, %v5238
  %v5816 = vsel %vm3314, %v5784, %v5240
  %v5818 = vsel %vm3314, %v5786, %v5242
  %v5820 = vsel %vm3314, %v5788, %v5244
  %v5822 = vsel %vm3314, %v5790, %v5246
  %v5824 = vsel %vm3347, %v5792, %v5328
  %v5826 = vsel %vm3347, %v5794, %v5330
  %v5828 = vsel %vm3347, %v5796, %v5332
  %v5830 = vsel %vm3347, %v5798, %v5334
  %v5832 = vsel %vm3347, %v5800, %v5336
  %v5834 = vsel %vm3347, %v5802, %v5338
  %v5836 = vsel %vm3347, %v5804, %v5340
  %v5838 = vsel %vm3347, %v5806, %v5342
  %v5840 = vsel %vm3347, %v5808, %v5344
  %v5842 = vsel %vm3347, %v5810, %v5346
  %v5844 = vsel %vm3347, %v5812, %v5348
  %v5846 = vsel %vm3347, %v5814, %v5350
  %v5848 = vsel %vm3347, %v5816, %v5352
  %v5850 = vsel %vm3347, %v5818, %v5354
  %v5852 = vsel %vm3347, %v5820, %v5356
  %v5854 = vsel %vm3347, %v5822, %v5358
  %v5856 = vsel %vm3380, %v5824, %v5520
  %v5858 = vsel %vm3380, %v5826, %v5522
  %v5860 = vsel %vm3380, %v5828, %v5524
  %v5862 = vsel %vm3380, %v5830, %v5526
  %v5864 = vsel %vm3380, %v5832, %v5528
  %v5866 = vsel %vm3380, %v5834, %v5530
  %v5868 = vsel %vm3380, %v5836, %v5532
  %v5870 = vsel %vm3380, %v5838, %v5534
  %v5872 = vsel %vm3380, %v5840, %v5536
  %v5874 = vsel %vm3380, %v5842, %v5538
  %v5876 = vsel %vm3380, %v5844, %v5540
  %v5878 = vsel %vm3380, %v5846, %v5542
  %v5880 = vsel %vm3380, %v5848, %v5544
  %v5882 = vsel %vm3380, %v5850, %v5546
  %v5884 = vsel %vm3380, %v5852, %v5548
  %v5886 = vsel %vm3380, %v5854, %v5550
  %v5888 = vsel %vm3413, %v5856, %v5616
  %v5890 = vsel %vm3413, %v5858, %v5618
  %v5892 = vsel %vm3413, %v5860, %v5620
  %v5894 = vsel %vm3413, %v5862, %v5622
  %v5896 = vsel %vm3413, %v5864, %v5624
  %v5898 = vsel %vm3413, %v5866, %v5626
  %v5900 = vsel %vm3413, %v5868, %v5628
  %v5902 = vsel %vm3413, %v5870, %v5630
  %v5904 = vsel %vm3413, %v5872, %v5632
  %v5906 = vsel %vm3413, %v5874, %v5634
  %v5908 = vsel %vm3413, %v5876, %v5636
  %v5910 = vsel %vm3413, %v5878, %v5638
  %v5912 = vsel %vm3413, %v5880, %v5640
  %v5914 = vsel %vm3413, %v5882, %v5642
  %v5916 = vsel %vm3413, %v5884, %v5644
  %v5918 = vsel %vm3413, %v5886, %v5646
  %v5935 = vunpack.c.l.b16 %v5888
  %v5936 = vunpack.c.h.b16 %v5888
  %v5937 = vunpack.c.l.b16 %v5890
  %v5938 = vunpack.c.h.b16 %v5890
  %v5939 = vunpack.c.l.b16 %v5892
  %v5940 = vunpack.c.h.b16 %v5892
  %v5941 = vunpack.c.l.b16 %v5894
  %v5942 = vunpack.c.h.b16 %v5894
  %v5943 = vunpack.c.l.b16 %v5896
  %v5944 = vunpack.c.h.b16 %v5896
  %v5945 = vunpack.c.l.b16 %v5898
  %v5946 = vunpack.c.h.b16 %v5898
  %v5947 = vunpack.c.l.b16 %v5900
  %v5948 = vunpack.c.h.b16 %v5900
  %v5949 = vunpack.c.l.b16 %v5902
  %v5950 = vunpack.c.h.b16 %v5902
  %v5951 = vunpack.c.l.b16 %v5904
  %v5952 = vunpack.c.h.b16 %v5904
  %v5953 = vunpack.c.l.b16 %v5906
  %v5954 = vunpack.c.h.b16 %v5906
  %v5955 = vunpack.c.l.b16 %v5908
  %v5956 = vunpack.c.h.b16 %v5908
  %v5957 = vunpack.c.l.b16 %v5910
  %v5958 = vunpack.c.h.b16 %v5910
  %v5959 = vunpack.c.l.b16 %v5912
  %v5960 = vunpack.c.h.b16 %v5912
  %v5961 = vunpack.c.l.b16 %v5914
  %v5962 = vunpack.c.h.b16 %v5914
  %v5963 = vunpack.c.l.b16 %v5916
  %v5964 = vunpack.c.h.b16 %v5916
  %v5965 = vunpack.c.l.b16 %v5918
  %v5966 = vunpack.c.h.b16 %v5918
  %v5967 = vpack.c.b16 %v5935, %v5935
  %v5968 = vpack.c.b16 %v5936, %v5936
  %v5969 = vpack.c.b16 %v5937, %v5937
  %v5970 = vpack.c.b16 %v5938, %v5938
  %v5971 = vpack.c.b16 %v5939, %v5939
  %v5972 = vpack.c.b16 %v5940, %v5940
  %v5973 = vpack.c.b16 %v5941, %v5941
  %v5974 = vpack.c.b16 %v5942, %v5942
  %v5975 = vpack.c.b16 %v5943, %v5943
  %v5976 = vpack.c.b16 %v5944, %v5944
  %v5977 = vpack.c.b16 %v5945, %v5945
  %v5978 = vpack.c.b16 %v5946, %v5946
  %v5979 = vpack.c.b16 %v5947, %v5947
  %v5980 = vpack.c.b16 %v5948, %v5948
  %v5981 = vpack.c.b16 %v5949, %v5949
  %v5982 = vpack.c.b16 %v5950, %v5950
  %v5983 = vpack.c.b16 %v5951, %v5951
  %v5984 = vpack.c.b16 %v5952, %v5952
  %v5985 = vpack.c.b16 %v5953, %v5953
  %v5986 = vpack.c.b16 %v5954, %v5954
  %v5987 = vpack.c.b16 %v5955, %v5955
  %v5988 = vpack.c.b16 %v5956, %v5956
  %v5989 = vpack.c.b16 %v5957, %v5957
  %v5990 = vpack.c.b16 %v5958, %v5958
  %v5991 = vpack.c.b16 %v5959, %v5959
  %v5992 = vpack.c.b16 %v5960, %v5960
  %v5993 = vpack.c.b16 %v5961, %v5961
  %v5994 = vpack.c.b16 %v5962, %v5962
  %v5995 = vpack.c.b16 %v5963, %v5963
  %v5996 = vpack.c.b16 %v5964, %v5964
  %v5997 = vpack.c.b16 %v5965, %v5965
  %v5998 = vpack.c.b16 %v5966, %v5966
  %v6000 = vshrl.u32 %v5967, 16
  %v6002 = vrot.slane %v6000, 4
  %v6003 = vshll.u32 %v5967, 16
  %v6005 = vrot.slane %v6003, 5
  %v6006 = vor.u32 %v6002, %v6005
  %v6007 = vrot.slane %v6006, 4
  %v6009 = vshll.u32 %v5968, 16
  %v6011 = vrot.slane %v6009, 5
  %v6012 = vsel %vm3528, %v6007, %v6011
  %v6014 = vshrl.u32 %v5969, 16
  %v6016 = vrot.slane %v6014, 4
  %v6017 = vshll.u32 %v5969, 16
  %v6019 = vrot.slane %v6017, 5
  %v6020 = vor.u32 %v6016, %v6019
  %v6021 = vrot.slane %v6020, 4
  %v6023 = vshll.u32 %v5970, 16
  %v6025 = vrot.slane %v6023, 5
  %v6026 = vsel %vm3528, %v6021, %v6025
  %v6028 = vshrl.u32 %v5971, 16
  %v6030 = vrot.slane %v6028, 4
  %v6031 = vshll.u32 %v5971, 16
  %v6033 = vrot.slane %v6031, 5
  %v6034 = vor.u32 %v6030, %v6033
  %v6035 = vrot.slane %v6034, 4
  %v6037 = vshll.u32 %v5972, 16
  %v6039 = vrot.slane %v6037, 5
  %v6040 = vsel %vm3528, %v6035, %v6039
  %v6042 = vshrl.u32 %v5973, 16
  %v6044 = vrot.slane %v6042, 4
  %v6045 = vshll.u32 %v5973, 16
  %v6047 = vrot.slane %v6045, 5
  %v6048 = vor.u32 %v6044, %v6047
  %v6049 = vrot.slane %v6048, 4
  %v6051 = vshll.u32 %v5974, 16
  %v6053 = vrot.slane %v6051, 5
  %v6054 = vsel %vm3528, %v6049, %v6053
  %v6056 = vshrl.u32 %v5975, 16
  %v6058 = vrot.slane %v6056, 4
  %v6059 = vshll.u32 %v5975, 16
  %v6061 = vrot.slane %v6059, 5
  %v6062 = vor.u32 %v6058, %v6061
  %v6063 = vrot.slane %v6062, 4
  %v6065 = vshll.u32 %v5976, 16
  %v6067 = vrot.slane %v6065, 5
  %v6068 = vsel %vm3528, %v6063, %v6067
  %v6070 = vshrl.u32 %v5977, 16
  %v6072 = vrot.slane %v6070, 4
  %v6073 = vshll.u32 %v5977, 16
  %v6075 = vrot.slane %v6073, 5
  %v6076 = vor.u32 %v6072, %v6075
  %v6077 = vrot.slane %v6076, 4
  %v6079 = vshll.u32 %v5978, 16
  %v6081 = vrot.slane %v6079, 5
  %v6082 = vsel %vm3528, %v6077, %v6081
  %v6084 = vshrl.u32 %v5979, 16
  %v6086 = vrot.slane %v6084, 4
  %v6087 = vshll.u32 %v5979, 16
  %v6089 = vrot.slane %v6087, 5
  %v6090 = vor.u32 %v6086, %v6089
  %v6091 = vrot.slane %v6090, 4
  %v6093 = vshll.u32 %v5980, 16
  %v6095 = vrot.slane %v6093, 5
  %v6096 = vsel %vm3528, %v6091, %v6095
  %v6098 = vshrl.u32 %v5981, 16
  %v6100 = vrot.slane %v6098, 4
  %v6101 = vshll.u32 %v5981, 16
  %v6103 = vrot.slane %v6101, 5
  %v6104 = vor.u32 %v6100, %v6103
  %v6105 = vrot.slane %v6104, 4
  %v6107 = vshll.u32 %v5982, 16
  %v6109 = vrot.slane %v6107, 5
  %v6110 = vsel %vm3528, %v6105, %v6109
  %v6112 = vshrl.u32 %v5983, 16
  %v6114 = vrot.slane %v6112, 4
  %v6115 = vshll.u32 %v5983, 16
  %v6117 = vrot.slane %v6115, 5
  %v6118 = vor.u32 %v6114, %v6117
  %v6119 = vrot.slane %v6118, 4
  %v6121 = vshll.u32 %v5984, 16
  %v6123 = vrot.slane %v6121, 5
  %v6124 = vsel %vm3528, %v6119, %v6123
  %v6126 = vshrl.u32 %v5985, 16
  %v6128 = vrot.slane %v6126, 4
  %v6129 = vshll.u32 %v5985, 16
  %v6131 = vrot.slane %v6129, 5
  %v6132 = vor.u32 %v6128, %v6131
  %v6133 = vrot.slane %v6132, 4
  %v6135 = vshll.u32 %v5986, 16
  %v6137 = vrot.slane %v6135, 5
  %v6138 = vsel %vm3528, %v6133, %v6137
  %v6140 = vshrl.u32 %v5987, 16
  %v6142 = vrot.slane %v6140, 4
  %v6143 = vshll.u32 %v5987, 16
  %v6145 = vrot.slane %v6143, 5
  %v6146 = vor.u32 %v6142, %v6145
  %v6147 = vrot.slane %v6146, 4
  %v6149 = vshll.u32 %v5988, 16
  %v6151 = vrot.slane %v6149, 5
  %v6152 = vsel %vm3528, %v6147, %v6151
  %v6154 = vshrl.u32 %v5989, 16
  %v6156 = vrot.slane %v6154, 4
  %v6157 = vshll.u32 %v5989, 16
  %v6159 = vrot.slane %v6157, 5
  %v6160 = vor.u32 %v6156, %v6159
  %v6161 = vrot.slane %v6160, 4
  %v6163 = vshll.u32 %v5990, 16
  %v6165 = vrot.slane %v6163, 5
  %v6166 = vsel %vm3528, %v6161, %v6165
  %v6168 = vshrl.u32 %v5991, 16
  %v6170 = vrot.slane %v6168, 4
  %v6171 = vshll.u32 %v5991, 16
  %v6173 = vrot.slane %v6171, 5
  %v6174 = vor.u32 %v6170, %v6173
  %v6175 = vrot.slane %v6174, 4
  %v6177 = vshll.u32 %v5992, 16
  %v6179 = vrot.slane %v6177, 5
  %v6180 = vsel %vm3528, %v6175, %v6179
  %v6182 = vshrl.u32 %v5993, 16
  %v6184 = vrot.slane %v6182, 4
  %v6185 = vshll.u32 %v5993, 16
  %v6187 = vrot.slane %v6185, 5
  %v6188 = vor.u32 %v6184, %v6187
  %v6189 = vrot.slane %v6188, 4
  %v6191 = vshll.u32 %v5994, 16
  %v6193 = vrot.slane %v6191, 5
  %v6194 = vsel %vm3528, %v6189, %v6193
  %v6196 = vshrl.u32 %v5995, 16
  %v6198 = vrot.slane %v6196, 4
  %v6199 = vshll.u32 %v5995, 16
  %v6201 = vrot.slane %v6199, 5
  %v6202 = vor.u32 %v6198, %v6201
  %v6203 = vrot.slane %v6202, 4
  %v6205 = vshll.u32 %v5996, 16
  %v6207 = vrot.slane %v6205, 5
  %v6208 = vsel %vm3528, %v6203, %v6207
  %v6210 = vshrl.u32 %v5997, 16
  %v6212 = vrot.slane %v6210, 4
  %v6213 = vshll.u32 %v5997, 16
  %v6215 = vrot.slane %v6213, 5
  %v6216 = vor.u32 %v6212, %v6215
  %v6217 = vrot.slane %v6216, 4
  %v6219 = vshll.u32 %v5998, 16
  %v6221 = vrot.slane %v6219, 5
  %v6222 = vsel %vm3528, %v6217, %v6221
  %v6223 = vld [vmem:[%s6] sm:$0xf]
  %v6224 = vld [vmem:[%s6 + $0x4] sm:$0xf]
  %v6225 = vld [vmem:[%s6 + $0x8] sm:$0xf]
  %v6226 = vld [vmem:[%s6 + $0xc] sm:$0xf]
  %v6227 = vld [vmem:[%s6 + $0x10] sm:$0xf]
  %v6228 = vld [vmem:[%s6 + $0x14] sm:$0xf]
  %v6229 = vld [vmem:[%s6 + $0x18] sm:$0xf]
  %v6230 = vld [vmem:[%s6 + $0x1c] sm:$0xf]
  %v6231 = vld [vmem:[%s6 + $0x20] sm:$0xf]
  %v6232 = vunpack.c.l.b16 %v6012
  %v6233 = vunpack.c.l.b16 %v6026
  %v6234 = vunpack.c.l.b16 %v6040
  %v6235 = vunpack.c.l.b16 %v6054
  %v6236 = vunpack.c.l.b16 %v6068
  %v6237 = vunpack.c.l.b16 %v6082
  %v6238 = vunpack.c.l.b16 %v6096
  %v6239 = vunpack.c.l.b16 %v6110
  %v6240 = vunpack.c.l.b16 %v6124
  %v6241 = vunpack.c.l.b16 %v6138
  %v6242 = vunpack.c.l.b16 %v6152
  %v6243 = vunpack.c.l.b16 %v6166
  %v6244 = vunpack.c.l.b16 %v6180
  %v6245 = vunpack.c.l.b16 %v6194
  %v6246 = vunpack.c.l.b16 %v6208
  %v6247 = vunpack.c.l.b16 %v6222
  %v6248 = vpack.c.b16 %v6233, %v6232
  %v6249 = vpack.c.b16 %v6235, %v6234
  %v6250 = vpack.c.b16 %v6237, %v6236
  %v6251 = vpack.c.b16 %v6239, %v6238
  %v6252 = vpack.c.b16 %v6241, %v6240
  %v6253 = vpack.c.b16 %v6243, %v6242
  %v6254 = vpack.c.b16 %v6245, %v6244
  %v6255 = vpack.c.b16 %v6247, %v6246
  %v6265 = vunpack.c.l.b16 %v6223
  %v6266 = vunpack.c.l.b16 %v6224
  %v6267 = vunpack.c.l.b16 %v6225
  %v6268 = vunpack.c.l.b16 %v6226
  %v6269 = vunpack.c.l.b16 %v6227
  %v6270 = vunpack.c.l.b16 %v6228
  %v6271 = vunpack.c.l.b16 %v6229
  %v6272 = vunpack.c.l.b16 %v6230
  %v6273 = vunpack.c.l.b16 %v6231
  %v6274 = vpack.c.b16 %v6266, %v6265
  %v6275 = vpack.c.b16 %v6268, %v6267
  %v6276 = vpack.c.b16 %v6270, %v6269
  %v6277 = vpack.c.b16 %v6272, %v6271
  %v6278 = vpack.c.b16 %v6273, %v6273
  %v6284 = vsel %vm3813, %v6248, 0
  %v6287 = vsel %vm3813, %v6249, 0
  %v6290 = vsel %vm3813, %v6250, 0
  %v6293 = vsel %vm3813, %v6251, 0
  %v6296 = vsel %vm3813, %v6252, 0
  %v6299 = vsel %vm3813, %v6253, 0
  %v6302 = vsel %vm3813, %v6254, 0
  %v6305 = vsel %vm3813, %v6255, 0
  %v6308 = vsel %vm3838, %v6278, 0
  %6310 = vmatprep.subr.bf16.mxu0 0
  %6311 = vmatpush1.bf16.msra.mxu0 0
  %6312 = vmatprep.subr.bf16.mxu0 0
  %6313 = vmatpush1.bf16.msra.mxu0 0
  %6314 = vmatprep.subr.bf16.mxu0 0
  %6315 = vmatpush1.bf16.msra.mxu0 0
  %6316 = vmatprep.subr.bf16.mxu0 0
  %6317 = vmatpush1.bf16.msra.mxu0 %v6308
  %6318 = vmatprep.subr.bf16.mxu0 0
  %6319 = vmatpush1.bf16.msra.mxu0 %v6277
  %6320 = vmatprep.subr.bf16.mxu0 0
  %6321 = vmatpush1.bf16.msra.mxu0 %v6276
  %6322 = vmatprep.subr.bf16.mxu0 0
  %6323 = vmatpush1.bf16.msra.mxu0 %v6275
  %6324 = vmatprep.subr.bf16.mxu0 0
  %6325 = vmatpush1.bf16.msra.mxu0 %v6274
  %6326 = vmatprep.subr.bf16.mxu0 0
  %6327 = vmatpush2.bf16.msra.mxu0 0
  %6328 = vmatprep.subr.bf16.mxu0 0
  %6329 = vmatpush2.bf16.msra.mxu0 0
  %6330 = vmatprep.subr.bf16.mxu0 0
  %6331 = vmatpush2.bf16.msra.mxu0 0
  %6332 = vmatprep.subr.bf16.mxu0 0
  %6333 = vmatpush2.bf16.msra.mxu0 0
  %6334 = vmatprep.subr.bf16.mxu0 0
  %6335 = vmatpush2.bf16.msra.mxu0 0
  %6336 = vmatprep.subr.bf16.mxu0 0
  %6337 = vmatpush2.bf16.msra.mxu0 0
  %6338 = vmatprep.subr.bf16.mxu0 0
  %6339 = vmatpush2.bf16.msra.mxu0 0
  %6340 = vmatprep.subr.bf16.mxu0 0
  %6341 = vmatpush2.bf16.msra.mxu0 0
  %6342 = vmatprep.mubr.bf16.mxu0 0
  %6343 = vmatmul.mubr.bf16.gmra.mxu0 %v6284
  %v6344 = vpop.f32.mrf.mxu0
  %v6345 = vadd.f32 0.0, %v6344
  %v6346 = vpop.f32.mrf.mxu0
  %v6347 = vpop.f32.mrf.mxu0
  %v6348 = vadd.f32 0.0, %v6347
  %v6349 = vpop.f32.mrf.mxu0
  %6350 = vmatprep.mubr.bf16.mxu0 0
  %6351 = vmatmul.mubr.bf16.gmra.mxu0 %v6287
  %v6352 = vpop.f32.mrf.mxu0
  %v6353 = vadd.f32 0.0, %v6352
  %v6354 = vpop.f32.mrf.mxu0
  %v6355 = vpop.f32.mrf.mxu0
  %v6356 = vadd.f32 0.0, %v6355
  %v6357 = vpop.f32.mrf.mxu0
  %6358 = vmatprep.mubr.bf16.mxu0 0
  %6359 = vmatmul.mubr.bf16.gmra.mxu0 %v6290
  %v6360 = vpop.f32.mrf.mxu0
  %v6361 = vadd.f32 0.0, %v6360
  %v6362 = vpop.f32.mrf.mxu0
  %v6363 = vpop.f32.mrf.mxu0
  %v6364 = vadd.f32 0.0, %v6363
  %v6365 = vpop.f32.mrf.mxu0
  %6366 = vmatprep.mubr.bf16.mxu0 0
  %6367 = vmatmul.mubr.bf16.gmra.mxu0 %v6293
  %v6368 = vpop.f32.mrf.mxu0
  %v6369 = vadd.f32 0.0, %v6368
  %v6370 = vpop.f32.mrf.mxu0
  %v6371 = vpop.f32.mrf.mxu0
  %v6372 = vadd.f32 0.0, %v6371
  %v6373 = vpop.f32.mrf.mxu0
  %6374 = vmatprep.mubr.bf16.mxu0 0
  %6375 = vmatmul.mubr.bf16.gmra.mxu0 %v6296
  %v6376 = vpop.f32.mrf.mxu0
  %v6377 = vadd.f32 0.0, %v6376
  %v6378 = vpop.f32.mrf.mxu0
  %v6379 = vpop.f32.mrf.mxu0
  %v6380 = vadd.f32 0.0, %v6379
  %v6381 = vpop.f32.mrf.mxu0
  %6382 = vmatprep.mubr.bf16.mxu0 0
  %6383 = vmatmul.mubr.bf16.gmra.mxu0 %v6299
  %v6384 = vpop.f32.mrf.mxu0
  %v6385 = vadd.f32 0.0, %v6384
  %v6386 = vpop.f32.mrf.mxu0
  %v6387 = vpop.f32.mrf.mxu0
  %v6388 = vadd.f32 0.0, %v6387
  %v6389 = vpop.f32.mrf.mxu0
  %6390 = vmatprep.mubr.bf16.mxu0 0
  %6391 = vmatmul.mubr.bf16.gmra.mxu0 %v6302
  %v6392 = vpop.f32.mrf.mxu0
  %v6393 = vadd.f32 0.0, %v6392
  %v6394 = vpop.f32.mrf.mxu0
  %v6395 = vpop.f32.mrf.mxu0
  %v6396 = vadd.f32 0.0, %v6395
  %v6397 = vpop.f32.mrf.mxu0
  %6398 = vmatprep.mubr.bf16.mxu0 0
  %6399 = vmatmul.mubr.bf16.gmra.mxu0 %v6305
  %v6400 = vpop.f32.mrf.mxu0
  %v6401 = vadd.f32 0.0, %v6400
  %v6402 = vpop.f32.mrf.mxu0
  %v6403 = vpop.f32.mrf.mxu0
  %v6404 = vadd.f32 0.0, %v6403
  %v6405 = vpop.f32.mrf.mxu0
  %6406 = vdwg.mxu0
  %v6407 = vadd.f32 %v1396, %v6345
  %v6408 = vadd.f32 %v1399, %v6348
  %v6409 = vadd.f32 %v1404, %v6353
  %v6410 = vadd.f32 %v1407, %v6356
  %v6411 = vadd.f32 %v1412, %v6361
  %v6412 = vadd.f32 %v1415, %v6364
  %v6413 = vadd.f32 %v1420, %v6369
  %v6414 = vadd.f32 %v1423, %v6372
  %v6415 = vadd.f32 %v1428, %v6377
  %v6416 = vadd.f32 %v1431, %v6380
  %v6417 = vadd.f32 %v1436, %v6385
  %v6418 = vadd.f32 %v1439, %v6388
  %v6419 = vadd.f32 %v1444, %v6393
  %v6420 = vadd.f32 %v1447, %v6396
  %v6421 = vadd.f32 %v1452, %v6401
  %v6422 = vadd.f32 %v1455, %v6404
  %v6439 = vrot.slane %v6408, 7
  %vm6440 = vcmask 1041409
  %v6441 = vsel %vm6440, %v6439, %v6407
  %v6442 = vrot.slane %v6409, 6
  %vm6443 = vcmask 1042434
  %v6444 = vsel %vm6443, %v6442, %v6441
  %v6445 = vrot.slane %v6410, 5
  %vm6446 = vcmask 1043459
  %v6447 = vsel %vm6446, %v6445, %v6444
  %v6448 = vrot.slane %v6411, 4
  %vm6449 = vcmask 1044484
  %v6450 = vsel %vm6449, %v6448, %v6447
  %v6451 = vrot.slane %v6412, 3
  %vm6452 = vcmask 1045509
  %v6453 = vsel %vm6452, %v6451, %v6450
  %v6454 = vrot.slane %v6413, 2
  %vm6455 = vcmask 1046534
  %v6456 = vsel %vm6455, %v6454, %v6453
  %v6457 = vrot.slane %v6414, 1
  %vm6458 = vcmask 1047559
  %v6459 = vsel %vm6458, %v6457, %v6456
  %v6460 = vrot.slane %v6416, 7
  %v6461 = vsel %vm6440, %v6460, %v6415
  %v6462 = vrot.slane %v6417, 6
  %v6463 = vsel %vm6443, %v6462, %v6461
  %v6464 = vrot.slane %v6418, 5
  %v6465 = vsel %vm6446, %v6464, %v6463
  %v6466 = vrot.slane %v6419, 4
  %v6467 = vsel %vm6449, %v6466, %v6465
  %v6468 = vrot.slane %v6420, 3
  %v6469 = vsel %vm6452, %v6468, %v6467
  %v6470 = vrot.slane %v6421, 2
  %v6471 = vsel %vm6455, %v6470, %v6469
  %v6472 = vrot.slane %v6422, 1
  %v6473 = vsel %vm6458, %v6472, %v6471
  %v6476 = vrot.slane %v6407, 1
  %v6477 = vsel %vm6440, %v6408, %v6476
  %v6478 = vrot.slane %v6409, 7
  %v6479 = vsel %vm6443, %v6478, %v6477
  %v6480 = vrot.slane %v6410, 6
  %v6481 = vsel %vm6446, %v6480, %v6479
  %v6482 = vrot.slane %v6411, 5
  %v6483 = vsel %vm6449, %v6482, %v6481
  %v6484 = vrot.slane %v6412, 4
  %v6485 = vsel %vm6452, %v6484, %v6483
  %v6486 = vrot.slane %v6413, 3
  %v6487 = vsel %vm6455, %v6486, %v6485
  %v6488 = vrot.slane %v6414, 2
  %v6489 = vsel %vm6458, %v6488, %v6487
  %v6490 = vrot.slane %v6415, 1
  %v6491 = vsel %vm6440, %v6416, %v6490
  %v6492 = vrot.slane %v6417, 7
  %v6493 = vsel %vm6443, %v6492, %v6491
  %v6494 = vrot.slane %v6418, 6
  %v6495 = vsel %vm6446, %v6494, %v6493
  %v6496 = vrot.slane %v6419, 5
  %v6497 = vsel %vm6449, %v6496, %v6495
  %v6498 = vrot.slane %v6420, 4
  %v6499 = vsel %vm6452, %v6498, %v6497
  %v6500 = vrot.slane %v6421, 3
  %v6501 = vsel %vm6455, %v6500, %v6499
  %v6502 = vrot.slane %v6422, 2
  %v6503 = vsel %vm6458, %v6502, %v6501
  %6504 = vrot.lane.b32.xlu0 %v6489, 8
  %v6505 = vpop.permute.xlu0 %6504
  %6506 = vrot.lane.b32.xlu0 %v6503, 8
  %v6507 = vpop.permute.xlu0 %6506
  %v6510 = vrot.slane %v6407, 2
  %v6511 = vrot.slane %v6408, 1
  %v6512 = vsel %vm6440, %v6511, %v6510
  %v6513 = vsel %vm6443, %v6409, %v6512
  %v6514 = vrot.slane %v6410, 7
  %v6515 = vsel %vm6446, %v6514, %v6513
  %v6516 = vrot.slane %v6411, 6
  %v6517 = vsel %vm6449, %v6516, %v6515
  %v6518 = vrot.slane %v6412, 5
  %v6519 = vsel %vm6452, %v6518, %v6517
  %v6520 = vrot.slane %v6413, 4
  %v6521 = vsel %vm6455, %v6520, %v6519
  %v6522 = vrot.slane %v6414, 3
  %v6523 = vsel %vm6458, %v6522, %v6521
  %v6524 = vrot.slane %v6415, 2
  %v6525 = vrot.slane %v6416, 1
  %v6526 = vsel %vm6440, %v6525, %v6524
  %v6527 = vsel %vm6443, %v6417, %v6526
  %v6528 = vrot.slane %v6418, 7
  %v6529 = vsel %vm6446, %v6528, %v6527
  %v6530 = vrot.slane %v6419, 6
  %v6531 = vsel %vm6449, %v6530, %v6529
  %v6532 = vrot.slane %v6420, 5
  %v6533 = vsel %vm6452, %v6532, %v6531
  %v6534 = vrot.slane %v6421, 4
  %v6535 = vsel %vm6455, %v6534, %v6533
  %v6536 = vrot.slane %v6422, 3
  %v6537 = vsel %vm6458, %v6536, %v6535
  %6538 = vrot.lane.b32.xlu0 %v6523, 16
  %v6539 = vpop.permute.xlu0 %6538
  %6540 = vrot.lane.b32.xlu0 %v6537, 16
  %v6541 = vpop.permute.xlu0 %6540
  %v6544 = vrot.slane %v6407, 3
  %v6545 = vrot.slane %v6408, 2
  %v6546 = vsel %vm6440, %v6545, %v6544
  %v6547 = vrot.slane %v6409, 1
  %v6548 = vsel %vm6443, %v6547, %v6546
  %v6549 = vsel %vm6446, %v6410, %v6548
  %v6550 = vrot.slane %v6411, 7
  %v6551 = vsel %vm6449, %v6550, %v6549
  %v6552 = vrot.slane %v6412, 6
  %v6553 = vsel %vm6452, %v6552, %v6551
  %v6554 = vrot.slane %v6413, 5
  %v6555 = vsel %vm6455, %v6554, %v6553
  %v6556 = vrot.slane %v6414, 4
  %v6557 = vsel %vm6458, %v6556, %v6555
  %v6558 = vrot.slane %v6415, 3
  %v6559 = vrot.slane %v6416, 2
  %v6560 = vsel %vm6440, %v6559, %v6558
  %v6561 = vrot.slane %v6417, 1
  %v6562 = vsel %vm6443, %v6561, %v6560
  %v6563 = vsel %vm6446, %v6418, %v6562
  %v6564 = vrot.slane %v6419, 7
  %v6565 = vsel %vm6449, %v6564, %v6563
  %v6566 = vrot.slane %v6420, 6
  %v6567 = vsel %vm6452, %v6566, %v6565
  %v6568 = vrot.slane %v6421, 5
  %v6569 = vsel %vm6455, %v6568, %v6567
  %v6570 = vrot.slane %v6422, 4
  %v6571 = vsel %vm6458, %v6570, %v6569
  %6572 = vrot.lane.b32.xlu0 %v6557, 24
  %v6573 = vpop.permute.xlu0 %6572
  %6574 = vrot.lane.b32.xlu0 %v6571, 24
  %v6575 = vpop.permute.xlu0 %6574
  %v6578 = vrot.slane %v6407, 4
  %v6579 = vrot.slane %v6408, 3
  %v6580 = vsel %vm6440, %v6579, %v6578
  %v6581 = vrot.slane %v6409, 2
  %v6582 = vsel %vm6443, %v6581, %v6580
  %v6583 = vrot.slane %v6410, 1
  %v6584 = vsel %vm6446, %v6583, %v6582
  %v6585 = vsel %vm6449, %v6411, %v6584
  %v6586 = vrot.slane %v6412, 7
  %v6587 = vsel %vm6452, %v6586, %v6585
  %v6588 = vrot.slane %v6413, 6
  %v6589 = vsel %vm6455, %v6588, %v6587
  %v6590 = vrot.slane %v6414, 5
  %v6591 = vsel %vm6458, %v6590, %v6589
  %v6592 = vrot.slane %v6415, 4
  %v6593 = vrot.slane %v6416, 3
  %v6594 = vsel %vm6440, %v6593, %v6592
  %v6595 = vrot.slane %v6417, 2
  %v6596 = vsel %vm6443, %v6595, %v6594
  %v6597 = vrot.slane %v6418, 1
  %v6598 = vsel %vm6446, %v6597, %v6596
  %v6599 = vsel %vm6449, %v6419, %v6598
  %v6600 = vrot.slane %v6420, 7
  %v6601 = vsel %vm6452, %v6600, %v6599
  %v6602 = vrot.slane %v6421, 6
  %v6603 = vsel %vm6455, %v6602, %v6601
  %v6604 = vrot.slane %v6422, 5
  %v6605 = vsel %vm6458, %v6604, %v6603
  %6606 = vrot.lane.b32.xlu0 %v6591, 32
  %v6607 = vpop.permute.xlu0 %6606
  %6608 = vrot.lane.b32.xlu0 %v6605, 32
  %v6609 = vpop.permute.xlu0 %6608
  %v6612 = vrot.slane %v6407, 5
  %v6613 = vrot.slane %v6408, 4
  %v6614 = vsel %vm6440, %v6613, %v6612
  %v6615 = vrot.slane %v6409, 3
  %v6616 = vsel %vm6443, %v6615, %v6614
  %v6617 = vrot.slane %v6410, 2
  %v6618 = vsel %vm6446, %v6617, %v6616
  %v6619 = vrot.slane %v6411, 1
  %v6620 = vsel %vm6449, %v6619, %v6618
  %v6621 = vsel %vm6452, %v6412, %v6620
  %v6622 = vrot.slane %v6413, 7
  %v6623 = vsel %vm6455, %v6622, %v6621
  %v6624 = vrot.slane %v6414, 6
  %v6625 = vsel %vm6458, %v6624, %v6623
  %v6626 = vrot.slane %v6415, 5
  %v6627 = vrot.slane %v6416, 4
  %v6628 = vsel %vm6440, %v6627, %v6626
  %v6629 = vrot.slane %v6417, 3
  %v6630 = vsel %vm6443, %v6629, %v6628
  %v6631 = vrot.slane %v6418, 2
  %v6632 = vsel %vm6446, %v6631, %v6630
  %v6633 = vrot.slane %v6419, 1
  %v6634 = vsel %vm6449, %v6633, %v6632
  %v6635 = vsel %vm6452, %v6420, %v6634
  %v6636 = vrot.slane %v6421, 7
  %v6637 = vsel %vm6455, %v6636, %v6635
  %v6638 = vrot.slane %v6422, 6
  %v6639 = vsel %vm6458, %v6638, %v6637
  %6640 = vrot.lane.b32.xlu0 %v6625, 40
  %v6641 = vpop.permute.xlu0 %6640
  %6642 = vrot.lane.b32.xlu0 %v6639, 40
  %v6643 = vpop.permute.xlu0 %6642
  %v6646 = vrot.slane %v6407, 6
  %v6647 = vrot.slane %v6408, 5
  %v6648 = vsel %vm6440, %v6647, %v6646
  %v6649 = vrot.slane %v6409, 4
  %v6650 = vsel %vm6443, %v6649, %v6648
  %v6651 = vrot.slane %v6410, 3
  %v6652 = vsel %vm6446, %v6651, %v6650
  %v6653 = vrot.slane %v6411, 2
  %v6654 = vsel %vm6449, %v6653, %v6652
  %v6655 = vrot.slane %v6412, 1
  %v6656 = vsel %vm6452, %v6655, %v6654
  %v6657 = vsel %vm6455, %v6413, %v6656
  %v6658 = vrot.slane %v6414, 7
  %v6659 = vsel %vm6458, %v6658, %v6657
  %v6660 = vrot.slane %v6415, 6
  %v6661 = vrot.slane %v6416, 5
  %v6662 = vsel %vm6440, %v6661, %v6660
  %v6663 = vrot.slane %v6417, 4
  %v6664 = vsel %vm6443, %v6663, %v6662
  %v6665 = vrot.slane %v6418, 3
  %v6666 = vsel %vm6446, %v6665, %v6664
  %v6667 = vrot.slane %v6419, 2
  %v6668 = vsel %vm6449, %v6667, %v6666
  %v6669 = vrot.slane %v6420, 1
  %v6670 = vsel %vm6452, %v6669, %v6668
  %v6671 = vsel %vm6455, %v6421, %v6670
  %v6672 = vrot.slane %v6422, 7
  %v6673 = vsel %vm6458, %v6672, %v6671
  %6674 = vrot.lane.b32.xlu0 %v6659, 48
  %v6675 = vpop.permute.xlu0 %6674
  %6676 = vrot.lane.b32.xlu0 %v6673, 48
  %v6677 = vpop.permute.xlu0 %6676
  %v6680 = vrot.slane %v6407, 7
  %v6681 = vrot.slane %v6408, 6
  %v6682 = vsel %vm6440, %v6681, %v6680
  %v6683 = vrot.slane %v6409, 5
  %v6684 = vsel %vm6443, %v6683, %v6682
  %v6685 = vrot.slane %v6410, 4
  %v6686 = vsel %vm6446, %v6685, %v6684
  %v6687 = vrot.slane %v6411, 3
  %v6688 = vsel %vm6449, %v6687, %v6686
  %v6689 = vrot.slane %v6412, 2
  %v6690 = vsel %vm6452, %v6689, %v6688
  %v6691 = vrot.slane %v6413, 1
  %v6692 = vsel %vm6455, %v6691, %v6690
  %v6693 = vsel %vm6458, %v6414, %v6692
  %v6694 = vrot.slane %v6415, 7
  %v6695 = vrot.slane %v6416, 6
  %v6696 = vsel %vm6440, %v6695, %v6694
  %v6697 = vrot.slane %v6417, 5
  %v6698 = vsel %vm6443, %v6697, %v6696
  %v6699 = vrot.slane %v6418, 4
  %v6700 = vsel %vm6446, %v6699, %v6698
  %v6701 = vrot.slane %v6419, 3
  %v6702 = vsel %vm6449, %v6701, %v6700
  %v6703 = vrot.slane %v6420, 2
  %v6704 = vsel %vm6452, %v6703, %v6702
  %v6705 = vrot.slane %v6421, 1
  %v6706 = vsel %vm6455, %v6705, %v6704
  %v6707 = vsel %vm6458, %v6422, %v6706
  %6708 = vrot.lane.b32.xlu0 %v6693, 56
  %v6709 = vpop.permute.xlu0 %6708
  %6710 = vrot.lane.b32.xlu0 %v6707, 56
  %v6711 = vpop.permute.xlu0 %6710
  %v6714 = vsel %vm1041, %v6459, %v6505
  %v6715 = vsel %vm1041, %v6473, %v6507
  %v6716 = vsel %vm1107, %v6714, %v6539
  %v6717 = vsel %vm1107, %v6715, %v6541
  %v6718 = vsel %vm1173, %v6716, %v6573
  %v6719 = vsel %vm1173, %v6717, %v6575
  %v6720 = vsel %vm1239, %v6718, %v6607
  %v6721 = vsel %vm1239, %v6719, %v6609
  %v6722 = vsel %vm3314, %v6720, %v6641
  %v6723 = vsel %vm3314, %v6721, %v6643
  %v6724 = vsel %vm3347, %v6722, %v6675
  %v6725 = vsel %vm3347, %v6723, %v6677
  %v6726 = vsel %vm3380, %v6724, %v6709
  %v6727 = vsel %vm3380, %v6725, %v6711
  %6728 = vst.msk [vmem:[%s11] sm:$0xff] %vm3413, %v6726
  %6729 = vst.msk [vmem:[%s11 + $0x8] sm:$0xff] %vm3413, %v6727
  // Predicated region
  $region46: #{down_forward_pallas.1} parent=0 // pred_check
    _
  $region47: #{down_forward_pallas.1} parent=0 // pred_check_branch
    %6731 = sbr.rel (0) target = $region49
  $region48: #{down_forward_pallas.1} parent=0 // pred_region
    _
  $region49: #{down_forward_pallas.1} parent=0 // pred_fallthru
    _
  // Predicated region
  $region50: #{down_forward_pallas.1} parent=0 // pred_check
    _
  $region51: #{down_forward_pallas.1} parent=0 // pred_check_branch
    %6733 = sbr.rel (0) target = $region53
  $region52: #{down_forward_pallas.1} parent=0 // pred_region
    _
  $region53: #{down_forward_pallas.1} parent=0 // pred_fallthru
    _

</llo_original>
